<compile_context>
chip_gen: v7x
topology: tpu7x:2x2x1
jax: 0.10.0
libtpu: 0.0.40
codegen_flags: <defaults>
</compile_context>

<pallas_src>
import functools

import numpy as np
import jax
import jax.numpy as jnp
from jax.experimental import pallas as pl
from jax.experimental.pallas import tpu as pltpu

GROUP = 128                      # 128-lane group per 2x2 pool position in the packed conv weight
MAX_BATCH_BLOCK = 8              # batch elements per conv grid step
MAX_B_TILE = 256                 # batch tile for the MLP kernel
VMEM_LIMIT = 32 * 1024 * 1024    # explicit scoped-VMEM cap (safe on v5e/v6e and v7x's 64 MiB)


# ----------------------------- Pallas kernels ------------------------------

def _conv_relu_pool_kernel(x_ref, w_ref, b_ref, o_ref, *, sw, cout):
    """Fused 3x3 conv (pad 1) + bias + ReLU + 2x2/2 max-pool on a batch block.

    x_ref: (bb, Lin, 4*cin) bf16  -- padded, 2x2 space-to-depth, flattened input.
    w_ref: (4, 4*cin, 4*GROUP) bf16 resident -- one tap matrix per s2d offset,
           one 128-lane group per pool position.
    b_ref: (1, cout) f32 resident.
    o_ref: (bb, hh*sw, cout) bf16 -- pooled rows; column sw-1 of each row is a
           throwaway pad column dropped by the wrapper.
    """
    bb = x_ref.shape[0]
    m = o_ref.shape[1]
    for b in range(bb):                              # small static unroll
        acc = None
        for qi in range(2):                          # four s2d taps, each a
            for qj in range(2):                      # contiguous shifted slab
                t = 2 * qi + qj
                shift = qi * sw + qj
                xs = x_ref[b, shift:shift + m, :]                    # (m, 4*cin) bf16
                d = jnp.dot(xs, w_ref[t], preferred_element_type=jnp.float32)
                acc = d if acc is None else acc + d                  # (m, 4*GROUP) f32
        # max over the four pool-position groups (128-lane-aligned slices)
        pooled = jnp.maximum(
            jnp.maximum(acc[:, 0 * GROUP:1 * GROUP], acc[:, 1 * GROUP:2 * GROUP]),
            jnp.maximum(acc[:, 2 * GROUP:3 * GROUP], acc[:, 3 * GROUP:4 * GROUP]))
        y = jnp.maximum(pooled[:, :cout] + b_ref[...], 0.0)          # bias + ReLU
        o_ref[b] = y.astype(o_ref.dtype)


def _mlp_kernel(x_ref, w1_ref, b1_ref, w2_ref, b2_ref, o_ref):
    """fc2(relu(fc1(x))) with both (bf16) weight matrices resident in VMEM."""
    h = jnp.dot(x_ref[...], w1_ref[...], preferred_element_type=jnp.float32)
    h = jnp.maximum(h + b1_ref[...], 0.0)
    y = jnp.dot(h.astype(w2_ref.dtype), w2_ref[...],
                preferred_element_type=jnp.float32)
    o_ref[...] = (y + b2_ref[...]).astype(o_ref.dtype)


# ------------------------------ layer wrappers ------------------------------

def _s2d_flatten(x_nhwc):
    """pad-by-1 + 2x2 space-to-depth + row-major flatten, bf16.

    (B, H, W, C) -> (B, Lin, 4C) with element [b, i*Sw + j, (2*di+dj)*C + c] =
    x_padded[b, 2i+di, 2j+dj, c]; Lin is padded to a multiple of 8 with at
    least one extra zero row so shifted in-kernel slabs never read OOB.
    """
    B, H, W, C = x_nhwc.shape
    sh, sw = (H + 2) // 2, (W + 2) // 2
    xp = jnp.pad(x_nhwc, ((0, 0), (1, 1), (1, 1), (0, 0)))
    xs = (xp.reshape(B, sh, 2, sw, 2, C)
            .transpose(0, 1, 3, 2, 4, 5)
            .reshape(B, sh * sw, 4 * C))
    lin = ((sh * sw + 1 + 7) // 8) * 8
    xs = jnp.pad(xs, ((0, 0), (0, lin - sh * sw), (0, 0)))
    return xs.astype(jnp.bfloat16)


def conv3x3_relu_pool(x_nhwc, wk, bias):
    """3x3 conv (stride 1, pad 1) + bias + ReLU + 2x2 max-pool, NHWC in/out (bf16)."""
    B, H, W, _ = x_nhwc.shape
    cout = bias.shape[1]
    hh, wh = H // 2, W // 2
    sw = wh + 1                              # flat row stride in s2d space (incl. pad col)
    m = hh * sw

    xflat = _s2d_flatten(x_nhwc)             # (B, Lin, 4*cin) bf16
    _, lin, kc = xflat.shape

    bb = min(MAX_BATCH_BLOCK, max(1, -(-B // 2)))   # >=2 grid steps when B >= 2 (v7x)
    grid = (pl.cdiv(B, bb),)

    kern = functools.partial(_conv_relu_pool_kernel, sw=sw, cout=cout)
    out = pl.pallas_call(
        kern,
        out_shape=jax.ShapeDtypeStruct((B, m, cout), jnp.bfloat16),
        grid=grid,
        in_specs=[
            pl.BlockSpec((bb, lin, kc), lambda i: (i, 0, 0)),   # pipelined activations
            pl.BlockSpec(wk.shape, lambda i: (0, 0, 0)),        # resident packed weights
            pl.BlockSpec((1, cout), lambda i: (0, 0)),          # resident bias
        ],
        out_specs=pl.BlockSpec((bb, m, cout), lambda i: (i, 0, 0)),
        compiler_params=pltpu.CompilerParams(
            dimension_semantics=("parallel",),
            vmem_limit_bytes=VMEM_LIMIT,
        ),
        # advisory: useful conv flops / true bytes (no padding counted)
        cost_estimate=pl.CostEstimate(
            flops=2 * B * hh * wh * 9 * (kc // 4) * cout,
            transcendentals=0,
            bytes_accessed=2 * (B * lin * kc + wk.size + B * m * cout) + 4 * cout,
        ),
    )(xflat, wk, bias)

    # drop the per-row pad column; fuses into the next layer's XLA-side prep
    return out.reshape(B, hh, sw, cout)[:, :, :wh, :]


def mlp(x_flat, w1, b1, w2, b2):
    """fc2(relu(fc1(x))).  x_flat (B, F) bf16, w1 (F, 128) bf16, w2 (128, 10) bf16."""
    B, F = x_flat.shape
    N1, N2 = w1.shape[1], w2.shape[1]
    if B <= 8:
        bt = B                                               # block == full dim
    else:
        bt = min(MAX_B_TILE, ((-(-B // 2) + 7) // 8) * 8)    # >=2 steps, 8-aligned
    grid = (pl.cdiv(B, bt),)

    return pl.pallas_call(
        _mlp_kernel,
        out_shape=jax.ShapeDtypeStruct((B, N2), jnp.float32),
        grid=grid,
        in_specs=[
            pl.BlockSpec((bt, F), lambda i: (i, 0)),          # pipelined activations
            pl.BlockSpec((F, N1), lambda i: (0, 0)),          # resident fc1 weight
            pl.BlockSpec((1, N1), lambda i: (0, 0)),
            pl.BlockSpec((N1, N2), lambda i: (0, 0)),         # resident fc2 weight
            pl.BlockSpec((1, N2), lambda i: (0, 0)),
        ],
        out_specs=pl.BlockSpec((bt, N2), lambda i: (i, 0)),
        compiler_params=pltpu.CompilerParams(
            dimension_semantics=("parallel",),
            vmem_limit_bytes=VMEM_LIMIT,
        ),
        cost_estimate=pl.CostEstimate(
            flops=2 * B * (F * N1 + N1 * N2),
            transcendentals=0,
            bytes_accessed=2 * (B * F + F * N1 + N1 * N2) + 4 * (B * N2 + N1 + N2),
        ),
    )(x_flat, w1, b1, w2, b2)


# ------------------------- params: init + one-time prep ---------------------

def init_params(key):
    """Parameters in the PyTorch layouts (Conv2d (out,in,kh,kw); Linear (out,in))."""
    ks = jax.random.split(key, 8)
    s = 0.05
    return dict(
        conv1_w=jax.random.normal(ks[0], (16, 1, 3, 3), jnp.float32) * s,
        conv1_b=jax.random.normal(ks[1], (16,), jnp.float32) * s,
        conv2_w=jax.random.normal(ks[2], (32, 16, 3, 3), jnp.float32) * s,
        conv2_b=jax.random.normal(ks[3], (32,), jnp.float32) * s,
        fc1_w=jax.random.normal(ks[4], (128, 32 * 7 * 7), jnp.float32) * s,
        fc1_b=jax.random.normal(ks[5], (128,), jnp.float32) * s,
        fc2_w=jax.random.normal(ks[6], (10, 128), jnp.float32) * s,
        fc2_b=jax.random.normal(ks[7], (10,), jnp.float32) * s,
    )


def prepare_params(params):
    """One-time repack of torch-layout params into kernel-ready operands."""

    def pack_conv(w, b):
        w = np.asarray(w, np.float32)                 # (cout, cin, 3, 3)
        b = np.asarray(b, np.float32)
        cout, cin = w.shape[0], w.shape[1]
        wk = np.zeros((4, 4 * cin, 4 * GROUP), np.float32)
        # tap t = (qi, qj): s2d offset; row group (di, dj): s2d sub-position;
        # col group (pi, pj): 2x2 pool position; original tap (kh, kw) recovered.
        for qi in range(2):
            for qj in range(2):
                t = 2 * qi + qj
                for di in range(2):
                    for dj in range(2):
                        for pi in range(2):
                            for pj in range(2):
                                kh = 2 * qi + di - pi
                                kw = 2 * qj + dj - pj
                                if 0 <= kh < 3 and 0 <= kw < 3:
                                    r0 = (2 * di + dj) * cin
                                    c0 = (2 * pi + pj) * GROUP
                                    wk[t, r0:r0 + cin, c0:c0 + cout] = w[:, :, kh, kw].T
        return (jnp.asarray(wk, jnp.bfloat16),
                jnp.asarray(b.reshape(1, cout), jnp.float32))

    c1w, c1b = pack_conv(params["conv1_w"], params["conv1_b"])
    c2w, c2b = pack_conv(params["conv2_w"], params["conv2_b"])

    # fc1: torch (out=128, in=1568) with input features in torch's (c, h, w)
    # flatten order -> transpose to (in, out) and permute rows to our (h, w, c)
    # NHWC flatten order.
    f1 = np.asarray(params["fc1_w"], np.float32).reshape(128, 32, 7, 7)
    w1 = jnp.asarray(f1.transpose(2, 3, 1, 0).reshape(32 * 7 * 7, 128), jnp.bfloat16)
    b1 = jnp.asarray(np.asarray(params["fc1_b"], np.float32).reshape(1, 128), jnp.float32)
    w2 = jnp.asarray(np.asarray(params["fc2_w"], np.float32).T, jnp.bfloat16)   # (128, 10)
    b2 = jnp.asarray(np.asarray(params["fc2_b"], np.float32).reshape(1, 10), jnp.float32)
    return dict(c1w=c1w, c1b=c1b, c2w=c2w, c2b=c2b, w1=w1, b1=b1, w2=w2, b2=b2)


# ------------------------------ full forward --------------------------------

@jax.jit
def simple_cnn_forward(packed, x):
    # x: (B, 1, 28, 28) float32, NCHW (PyTorch convention)
    B = x.shape[0]
    x = jnp.transpose(x, (0, 2, 3, 1)).astype(jnp.bfloat16)          # NHWC bf16
    x = conv3x3_relu_pool(x, packed["c1w"], packed["c1b"])           # (B, 14, 14, 16)
    x = conv3x3_relu_pool(x, packed["c2w"], packed["c2b"])           # (B, 7, 7, 32)
    x_flat = x.reshape(B, 7 * 7 * 32)                                # (h, w, c) order
    return mlp(x_flat, packed["w1"], packed["b1"], packed["w2"], packed["b2"])  # (B, 10) f32


if __name__ == "__main__":
    key = jax.random.PRNGKey(0)
    pkey, xkey = jax.random.split(key)
    params = init_params(pkey)
    packed = prepare_params(params)          # one-time weight repack (outside jit)
    # fc1 expects 32*7*7 features => input is (B, 1, 28, 28).
    x = jax.random.normal(xkey, (2, 1, 28, 28), jnp.float32)
    out = simple_cnn_forward(packed, x)
    jax.block_until_ready(out)
    assert out.shape == (2, 10) and out.dtype == jnp.float32
    assert bool(jnp.all(jnp.isfinite(out)))
    print("KERNEL_OK")
</pallas_src>

<mosaic_0001>
module attributes {stable_mosaic.version = 11 : i64} {
  func.func @_conv_relu_pool_kernel(%arg0: i32, %arg1: memref<1x232x4xbf16, #tpu.memory_space<vmem>>, %arg2: memref<4x4x512xbf16, #tpu.memory_space<vmem>>, %arg3: memref<1x16xf32, #tpu.memory_space<vmem>>, %arg4: memref<1x210x16xbf16, #tpu.memory_space<vmem>>) attributes {dimension_semantics = [#tpu.dimension_semantics<parallel>], iteration_bounds = array<i64: 2>, scalar_prefetch = 0 : i64, scratch_operands = 0 : i64, tpu.core_type = #tpu.core_type<tc>, window_params = [{transform_indices = @transform_0, window_bounds = array<i64: 1, 232, 4>}, {pipeline_mode = #tpu.pipeline_mode<synchronous>, transform_indices = @transform_1, window_bounds = array<i64: 4, 4, 512>}, {pipeline_mode = #tpu.pipeline_mode<synchronous>, transform_indices = @transform_2, window_bounds = array<i64: 1, 16>}, {transform_indices = @transform_3, window_bounds = array<i64: 1, 210, 16>}]} {
    %c0 = arith.constant 0 : index
    %c0_0 = arith.constant 0 : index
    %c0_1 = arith.constant 0 : index
    %0 = vector.load %arg1[%c0, %c0_0, %c0_1] : memref<1x232x4xbf16, #tpu.memory_space<vmem>>, vector<1x210x4xbf16>
    %1 = vector.shape_cast %0 : vector<1x210x4xbf16> to vector<210x4xbf16>
    %c0_2 = arith.constant 0 : index
    %c0_3 = arith.constant 0 : index
    %c0_4 = arith.constant 0 : index
    %2 = vector.load %arg2[%c0_2, %c0_3, %c0_4] : memref<4x4x512xbf16, #tpu.memory_space<vmem>>, vector<1x4x512xbf16>
    %3 = vector.shape_cast %2 : vector<1x4x512xbf16> to vector<4x512xbf16>
    %cst = arith.constant dense<0.000000e+00> : vector<210x512xf32>
    %4 = tpu.matmul %1, %3, %cst {dimension_numbers = #tpu.dot_dimension_numbers<[1], [0], [0], [1], [0, 0, 1, 1], [], []>} : vector<210x4xbf16>, vector<4x512xbf16>, vector<210x512xf32> -> vector<210x512xf32>
    %c0_5 = arith.constant 0 : index
    %c1 = arith.constant 1 : index
    %c0_6 = arith.constant 0 : index
    %5 = vector.load %arg1[%c0_5, %c1, %c0_6] : memref<1x232x4xbf16, #tpu.memory_space<vmem>>, vector<1x210x4xbf16>
    %6 = vector.shape_cast %5 : vector<1x210x4xbf16> to vector<210x4xbf16>
    %c1_7 = arith.constant 1 : index
    %c0_8 = arith.constant 0 : index
    %c0_9 = arith.constant 0 : index
    %7 = vector.load %arg2[%c1_7, %c0_8, %c0_9] : memref<4x4x512xbf16, #tpu.memory_space<vmem>>, vector<1x4x512xbf16>
    %8 = vector.shape_cast %7 : vector<1x4x512xbf16> to vector<4x512xbf16>
    %cst_10 = arith.constant dense<0.000000e+00> : vector<210x512xf32>
    %9 = tpu.matmul %6, %8, %cst_10 {dimension_numbers = #tpu.dot_dimension_numbers<[1], [0], [0], [1], [0, 0, 1, 1], [], []>} : vector<210x4xbf16>, vector<4x512xbf16>, vector<210x512xf32> -> vector<210x512xf32>
    %10 = arith.addf %4, %9 : vector<210x512xf32>
    %c0_11 = arith.constant 0 : index
    %c15 = arith.constant 15 : index
    %c0_12 = arith.constant 0 : index
    %11 = vector.load %arg1[%c0_11, %c15, %c0_12] : memref<1x232x4xbf16, #tpu.memory_space<vmem>>, vector<1x210x4xbf16>
    %12 = vector.shape_cast %11 : vector<1x210x4xbf16> to vector<210x4xbf16>
    %c2 = arith.constant 2 : index
    %c0_13 = arith.constant 0 : index
    %c0_14 = arith.constant 0 : index
    %13 = vector.load %arg2[%c2, %c0_13, %c0_14] : memref<4x4x512xbf16, #tpu.memory_space<vmem>>, vector<1x4x512xbf16>
    %14 = vector.shape_cast %13 : vector<1x4x512xbf16> to vector<4x512xbf16>
    %cst_15 = arith.constant dense<0.000000e+00> : vector<210x512xf32>
    %15 = tpu.matmul %12, %14, %cst_15 {dimension_numbers = #tpu.dot_dimension_numbers<[1], [0], [0], [1], [0, 0, 1, 1], [], []>} : vector<210x4xbf16>, vector<4x512xbf16>, vector<210x512xf32> -> vector<210x512xf32>
    %16 = arith.addf %10, %15 : vector<210x512xf32>
    %c0_16 = arith.constant 0 : index
    %c16 = arith.constant 16 : index
    %c0_17 = arith.constant 0 : index
    %17 = vector.load %arg1[%c0_16, %c16, %c0_17] : memref<1x232x4xbf16, #tpu.memory_space<vmem>>, vector<1x210x4xbf16>
    %18 = vector.shape_cast %17 : vector<1x210x4xbf16> to vector<210x4xbf16>
    %c3 = arith.constant 3 : index
    %c0_18 = arith.constant 0 : index
    %c0_19 = arith.constant 0 : index
    %19 = vector.load %arg2[%c3, %c0_18, %c0_19] : memref<4x4x512xbf16, #tpu.memory_space<vmem>>, vector<1x4x512xbf16>
    %20 = vector.shape_cast %19 : vector<1x4x512xbf16> to vector<4x512xbf16>
    %cst_20 = arith.constant dense<0.000000e+00> : vector<210x512xf32>
    %21 = tpu.matmul %18, %20, %cst_20 {dimension_numbers = #tpu.dot_dimension_numbers<[1], [0], [0], [1], [0, 0, 1, 1], [], []>} : vector<210x4xbf16>, vector<4x512xbf16>, vector<210x512xf32> -> vector<210x512xf32>
    %22 = arith.addf %16, %21 : vector<210x512xf32>
    %23 = vector.extract_strided_slice %22 {offsets = [0, 0], sizes = [210, 128], strides = [1, 1]} : vector<210x512xf32> to vector<210x128xf32>
    %24 = vector.extract_strided_slice %22 {offsets = [0, 128], sizes = [210, 128], strides = [1, 1]} : vector<210x512xf32> to vector<210x128xf32>
    %25 = arith.maximumf %23, %24 : vector<210x128xf32>
    %26 = vector.extract_strided_slice %22 {offsets = [0, 256], sizes = [210, 128], strides = [1, 1]} : vector<210x512xf32> to vector<210x128xf32>
    %27 = vector.extract_strided_slice %22 {offsets = [0, 384], sizes = [210, 128], strides = [1, 1]} : vector<210x512xf32> to vector<210x128xf32>
    %28 = arith.maximumf %26, %27 : vector<210x128xf32>
    %29 = arith.maximumf %25, %28 : vector<210x128xf32>
    %30 = vector.extract_strided_slice %29 {offsets = [0, 0], sizes = [210, 16], strides = [1, 1]} : vector<210x128xf32> to vector<210x16xf32>
    %c0_21 = arith.constant 0 : index
    %c0_22 = arith.constant 0 : index
    %31 = vector.load %arg3[%c0_21, %c0_22] : memref<1x16xf32, #tpu.memory_space<vmem>>, vector<1x16xf32>
    %32 = vector.broadcast %31 : vector<1x16xf32> to vector<210x16xf32>
    %33 = arith.addf %30, %32 : vector<210x16xf32>
    %cst_23 = arith.constant 0.000000e+00 : f32
    %34 = vector.broadcast %cst_23 : f32 to vector<210x16xf32>
    %35 = arith.maximumf %33, %34 : vector<210x16xf32>
    %36 = arith.truncf %35 : vector<210x16xf32> to vector<210x16xbf16>
    %c0_24 = arith.constant 0 : index
    %c0_25 = arith.constant 0 : index
    %c0_26 = arith.constant 0 : index
    %37 = vector.load %arg4[%c0_24, %c0_25, %c0_26] : memref<1x210x16xbf16, #tpu.memory_space<vmem>>, vector<1x210x16xbf16>
    %38 = vector.shape_cast %37 : vector<1x210x16xbf16> to vector<210x16xbf16>
    %39 = vector.shape_cast %36 : vector<210x16xbf16> to vector<1x210x16xbf16>
    tpu.vector_store %arg4[%c0_24, %c0_25, %c0_26], %39 {strides = array<i32>} : memref<1x210x16xbf16, #tpu.memory_space<vmem>>, vector<1x210x16xbf16>,
    return
  }
  func.func @transform_0(%arg0: i32) -> (i32, i32, i32) {
    %c0_i32 = arith.constant 0 : i32
    %c0_i32_0 = arith.constant 0 : i32
    %c0_i32_1 = arith.constant 0 : i32
    return %arg0, %c0_i32, %c0_i32_0 : i32, i32, i32
  }
  func.func @transform_1(%arg0: i32) -> (i32, i32, i32) {
    %c0_i32 = arith.constant 0 : i32
    %c0_i32_0 = arith.constant 0 : i32
    %c0_i32_1 = arith.constant 0 : i32
    %c0_i32_2 = arith.constant 0 : i32
    return %c0_i32, %c0_i32_0, %c0_i32_1 : i32, i32, i32
  }
  func.func @transform_2(%arg0: i32) -> (i32, i32) {
    %c0_i32 = arith.constant 0 : i32
    %c0_i32_0 = arith.constant 0 : i32
    %c0_i32_1 = arith.constant 0 : i32
    return %c0_i32, %c0_i32_0 : i32, i32
  }
  func.func @transform_3(%arg0: i32) -> (i32, i32, i32) {
    %c0_i32 = arith.constant 0 : i32
    %c0_i32_0 = arith.constant 0 : i32
    %c0_i32_1 = arith.constant 0 : i32
    return %arg0, %c0_i32, %c0_i32_0 : i32, i32, i32
  }
}

module attributes {stable_mosaic.version = 11 : i64} {
  func.func @_conv_relu_pool_kernel(%arg0: i32, %arg1: memref<1x72x64xbf16, #tpu.memory_space<vmem>>, %arg2: memref<4x64x512xbf16, #tpu.memory_space<vmem>>, %arg3: memref<1x32xf32, #tpu.memory_space<vmem>>, %arg4: memref<1x56x32xbf16, #tpu.memory_space<vmem>>) attributes {dimension_semantics = [#tpu.dimension_semantics<parallel>], iteration_bounds = array<i64: 2>, scalar_prefetch = 0 : i64, scratch_operands = 0 : i64, tpu.core_type = #tpu.core_type<tc>, window_params = [{transform_indices = @transform_0, window_bounds = array<i64: 1, 72, 64>}, {pipeline_mode = #tpu.pipeline_mode<synchronous>, transform_indices = @transform_1, window_bounds = array<i64: 4, 64, 512>}, {pipeline_mode = #tpu.pipeline_mode<synchronous>, transform_indices = @transform_2, window_bounds = array<i64: 1, 32>}, {transform_indices = @transform_3, window_bounds = array<i64: 1, 56, 32>}]} {
    %c0 = arith.constant 0 : index
    %c0_0 = arith.constant 0 : index
    %c0_1 = arith.constant 0 : index
    %0 = vector.load %arg1[%c0, %c0_0, %c0_1] : memref<1x72x64xbf16, #tpu.memory_space<vmem>>, vector<1x56x64xbf16>
    %1 = vector.shape_cast %0 : vector<1x56x64xbf16> to vector<56x64xbf16>
    %c0_2 = arith.constant 0 : index
    %c0_3 = arith.constant 0 : index
    %c0_4 = arith.constant 0 : index
    %2 = vector.load %arg2[%c0_2, %c0_3, %c0_4] : memref<4x64x512xbf16, #tpu.memory_space<vmem>>, vector<1x64x512xbf16>
    %3 = vector.shape_cast %2 : vector<1x64x512xbf16> to vector<64x512xbf16>
    %cst = arith.constant dense<0.000000e+00> : vector<56x512xf32>
    %4 = tpu.matmul %1, %3, %cst {dimension_numbers = #tpu.dot_dimension_numbers<[1], [0], [0], [1], [0, 0, 1, 1], [], []>} : vector<56x64xbf16>, vector<64x512xbf16>, vector<56x512xf32> -> vector<56x512xf32>
    %c0_5 = arith.constant 0 : index
    %c1 = arith.constant 1 : index
    %c0_6 = arith.constant 0 : index
    %5 = vector.load %arg1[%c0_5, %c1, %c0_6] : memref<1x72x64xbf16, #tpu.memory_space<vmem>>, vector<1x56x64xbf16>
    %6 = vector.shape_cast %5 : vector<1x56x64xbf16> to vector<56x64xbf16>
    %c1_7 = arith.constant 1 : index
    %c0_8 = arith.constant 0 : index
    %c0_9 = arith.constant 0 : index
    %7 = vector.load %arg2[%c1_7, %c0_8, %c0_9] : memref<4x64x512xbf16, #tpu.memory_space<vmem>>, vector<1x64x512xbf16>
    %8 = vector.shape_cast %7 : vector<1x64x512xbf16> to vector<64x512xbf16>
    %cst_10 = arith.constant dense<0.000000e+00> : vector<56x512xf32>
    %9 = tpu.matmul %6, %8, %cst_10 {dimension_numbers = #tpu.dot_dimension_numbers<[1], [0], [0], [1], [0, 0, 1, 1], [], []>} : vector<56x64xbf16>, vector<64x512xbf16>, vector<56x512xf32> -> vector<56x512xf32>
    %10 = arith.addf %4, %9 : vector<56x512xf32>
    %c0_11 = arith.constant 0 : index
    %c8 = arith.constant 8 : index
    %c0_12 = arith.constant 0 : index
    %11 = vector.load %arg1[%c0_11, %c8, %c0_12] : memref<1x72x64xbf16, #tpu.memory_space<vmem>>, vector<1x56x64xbf16>
    %12 = vector.shape_cast %11 : vector<1x56x64xbf16> to vector<56x64xbf16>
    %c2 = arith.constant 2 : index
    %c0_13 = arith.constant 0 : index
    %c0_14 = arith.constant 0 : index
    %13 = vector.load %arg2[%c2, %c0_13, %c0_14] : memref<4x64x512xbf16, #tpu.memory_space<vmem>>, vector<1x64x512xbf16>
    %14 = vector.shape_cast %13 : vector<1x64x512xbf16> to vector<64x512xbf16>
    %cst_15 = arith.constant dense<0.000000e+00> : vector<56x512xf32>
    %15 = tpu.matmul %12, %14, %cst_15 {dimension_numbers = #tpu.dot_dimension_numbers<[1], [0], [0], [1], [0, 0, 1, 1], [], []>} : vector<56x64xbf16>, vector<64x512xbf16>, vector<56x512xf32> -> vector<56x512xf32>
    %16 = arith.addf %10, %15 : vector<56x512xf32>
    %c0_16 = arith.constant 0 : index
    %c9 = arith.constant 9 : index
    %c0_17 = arith.constant 0 : index
    %17 = vector.load %arg1[%c0_16, %c9, %c0_17] : memref<1x72x64xbf16, #tpu.memory_space<vmem>>, vector<1x56x64xbf16>
    %18 = vector.shape_cast %17 : vector<1x56x64xbf16> to vector<56x64xbf16>
    %c3 = arith.constant 3 : index
    %c0_18 = arith.constant 0 : index
    %c0_19 = arith.constant 0 : index
    %19 = vector.load %arg2[%c3, %c0_18, %c0_19] : memref<4x64x512xbf16, #tpu.memory_space<vmem>>, vector<1x64x512xbf16>
    %20 = vector.shape_cast %19 : vector<1x64x512xbf16> to vector<64x512xbf16>
    %cst_20 = arith.constant dense<0.000000e+00> : vector<56x512xf32>
    %21 = tpu.matmul %18, %20, %cst_20 {dimension_numbers = #tpu.dot_dimension_numbers<[1], [0], [0], [1], [0, 0, 1, 1], [], []>} : vector<56x64xbf16>, vector<64x512xbf16>, vector<56x512xf32> -> vector<56x512xf32>
    %22 = arith.addf %16, %21 : vector<56x512xf32>
    %23 = vector.extract_strided_slice %22 {offsets = [0, 0], sizes = [56, 128], strides = [1, 1]} : vector<56x512xf32> to vector<56x128xf32>
    %24 = vector.extract_strided_slice %22 {offsets = [0, 128], sizes = [56, 128], strides = [1, 1]} : vector<56x512xf32> to vector<56x128xf32>
    %25 = arith.maximumf %23, %24 : vector<56x128xf32>
    %26 = vector.extract_strided_slice %22 {offsets = [0, 256], sizes = [56, 128], strides = [1, 1]} : vector<56x512xf32> to vector<56x128xf32>
    %27 = vector.extract_strided_slice %22 {offsets = [0, 384], sizes = [56, 128], strides = [1, 1]} : vector<56x512xf32> to vector<56x128xf32>
    %28 = arith.maximumf %26, %27 : vector<56x128xf32>
    %29 = arith.maximumf %25, %28 : vector<56x128xf32>
    %30 = vector.extract_strided_slice %29 {offsets = [0, 0], sizes = [56, 32], strides = [1, 1]} : vector<56x128xf32> to vector<56x32xf32>
    %c0_21 = arith.constant 0 : index
    %c0_22 = arith.constant 0 : index
    %31 = vector.load %arg3[%c0_21, %c0_22] : memref<1x32xf32, #tpu.memory_space<vmem>>, vector<1x32xf32>
    %32 = vector.broadcast %31 : vector<1x32xf32> to vector<56x32xf32>
    %33 = arith.addf %30, %32 : vector<56x32xf32>
    %cst_23 = arith.constant 0.000000e+00 : f32
    %34 = vector.broadcast %cst_23 : f32 to vector<56x32xf32>
    %35 = arith.maximumf %33, %34 : vector<56x32xf32>
    %36 = arith.truncf %35 : vector<56x32xf32> to vector<56x32xbf16>
    %c0_24 = arith.constant 0 : index
    %c0_25 = arith.constant 0 : index
    %c0_26 = arith.constant 0 : index
    %37 = vector.load %arg4[%c0_24, %c0_25, %c0_26] : memref<1x56x32xbf16, #tpu.memory_space<vmem>>, vector<1x56x32xbf16>
    %38 = vector.shape_cast %37 : vector<1x56x32xbf16> to vector<56x32xbf16>
    %39 = vector.shape_cast %36 : vector<56x32xbf16> to vector<1x56x32xbf16>
    tpu.vector_store %arg4[%c0_24, %c0_25, %c0_26], %39 {strides = array<i32>} : memref<1x56x32xbf16, #tpu.memory_space<vmem>>, vector<1x56x32xbf16>,
    return
  }
  func.func @transform_0(%arg0: i32) -> (i32, i32, i32) {
    %c0_i32 = arith.constant 0 : i32
    %c0_i32_0 = arith.constant 0 : i32
    %c0_i32_1 = arith.constant 0 : i32
    return %arg0, %c0_i32, %c0_i32_0 : i32, i32, i32
  }
  func.func @transform_1(%arg0: i32) -> (i32, i32, i32) {
    %c0_i32 = arith.constant 0 : i32
    %c0_i32_0 = arith.constant 0 : i32
    %c0_i32_1 = arith.constant 0 : i32
    %c0_i32_2 = arith.constant 0 : i32
    return %c0_i32, %c0_i32_0, %c0_i32_1 : i32, i32, i32
  }
  func.func @transform_2(%arg0: i32) -> (i32, i32) {
    %c0_i32 = arith.constant 0 : i32
    %c0_i32_0 = arith.constant 0 : i32
    %c0_i32_1 = arith.constant 0 : i32
    return %c0_i32, %c0_i32_0 : i32, i32
  }
  func.func @transform_3(%arg0: i32) -> (i32, i32, i32) {
    %c0_i32 = arith.constant 0 : i32
    %c0_i32_0 = arith.constant 0 : i32
    %c0_i32_1 = arith.constant 0 : i32
    return %arg0, %c0_i32, %c0_i32_0 : i32, i32, i32
  }
}

module attributes {stable_mosaic.version = 11 : i64} {
  func.func @_mlp_kernel(%arg0: i32, %arg1: memref<2x1568xbf16, #tpu.memory_space<vmem>>, %arg2: memref<1568x128xbf16, #tpu.memory_space<vmem>>, %arg3: memref<1x128xf32, #tpu.memory_space<vmem>>, %arg4: memref<128x10xbf16, #tpu.memory_space<vmem>>, %arg5: memref<1x10xf32, #tpu.memory_space<vmem>>, %arg6: memref<2x10xf32, #tpu.memory_space<vmem>>) attributes {dimension_semantics = [#tpu.dimension_semantics<parallel>], iteration_bounds = array<i64: 1>, scalar_prefetch = 0 : i64, scratch_operands = 0 : i64, tpu.core_type = #tpu.core_type<tc>, window_params = [{transform_indices = @transform_0, window_bounds = array<i64: 2, 1568>}, {pipeline_mode = #tpu.pipeline_mode<synchronous>, transform_indices = @transform_1, window_bounds = array<i64: 1568, 128>}, {pipeline_mode = #tpu.pipeline_mode<synchronous>, transform_indices = @transform_2, window_bounds = array<i64: 1, 128>}, {pipeline_mode = #tpu.pipeline_mode<synchronous>, transform_indices = @transform_3, window_bounds = array<i64: 128, 10>}, {pipeline_mode = #tpu.pipeline_mode<synchronous>, transform_indices = @transform_4, window_bounds = array<i64: 1, 10>}, {transform_indices = @transform_5, window_bounds = array<i64: 2, 10>}]} {
    %c0 = arith.constant 0 : index
    %c0_0 = arith.constant 0 : index
    %0 = vector.load %arg1[%c0, %c0_0] : memref<2x1568xbf16, #tpu.memory_space<vmem>>, vector<2x1568xbf16>
    %c0_1 = arith.constant 0 : index
    %c0_2 = arith.constant 0 : index
    %1 = vector.load %arg2[%c0_1, %c0_2] : memref<1568x128xbf16, #tpu.memory_space<vmem>>, vector<1568x128xbf16>
    %cst = arith.constant dense<0.000000e+00> : vector<2x128xf32>
    %2 = tpu.matmul %0, %1, %cst {dimension_numbers = #tpu.dot_dimension_numbers<[1], [0], [0], [1], [0, 0, 1, 1], [], []>} : vector<2x1568xbf16>, vector<1568x128xbf16>, vector<2x128xf32> -> vector<2x128xf32>
    %c0_3 = arith.constant 0 : index
    %c0_4 = arith.constant 0 : index
    %3 = vector.load %arg3[%c0_3, %c0_4] : memref<1x128xf32, #tpu.memory_space<vmem>>, vector<1x128xf32>
    %4 = vector.broadcast %3 : vector<1x128xf32> to vector<2x128xf32>
    %5 = arith.addf %2, %4 : vector<2x128xf32>
    %cst_5 = arith.constant 0.000000e+00 : f32
    %6 = vector.broadcast %cst_5 : f32 to vector<2x128xf32>
    %7 = arith.maximumf %5, %6 : vector<2x128xf32>
    %8 = arith.truncf %7 : vector<2x128xf32> to vector<2x128xbf16>
    %c0_6 = arith.constant 0 : index
    %c0_7 = arith.constant 0 : index
    %9 = vector.load %arg4[%c0_6, %c0_7] : memref<128x10xbf16, #tpu.memory_space<vmem>>, vector<128x10xbf16>
    %cst_8 = arith.constant dense<0.000000e+00> : vector<2x10xf32>
    %10 = tpu.matmul %8, %9, %cst_8 {dimension_numbers = #tpu.dot_dimension_numbers<[1], [0], [0], [1], [0, 0, 1, 1], [], []>} : vector<2x128xbf16>, vector<128x10xbf16>, vector<2x10xf32> -> vector<2x10xf32>
    %c0_9 = arith.constant 0 : index
    %c0_10 = arith.constant 0 : index
    %11 = vector.load %arg5[%c0_9, %c0_10] : memref<1x10xf32, #tpu.memory_space<vmem>>, vector<1x10xf32>
    %12 = vector.broadcast %11 : vector<1x10xf32> to vector<2x10xf32>
    %13 = arith.addf %10, %12 : vector<2x10xf32>
    %c0_11 = arith.constant 0 : index
    %c0_12 = arith.constant 0 : index
    %14 = vector.load %arg6[%c0_11, %c0_12] : memref<2x10xf32, #tpu.memory_space<vmem>>, vector<2x10xf32>
    tpu.vector_store %arg6[%c0_11, %c0_12], %13 {strides = array<i32>} : memref<2x10xf32, #tpu.memory_space<vmem>>, vector<2x10xf32>,
    return
  }
  func.func @transform_0(%arg0: i32) -> (i32, i32) {
    %c0_i32 = arith.constant 0 : i32
    %c0_i32_0 = arith.constant 0 : i32
    return %arg0, %c0_i32 : i32, i32
  }
  func.func @transform_1(%arg0: i32) -> (i32, i32) {
    %c0_i32 = arith.constant 0 : i32
    %c0_i32_0 = arith.constant 0 : i32
    %c0_i32_1 = arith.constant 0 : i32
    return %c0_i32, %c0_i32_0 : i32, i32
  }
  func.func @transform_2(%arg0: i32) -> (i32, i32) {
    %c0_i32 = arith.constant 0 : i32
    %c0_i32_0 = arith.constant 0 : i32
    %c0_i32_1 = arith.constant 0 : i32
    return %c0_i32, %c0_i32_0 : i32, i32
  }
  func.func @transform_3(%arg0: i32) -> (i32, i32) {
    %c0_i32 = arith.constant 0 : i32
    %c0_i32_0 = arith.constant 0 : i32
    %c0_i32_1 = arith.constant 0 : i32
    return %c0_i32, %c0_i32_0 : i32, i32
  }
  func.func @transform_4(%arg0: i32) -> (i32, i32) {
    %c0_i32 = arith.constant 0 : i32
    %c0_i32_0 = arith.constant 0 : i32
    %c0_i32_1 = arith.constant 0 : i32
    return %c0_i32, %c0_i32_0 : i32, i32
  }
  func.func @transform_5(%arg0: i32) -> (i32, i32) {
    %c0_i32 = arith.constant 0 : i32
    %c0_i32_0 = arith.constant 0 : i32
    return %arg0, %c0_i32 : i32, i32
  }
}

</mosaic_0001>

<llo_original>
// kernel: simple_cnn_forward.3
$region0: #{simple_cnn_forward.3}
  #allocation0 [shape = 'u32[]', space=smem, size = 0x4, offset = 0x4, fixed_abs, tag = 'smem constant byte address 0x4 - core index']
  #allocation1 [shape = 'u32[144,128]{1,0:T(1,128)}', space=vmem, size = 0x12000, scoped, tag = 'internal scratch']
  %s0 = inlined_call_operand.vmem [shape: bf16[2,232,4], index: 0, kind: input, shape index: {}]
  %s1 = inlined_call_operand.vmem [shape: bf16[4,4,512], index: 1, kind: input, shape index: {}]
  %s2 = inlined_call_operand.vmem [shape: f32[1,16], index: 2, kind: input, shape index: {}]
  %s3 = inlined_call_operand.vmem [shape: bf16[2,210,16], index: 3, kind: output, shape index: {}]
  %s4 = sld [smem:[#allocation0]]
  $region45: #{simple_cnn_forward.3} parent=0
    _
  %s6 = ssub.s32 1, %s4
  %s7 = scalar_select 0, %s6, %s4
  loop: start=0, step=1, limit=4
  $region2: #{simple_cnn_forward.3} parent=0 // loop_pre_header
    _
  $region3: #{simple_cnn_forward.3} parent=0 // loop_header
    %s9 = sphi 0, %s13
    %p10 = scmp.ge.s32.totalorder %s9, 4
    %s19 = sphi 0, %s21
    %s22 = sphi 0, %s19
    %s23 = sphi 0, %s22
    %s39 = sphi 0, %s23
    %s43 = sphi 0, %s43
    %s45 = sphi 0, %s43
    %s46 = sphi 0, %s45
    %s60 = sphi 0, %s46
    %s64 = sphi 0, %s64
    %s66 = sphi 0, %s64
    %s67 = sphi 0, %s66
    %s81 = sphi 0, %s67
    %s87 = sphi 0, %s89
    %s90 = sphi 0, %s87
    %s91 = sphi 0, %s90
    %s107 = sphi 0, %s91
  $region4: #{simple_cnn_forward.3} parent=0 // loop_header_branch
    %12 = sbr.rel (%p10) target = $region8
  $region5: #{simple_cnn_forward.3} parent=0 // loop_body
    %s14 = ssub.s32 %s9, 1
    %s15 = ssub.s32 %s9, 2
    %s16 = sadd.s32 %s9, 1
    %s17 = ssub.s32 %s9, %s16
    %p18 = scmp.eq.s32.totalorder %s17, 0
    %s20 = sadd.s32 %s19, 1
    %s21 = scalar_select %p18, %s19, %s20
    %p24 = pneg %p18
    %p25 = scmp.eq.s32.totalorder %s9, 1
    %p26 = por %p24, %p25
    %p27 = scmp.ne.s32.totalorder %s19, %s22
    %p28 = scmp.eq.s32.totalorder %s9, 0
    %p29 = por %p27, %p28
    %p30 = scmp.ne.s32.totalorder %s19, %s22
    %p31 = scmp.eq.s32.totalorder %s14, 1
    %p32 = por %p30, %p31
    %p33 = scmp.ne.s32.totalorder %s22, %s23
    %p34 = scmp.eq.s32.totalorder %s14, 0
    %p35 = por %p33, %p34
    %p36 = scmp.ne.s32.totalorder %s22, %s23
    %p37 = scmp.eq.s32.totalorder %s15, 1
    %p38 = por %p36, %p37
    %p40 = scmp.ne.s32.totalorder %s23, %s39
    %p41 = scmp.eq.s32.totalorder %s15, 0
    %p42 = por %p40, %p41
    %s44 = sadd.s32 %s43, 1
    %p47 = scmp.eq.s32.totalorder %s9, 1
    %p48 = scmp.ne.s32.totalorder %s43, %s45
    %p49 = scmp.eq.s32.totalorder %s9, 0
    %p50 = por %p48, %p49
    %p51 = scmp.ne.s32.totalorder %s43, %s45
    %p52 = scmp.eq.s32.totalorder %s14, 1
    %p53 = por %p51, %p52
    %p54 = scmp.ne.s32.totalorder %s45, %s46
    %p55 = scmp.eq.s32.totalorder %s14, 0
    %p56 = por %p54, %p55
    %p57 = scmp.ne.s32.totalorder %s45, %s46
    %p58 = scmp.eq.s32.totalorder %s15, 1
    %p59 = por %p57, %p58
    %p61 = scmp.ne.s32.totalorder %s46, %s60
    %p62 = scmp.eq.s32.totalorder %s15, 0
    %p63 = por %p61, %p62
    %s65 = sadd.s32 %s64, 1
    %p68 = scmp.eq.s32.totalorder %s9, 1
    %p69 = scmp.ne.s32.totalorder %s64, %s66
    %p70 = scmp.eq.s32.totalorder %s9, 0
    %p71 = por %p69, %p70
    %p72 = scmp.ne.s32.totalorder %s64, %s66
    %p73 = scmp.eq.s32.totalorder %s14, 1
    %p74 = por %p72, %p73
    %p75 = scmp.ne.s32.totalorder %s66, %s67
    %p76 = scmp.eq.s32.totalorder %s14, 0
    %p77 = por %p75, %p76
    %p78 = scmp.ne.s32.totalorder %s66, %s67
    %p79 = scmp.eq.s32.totalorder %s15, 1
    %p80 = por %p78, %p79
    %p82 = scmp.ne.s32.totalorder %s67, %s81
    %p83 = scmp.eq.s32.totalorder %s15, 0
    %p84 = por %p82, %p83
    %s85 = ssub.s32 %s9, %s16
    %p86 = scmp.eq.s32.totalorder %s85, 0
    %s88 = sadd.s32 %s87, 1
    %s89 = scalar_select %p86, %s87, %s88
    %p92 = pneg %p86
    %p93 = scmp.eq.s32.totalorder %s9, 1
    %p94 = por %p92, %p93
    %p95 = scmp.ne.s32.totalorder %s87, %s90
    %p96 = scmp.eq.s32.totalorder %s9, 0
    %p97 = por %p95, %p96
    %p98 = scmp.ne.s32.totalorder %s87, %s90
    %p99 = scmp.eq.s32.totalorder %s14, 1
    %p100 = por %p98, %p99
    %p101 = scmp.ne.s32.totalorder %s90, %s91
    %p102 = scmp.eq.s32.totalorder %s14, 0
    %p103 = por %p101, %p102
    %p104 = scmp.ne.s32.totalorder %s90, %s91
    %p105 = scmp.eq.s32.totalorder %s15, 1
    %p106 = por %p104, %p105
    %p108 = scmp.ne.s32.totalorder %s91, %s107
    %p109 = scmp.eq.s32.totalorder %s15, 0
    %p110 = por %p108, %p109
    %p111 = scmp.le.s32.totalorder 1, %s9
    %p112 = scmp.lt.s32.totalorder %s9, 3
    %p113 = pnand %p111, %p112
    %p114 = pneg %p113
    // Predicated region
    $region9: #{simple_cnn_forward.3} parent=5 // pred_check
      _
    $region10: #{simple_cnn_forward.3} parent=5 // pred_check_branch
      %116 = sbr.rel (%p113) target = $region12
    $region11: #{simple_cnn_forward.3} parent=5 // pred_region
      %s117 = ssub.s32 %s9, 1
      // Predicated region
      $region13: #{simple_cnn_forward.3} parent=11 // pred_check
        %p118 = pneg %p56
      $region14: #{simple_cnn_forward.3} parent=11 // pred_check_branch
        %120 = sbr.rel (%p118) target = $region16
      $region15: #{simple_cnn_forward.3} parent=11 // pred_region
        _
      $region16: #{simple_cnn_forward.3} parent=11 // pred_fallthru
        _
      // Predicated region
      $region17: #{simple_cnn_forward.3} parent=11 // pred_check
        %p121 = pneg %p77
      $region18: #{simple_cnn_forward.3} parent=11 // pred_check_branch
        %123 = sbr.rel (%p121) target = $region20
      $region19: #{simple_cnn_forward.3} parent=11 // pred_region
        _
      $region20: #{simple_cnn_forward.3} parent=11 // pred_fallthru
        _
    $region12: #{simple_cnn_forward.3} parent=5 // pred_fallthru
      _
    %p124 = scmp.lt.s32.totalorder %s9, 2
    // Predicated region
    $region21: #{simple_cnn_forward.3} parent=5 // pred_check
      %p125 = pneg %p124
    $region22: #{simple_cnn_forward.3} parent=5 // pred_check_branch
      %127 = sbr.rel (%p125) target = $region24
    $region23: #{simple_cnn_forward.3} parent=5 // pred_region
      // Predicated region
      $region25: #{simple_cnn_forward.3} parent=23 // pred_check
        %p128 = pneg %p29
      $region26: #{simple_cnn_forward.3} parent=23 // pred_check_branch
        %130 = sbr.rel (%p128) target = $region28
      $region27: #{simple_cnn_forward.3} parent=23 // pred_region
        %p131 = scmp.lt.s32.totalorder %s9, 1
        %s132 = scalar_select %p131, %s9, 1
        %s133 = smul.addr %s132, 29
        %s134 = smul.addr %s133, 4
        %s135 = scalar_lea.vmem %s0, %s134
      $region28: #{simple_cnn_forward.3} parent=23 // pred_fallthru
        _
    $region24: #{simple_cnn_forward.3} parent=5 // pred_fallthru
      _
    %p136 = scmp.le.s32.totalorder 1, %s9
    %p137 = scmp.lt.s32.totalorder %s9, 3
    %p138 = pnand %p136, %p137
    %p139 = pneg %p138
    // Predicated region
    $region29: #{simple_cnn_forward.3} parent=5 // pred_check
      _
    $region30: #{simple_cnn_forward.3} parent=5 // pred_check_branch
      %141 = sbr.rel (%p138) target = $region32
    $region31: #{simple_cnn_forward.3} parent=5 // pred_region
      %s142 = ssub.s32 %s9, 1
      %p143 = scmp.lt.s32.totalorder %s14, 1
      %s144 = scalar_select %p143, %s14, 1
      %s145 = smul.addr %s144, 29
      %s146 = smul.addr %s145, 4
      %s147 = scalar_lea.vmem %s0, %s146
      %p148 = pneg %p35
      %p149 = pneg %p32
      %p150 = pneg %p56
      %p151 = pneg %p53
      %p152 = pneg %p77
      %p153 = pneg %p74
      %p154 = pneg %p103
      %p155 = pneg %p100
      %p156 = scmp.lt.s32.totalorder %s14, 1
      %s157 = scalar_select %p156, %s14, 1
      %s158 = smul.addr %s157, 27
      %s159 = smul.addr %s158, 4
      %s160 = scalar_lea.vmem %s3, %s159
      %p161 = scmp.lt.s32.totalorder %s14, 1
      %s162 = scalar_select %p161, %s14, 1
      %s163 = smul.addr %s162, 29
      %s164 = smul.addr %s163, 4
      %s165 = scalar_lea.vmem %s0, %s164
      %p166 = scmp.lt.s32.totalorder %s14, 1
      %s167 = scalar_select %p166, %s14, 1
      %s168 = smul.addr %s167, 27
      %s169 = smul.addr %s168, 4
      %s170 = scalar_lea.vmem %s3, %s169
      %v172 = vld [vmem:[%s165] sm:$0xf]
      %v173 = vld [vmem:[%s165 + $0x4] sm:$0xf]
      %v174 = vld [vmem:[%s165 + $0x8] sm:$0xf]
      %v175 = vld [vmem:[%s165 + $0xc] sm:$0xf]
      %v176 = vld [vmem:[%s165 + $0x10] sm:$0xf]
      %v177 = vld [vmem:[%s165 + $0x14] sm:$0xf]
      %v178 = vld [vmem:[%s165 + $0x18] sm:$0xf]
      %v179 = vld [vmem:[%s165 + $0x1c] sm:$0xf]
      %v180 = vld [vmem:[%s165 + $0x20] sm:$0xf]
      %v181 = vld [vmem:[%s165 + $0x24] sm:$0xf]
      %v182 = vld [vmem:[%s165 + $0x28] sm:$0xf]
      %v183 = vld [vmem:[%s165 + $0x2c] sm:$0xf]
      %v184 = vld [vmem:[%s165 + $0x30] sm:$0xf]
      %v185 = vld [vmem:[%s165 + $0x34] sm:$0xf]
      %v186 = vld [vmem:[%s165 + $0x38] sm:$0xf]
      %v187 = vld [vmem:[%s165 + $0x3c] sm:$0xf]
      %v188 = vld [vmem:[%s165 + $0x40] sm:$0xf]
      %v189 = vld [vmem:[%s165 + $0x44] sm:$0xf]
      %v190 = vld [vmem:[%s165 + $0x48] sm:$0xf]
      %v191 = vld [vmem:[%s165 + $0x4c] sm:$0xf]
      %v192 = vld [vmem:[%s165 + $0x50] sm:$0xf]
      %v193 = vld [vmem:[%s165 + $0x54] sm:$0xf]
      %v194 = vld [vmem:[%s165 + $0x58] sm:$0xf]
      %v195 = vld [vmem:[%s165 + $0x5c] sm:$0xf]
      %v196 = vld [vmem:[%s165 + $0x60] sm:$0xf]
      %v197 = vld [vmem:[%s165 + $0x64] sm:$0xf]
      %v198 = vld [vmem:[%s165 + $0x68] sm:$0x1]
      %v199 = vld [vmem:[%s1] sm:$0xff]
      %v200 = vld [vmem:[%s165 + $0x68] sm:$0x3]
      %s201 = scalar_lea.vmem %s1, 8
      %v202 = vld [vmem:[%s201] sm:$0xff]
      %v230 = vunpack.c.l.b16 %v172
      %v231 = vunpack.c.l.b16 %v173
      %v232 = vunpack.c.l.b16 %v174
      %v233 = vunpack.c.l.b16 %v175
      %v234 = vunpack.c.l.b16 %v176
      %v235 = vunpack.c.l.b16 %v177
      %v236 = vunpack.c.l.b16 %v178
      %v237 = vunpack.c.l.b16 %v179
      %v238 = vunpack.c.l.b16 %v180
      %v239 = vunpack.c.l.b16 %v181
      %v240 = vunpack.c.l.b16 %v182
      %v241 = vunpack.c.l.b16 %v183
      %v242 = vunpack.c.l.b16 %v184
      %v243 = vunpack.c.l.b16 %v185
      %v244 = vunpack.c.l.b16 %v186
      %v245 = vunpack.c.l.b16 %v187
      %v246 = vunpack.c.l.b16 %v188
      %v247 = vunpack.c.l.b16 %v189
      %v248 = vunpack.c.l.b16 %v190
      %v249 = vunpack.c.l.b16 %v191
      %v250 = vunpack.c.l.b16 %v192
      %v251 = vunpack.c.l.b16 %v193
      %v252 = vunpack.c.l.b16 %v194
      %v253 = vunpack.c.l.b16 %v195
      %v254 = vunpack.c.l.b16 %v196
      %v255 = vunpack.c.l.b16 %v197
      %v256 = vunpack.c.l.b16 %v200
      %v257 = vpack.c.b16 %v231, %v230
      %v258 = vpack.c.b16 %v233, %v232
      %v259 = vpack.c.b16 %v235, %v234
      %v260 = vpack.c.b16 %v237, %v236
      %v261 = vpack.c.b16 %v239, %v238
      %v262 = vpack.c.b16 %v241, %v240
      %v263 = vpack.c.b16 %v243, %v242
      %v264 = vpack.c.b16 %v245, %v244
      %v265 = vpack.c.b16 %v247, %v246
      %v266 = vpack.c.b16 %v249, %v248
      %v267 = vpack.c.b16 %v251, %v250
      %v268 = vpack.c.b16 %v253, %v252
      %v269 = vpack.c.b16 %v255, %v254
      %v270 = vpack.c.b16 %v256, %v256
      %vm271 = vsmask.f32 7424
      %v273 = vshrl.u32 %v257, 16
      %v275 = vshll.u32 %v257, 16
      %v277 = vrot.slane %v275, 1
      %v278 = vor.u32 %v273, %v277
      %v280 = vshll.u32 %v258, 16
      %v282 = vrot.slane %v280, 1
      %v283 = vsel %vm271, %v278, %v282
      %v284 = vshrl.u32 %v258, 16
      %v286 = vor.u32 %v284, %v282
      %v288 = vshll.u32 %v259, 16
      %v290 = vrot.slane %v288, 1
      %v291 = vsel %vm271, %v286, %v290
      %v292 = vshrl.u32 %v259, 16
      %v294 = vor.u32 %v292, %v290
      %v296 = vshll.u32 %v260, 16
      %v298 = vrot.slane %v296, 1
      %v299 = vsel %vm271, %v294, %v298
      %v300 = vshrl.u32 %v260, 16
      %v302 = vor.u32 %v300, %v298
      %v304 = vshll.u32 %v261, 16
      %v306 = vrot.slane %v304, 1
      %v307 = vsel %vm271, %v302, %v306
      %v308 = vshrl.u32 %v261, 16
      %v310 = vor.u32 %v308, %v306
      %v312 = vshll.u32 %v262, 16
      %v314 = vrot.slane %v312, 1
      %v315 = vsel %vm271, %v310, %v314
      %v316 = vshrl.u32 %v262, 16
      %v318 = vor.u32 %v316, %v314
      %v320 = vshll.u32 %v263, 16
      %v322 = vrot.slane %v320, 1
      %v323 = vsel %vm271, %v318, %v322
      %v324 = vshrl.u32 %v263, 16
      %v326 = vor.u32 %v324, %v322
      %v328 = vshll.u32 %v264, 16
      %v330 = vrot.slane %v328, 1
      %v331 = vsel %vm271, %v326, %v330
      %v332 = vshrl.u32 %v264, 16
      %v334 = vor.u32 %v332, %v330
      %v336 = vshll.u32 %v265, 16
      %v338 = vrot.slane %v336, 1
      %v339 = vsel %vm271, %v334, %v338
      %v340 = vshrl.u32 %v265, 16
      %v342 = vor.u32 %v340, %v338
      %v344 = vshll.u32 %v266, 16
      %v346 = vrot.slane %v344, 1
      %v347 = vsel %vm271, %v342, %v346
      %v348 = vshrl.u32 %v266, 16
      %v350 = vor.u32 %v348, %v346
      %v352 = vshll.u32 %v267, 16
      %v354 = vrot.slane %v352, 1
      %v355 = vsel %vm271, %v350, %v354
      %v356 = vshrl.u32 %v267, 16
      %v358 = vor.u32 %v356, %v354
      %v360 = vshll.u32 %v268, 16
      %v362 = vrot.slane %v360, 1
      %v363 = vsel %vm271, %v358, %v362
      %v364 = vshrl.u32 %v268, 16
      %v366 = vor.u32 %v364, %v362
      %v368 = vshll.u32 %v269, 16
      %v370 = vrot.slane %v368, 1
      %v371 = vsel %vm271, %v366, %v370
      %v372 = vshrl.u32 %v269, 16
      %v374 = vor.u32 %v372, %v370
      %v376 = vshll.u32 %v270, 16
      %v378 = vrot.slane %v376, 1
      %v379 = vsel %vm271, %v374, %v378
      %v380 = vshrl.u32 %v270, 16
      %v382 = vor.u32 %v380, %v378
      %v384 = vcombine.high %v202, %v202
      %v386 = vunpack.c.l.s4 1983009808
      %v387 = vunpack.c.0.s8 %v386
      %v388 = vlaneseq
      %v389 = vshrl.u32 %v388, 7
      %v390 = vsub.s32 %v387, %v389
      %v391 = vrot.slane %v202, %v390
      %v393 = vunpack.c.l.s4 1983009808
      %v394 = vunpack.c.0.s8 %v393
      %v395 = vlaneseq
      %v396 = vshrl.u32 %v395, 7
      %v397 = vsub.s32 %v394, %v396
      %v398 = vrot.slane %v384, %v397
      %v399 = vcombine.high %v391, %v391
      %v400 = vcombine.high %v398, %v398
      %vm401 = vcmask 31744
      %v403 = vsel %vm401, %v283, 0
      %v406 = vsel %vm401, %v291, 0
      %v409 = vsel %vm401, %v299, 0
      %v412 = vsel %vm401, %v307, 0
      %v415 = vsel %vm401, %v315, 0
      %v418 = vsel %vm401, %v323, 0
      %v421 = vsel %vm401, %v331, 0
      %v424 = vsel %vm401, %v339, 0
      %v427 = vsel %vm401, %v347, 0
      %v430 = vsel %vm401, %v355, 0
      %v433 = vsel %vm401, %v363, 0
      %v436 = vsel %vm401, %v371, 0
      %v439 = vsel %vm401, %v379, 0
      %v442 = vsel %vm401, %v382, 0
      %vm444 = vcmask 1041408
      %v446 = vsel %vm444, %v391, 0
      %v449 = vsel %vm444, %v399, 0
      %v452 = vsel %vm444, %v398, 0
      %v455 = vsel %vm444, %v400, 0
      %457 = vmatprep.subr.bf16.mxu0 %v449
      %458 = vmatpush1.bf16.msra.mxu0 %v446
      %459 = vmatprep.subr.bf16.mxu0 0
      %460 = vmatpush1.bf16.msra.mxu0 0
      %461 = vmatprep.subr.bf16.mxu0 0
      %462 = vmatpush1.bf16.msra.mxu0 0
      %463 = vmatprep.subr.bf16.mxu0 0
      %464 = vmatpush1.bf16.msra.mxu0 0
      %465 = vmatprep.subr.bf16.mxu0 0
      %466 = vmatpush1.bf16.msra.mxu0 0
      %467 = vmatprep.subr.bf16.mxu0 0
      %468 = vmatpush1.bf16.msra.mxu0 0
      %469 = vmatprep.subr.bf16.mxu0 0
      %470 = vmatpush1.bf16.msra.mxu0 0
      %471 = vmatprep.subr.bf16.mxu0 0
      %472 = vmatpush1.bf16.msra.mxu0 0
      %473 = vmatprep.subr.bf16.mxu0 0
      %474 = vmatpush1.bf16.msra.mxu0 0
      %475 = vmatprep.subr.bf16.mxu0 0
      %476 = vmatpush1.bf16.msra.mxu0 0
      %477 = vmatprep.subr.bf16.mxu0 0
      %478 = vmatpush1.bf16.msra.mxu0 0
      %479 = vmatprep.subr.bf16.mxu0 0
      %480 = vmatpush1.bf16.msra.mxu0 0
      %481 = vmatprep.subr.bf16.mxu0 0
      %482 = vmatpush1.bf16.msra.mxu0 0
      %483 = vmatprep.subr.bf16.mxu0 0
      %484 = vmatpush1.bf16.msra.mxu0 0
      %485 = vmatprep.subr.bf16.mxu0 0
      %486 = vmatpush1.bf16.msra.mxu0 0
      %487 = vmatprep.subr.bf16.mxu0 0
      %488 = vmatpush1.bf16.msra.mxu0 0
      %489 = vmatprep.mubr.bf16.mxu0 0
      %490 = vmatmul.mubr.bf16.gmra.mrb[0].mxu0 %v403
      %v491 = vpop.f32.mrb[0].mxu0
      %v492 = vadd.f32 0.0, %v491
      %v493 = vpop.f32.mrb[0].mxu0
      %v494 = vadd.f32 0.0, %v493
      %v495 = vpop.f32.mrb[0].mxu0
      %v496 = vadd.f32 0.0, %v495
      %v497 = vpop.f32.mrb[0].mxu0
      %v498 = vadd.f32 0.0, %v497
      %499 = vmatprep.mubr.bf16.mxu0 0
      %500 = vmatmul.mubr.bf16.gmra.mrb[0].mxu0 %v406
      %v501 = vpop.f32.mrb[0].mxu0
      %v502 = vadd.f32 0.0, %v501
      %v503 = vpop.f32.mrb[0].mxu0
      %v504 = vadd.f32 0.0, %v503
      %v505 = vpop.f32.mrb[0].mxu0
      %v506 = vadd.f32 0.0, %v505
      %v507 = vpop.f32.mrb[0].mxu0
      %v508 = vadd.f32 0.0, %v507
      %509 = vmatprep.mubr.bf16.mxu0 0
      %510 = vmatmul.mubr.bf16.gmra.mrb[0].mxu0 %v409
      %v511 = vpop.f32.mrb[0].mxu0
      %v512 = vadd.f32 0.0, %v511
      %v513 = vpop.f32.mrb[0].mxu0
      %v514 = vadd.f32 0.0, %v513
      %v515 = vpop.f32.mrb[0].mxu0
      %v516 = vadd.f32 0.0, %v515
      %v517 = vpop.f32.mrb[0].mxu0
      %v518 = vadd.f32 0.0, %v517
      %519 = vmatprep.mubr.bf16.mxu0 0
      %520 = vmatmul.mubr.bf16.gmra.mrb[0].mxu0 %v412
      %v521 = vpop.f32.mrb[0].mxu0
      %v522 = vadd.f32 0.0, %v521
      %v523 = vpop.f32.mrb[0].mxu0
      %v524 = vadd.f32 0.0, %v523
      %v525 = vpop.f32.mrb[0].mxu0
      %v526 = vadd.f32 0.0, %v525
      %v527 = vpop.f32.mrb[0].mxu0
      %v528 = vadd.f32 0.0, %v527
      %529 = vmatprep.mubr.bf16.mxu0 0
      %530 = vmatmul.mubr.bf16.gmra.mrb[0].mxu0 %v415
      %v531 = vpop.f32.mrb[0].mxu0
      %v532 = vadd.f32 0.0, %v531
      %v533 = vpop.f32.mrb[0].mxu0
      %v534 = vadd.f32 0.0, %v533
      %v535 = vpop.f32.mrb[0].mxu0
      %v536 = vadd.f32 0.0, %v535
      %v537 = vpop.f32.mrb[0].mxu0
      %v538 = vadd.f32 0.0, %v537
      %539 = vmatprep.mubr.bf16.mxu0 0
      %540 = vmatmul.mubr.bf16.gmra.mrb[0].mxu0 %v418
      %v541 = vpop.f32.mrb[0].mxu0
      %v542 = vadd.f32 0.0, %v541
      %v543 = vpop.f32.mrb[0].mxu0
      %v544 = vadd.f32 0.0, %v543
      %v545 = vpop.f32.mrb[0].mxu0
      %v546 = vadd.f32 0.0, %v545
      %v547 = vpop.f32.mrb[0].mxu0
      %v548 = vadd.f32 0.0, %v547
      %549 = vmatprep.mubr.bf16.mxu0 0
      %550 = vmatmul.mubr.bf16.gmra.mrb[0].mxu0 %v421
      %v551 = vpop.f32.mrb[0].mxu0
      %v552 = vadd.f32 0.0, %v551
      %v553 = vpop.f32.mrb[0].mxu0
      %v554 = vadd.f32 0.0, %v553
      %v555 = vpop.f32.mrb[0].mxu0
      %v556 = vadd.f32 0.0, %v555
      %v557 = vpop.f32.mrb[0].mxu0
      %v558 = vadd.f32 0.0, %v557
      %559 = vmatprep.mubr.bf16.mxu0 0
      %560 = vmatmul.mubr.bf16.gmra.mrb[0].mxu0 %v424
      %v561 = vpop.f32.mrb[0].mxu0
      %v562 = vadd.f32 0.0, %v561
      %v563 = vpop.f32.mrb[0].mxu0
      %v564 = vadd.f32 0.0, %v563
      %v565 = vpop.f32.mrb[0].mxu0
      %v566 = vadd.f32 0.0, %v565
      %v567 = vpop.f32.mrb[0].mxu0
      %v568 = vadd.f32 0.0, %v567
      %569 = vmatprep.mubr.bf16.mxu0 0
      %570 = vmatmul.mubr.bf16.gmra.mrb[0].mxu0 %v427
      %v571 = vpop.f32.mrb[0].mxu0
      %v572 = vadd.f32 0.0, %v571
      %v573 = vpop.f32.mrb[0].mxu0
      %v574 = vadd.f32 0.0, %v573
      %v575 = vpop.f32.mrb[0].mxu0
      %v576 = vadd.f32 0.0, %v575
      %v577 = vpop.f32.mrb[0].mxu0
      %v578 = vadd.f32 0.0, %v577
      %579 = vmatprep.mubr.bf16.mxu0 0
      %580 = vmatmul.mubr.bf16.gmra.mrb[0].mxu0 %v430
      %v581 = vpop.f32.mrb[0].mxu0
      %v582 = vadd.f32 0.0, %v581
      %v583 = vpop.f32.mrb[0].mxu0
      %v584 = vadd.f32 0.0, %v583
      %v585 = vpop.f32.mrb[0].mxu0
      %v586 = vadd.f32 0.0, %v585
      %v587 = vpop.f32.mrb[0].mxu0
      %v588 = vadd.f32 0.0, %v587
      %589 = vmatprep.mubr.bf16.mxu0 0
      %590 = vmatmul.mubr.bf16.gmra.mrb[0].mxu0 %v433
      %v591 = vpop.f32.mrb[0].mxu0
      %v592 = vadd.f32 0.0, %v591
      %v593 = vpop.f32.mrb[0].mxu0
      %v594 = vadd.f32 0.0, %v593
      %v595 = vpop.f32.mrb[0].mxu0
      %v596 = vadd.f32 0.0, %v595
      %v597 = vpop.f32.mrb[0].mxu0
      %v598 = vadd.f32 0.0, %v597
      %599 = vmatprep.mubr.bf16.mxu0 0
      %600 = vmatmul.mubr.bf16.gmra.mrb[0].mxu0 %v436
      %v601 = vpop.f32.mrb[0].mxu0
      %v602 = vadd.f32 0.0, %v601
      %v603 = vpop.f32.mrb[0].mxu0
      %v604 = vadd.f32 0.0, %v603
      %v605 = vpop.f32.mrb[0].mxu0
      %v606 = vadd.f32 0.0, %v605
      %v607 = vpop.f32.mrb[0].mxu0
      %v608 = vadd.f32 0.0, %v607
      %609 = vmatprep.mubr.bf16.mxu0 0
      %610 = vmatmul.mubr.bf16.gmra.mrb[0].mxu0 %v439
      %v611 = vpop.f32.mrb[0].mxu0
      %v612 = vadd.f32 0.0, %v611
      %v613 = vpop.f32.mrb[0].mxu0
      %v614 = vadd.f32 0.0, %v613
      %v615 = vpop.f32.mrb[0].mxu0
      %v616 = vadd.f32 0.0, %v615
      %v617 = vpop.f32.mrb[0].mxu0
      %v618 = vadd.f32 0.0, %v617
      %619 = vmatprep.mubr.bf16.mxu0 0
      %620 = vmatmul.mubr.bf16.gmra.mrb[0].mxu0 %v442
      %v621 = vpop.f32.mrb[0].mxu0
      %v622 = vadd.f32 0.0, %v621
      %v623 = vpop.f32.mrb[0].mxu0
      %v624 = vadd.f32 0.0, %v623
      %v625 = vpop.f32.mrb[0].mxu0
      %v626 = vpop.f32.mrb[0].mxu0
      %627 = vdwg.mxu0
      %628 = vmatprep.subr.bf16.mxu0 %v455
      %629 = vmatpush1.bf16.msra.mxu0 %v452
      %630 = vmatprep.subr.bf16.mxu0 0
      %631 = vmatpush1.bf16.msra.mxu0 0
      %632 = vmatprep.subr.bf16.mxu0 0
      %633 = vmatpush1.bf16.msra.mxu0 0
      %634 = vmatprep.subr.bf16.mxu0 0
      %635 = vmatpush1.bf16.msra.mxu0 0
      %636 = vmatprep.subr.bf16.mxu0 0
      %637 = vmatpush1.bf16.msra.mxu0 0
      %638 = vmatprep.subr.bf16.mxu0 0
      %639 = vmatpush1.bf16.msra.mxu0 0
      %640 = vmatprep.subr.bf16.mxu0 0
      %641 = vmatpush1.bf16.msra.mxu0 0
      %642 = vmatprep.subr.bf16.mxu0 0
      %643 = vmatpush1.bf16.msra.mxu0 0
      %644 = vmatprep.subr.bf16.mxu0 0
      %645 = vmatpush1.bf16.msra.mxu0 0
      %646 = vmatprep.subr.bf16.mxu0 0
      %647 = vmatpush1.bf16.msra.mxu0 0
      %648 = vmatprep.subr.bf16.mxu0 0
      %649 = vmatpush1.bf16.msra.mxu0 0
      %650 = vmatprep.subr.bf16.mxu0 0
      %651 = vmatpush1.bf16.msra.mxu0 0
      %652 = vmatprep.subr.bf16.mxu0 0
      %653 = vmatpush1.bf16.msra.mxu0 0
      %654 = vmatprep.subr.bf16.mxu0 0
      %655 = vmatpush1.bf16.msra.mxu0 0
      %656 = vmatprep.subr.bf16.mxu0 0
      %657 = vmatpush1.bf16.msra.mxu0 0
      %658 = vmatprep.subr.bf16.mxu0 0
      %659 = vmatpush1.bf16.msra.mxu0 0
      %660 = vmatprep.mubr.bf16.mxu0 0
      %661 = vmatmul.mubr.bf16.gmra.mrb[0].mxu0 %v403
      %v662 = vpop.f32.mrb[0].mxu0
      %v663 = vadd.f32 0.0, %v662
      %v664 = vpop.f32.mrb[0].mxu0
      %v665 = vadd.f32 0.0, %v664
      %v666 = vpop.f32.mrb[0].mxu0
      %v667 = vadd.f32 0.0, %v666
      %v668 = vpop.f32.mrb[0].mxu0
      %v669 = vadd.f32 0.0, %v668
      %670 = vmatprep.mubr.bf16.mxu0 0
      %671 = vmatmul.mubr.bf16.gmra.mrb[0].mxu0 %v406
      %v672 = vpop.f32.mrb[0].mxu0
      %v673 = vadd.f32 0.0, %v672
      %v674 = vpop.f32.mrb[0].mxu0
      %v675 = vadd.f32 0.0, %v674
      %v676 = vpop.f32.mrb[0].mxu0
      %v677 = vadd.f32 0.0, %v676
      %v678 = vpop.f32.mrb[0].mxu0
      %v679 = vadd.f32 0.0, %v678
      %680 = vmatprep.mubr.bf16.mxu0 0
      %681 = vmatmul.mubr.bf16.gmra.mrb[0].mxu0 %v409
      %v682 = vpop.f32.mrb[0].mxu0
      %v683 = vadd.f32 0.0, %v682
      %v684 = vpop.f32.mrb[0].mxu0
      %v685 = vadd.f32 0.0, %v684
      %v686 = vpop.f32.mrb[0].mxu0
      %v687 = vadd.f32 0.0, %v686
      %v688 = vpop.f32.mrb[0].mxu0
      %v689 = vadd.f32 0.0, %v688
      %690 = vmatprep.mubr.bf16.mxu0 0
      %691 = vmatmul.mubr.bf16.gmra.mrb[0].mxu0 %v412
      %v692 = vpop.f32.mrb[0].mxu0
      %v693 = vadd.f32 0.0, %v692
      %v694 = vpop.f32.mrb[0].mxu0
      %v695 = vadd.f32 0.0, %v694
      %v696 = vpop.f32.mrb[0].mxu0
      %v697 = vadd.f32 0.0, %v696
      %v698 = vpop.f32.mrb[0].mxu0
      %v699 = vadd.f32 0.0, %v698
      %700 = vmatprep.mubr.bf16.mxu0 0
      %701 = vmatmul.mubr.bf16.gmra.mrb[0].mxu0 %v415
      %v702 = vpop.f32.mrb[0].mxu0
      %v703 = vadd.f32 0.0, %v702
      %v704 = vpop.f32.mrb[0].mxu0
      %v705 = vadd.f32 0.0, %v704
      %v706 = vpop.f32.mrb[0].mxu0
      %v707 = vadd.f32 0.0, %v706
      %v708 = vpop.f32.mrb[0].mxu0
      %v709 = vadd.f32 0.0, %v708
      %710 = vmatprep.mubr.bf16.mxu0 0
      %711 = vmatmul.mubr.bf16.gmra.mrb[0].mxu0 %v418
      %v712 = vpop.f32.mrb[0].mxu0
      %v713 = vadd.f32 0.0, %v712
      %v714 = vpop.f32.mrb[0].mxu0
      %v715 = vadd.f32 0.0, %v714
      %v716 = vpop.f32.mrb[0].mxu0
      %v717 = vadd.f32 0.0, %v716
      %v718 = vpop.f32.mrb[0].mxu0
      %v719 = vadd.f32 0.0, %v718
      %720 = vmatprep.mubr.bf16.mxu0 0
      %721 = vmatmul.mubr.bf16.gmra.mrb[0].mxu0 %v421
      %v722 = vpop.f32.mrb[0].mxu0
      %v723 = vadd.f32 0.0, %v722
      %v724 = vpop.f32.mrb[0].mxu0
      %v725 = vadd.f32 0.0, %v724
      %v726 = vpop.f32.mrb[0].mxu0
      %v727 = vadd.f32 0.0, %v726
      %v728 = vpop.f32.mrb[0].mxu0
      %v729 = vadd.f32 0.0, %v728
      %730 = vmatprep.mubr.bf16.mxu0 0
      %731 = vmatmul.mubr.bf16.gmra.mrb[0].mxu0 %v424
      %v732 = vpop.f32.mrb[0].mxu0
      %v733 = vadd.f32 0.0, %v732
      %v734 = vpop.f32.mrb[0].mxu0
      %v735 = vadd.f32 0.0, %v734
      %v736 = vpop.f32.mrb[0].mxu0
      %v737 = vadd.f32 0.0, %v736
      %v738 = vpop.f32.mrb[0].mxu0
      %v739 = vadd.f32 0.0, %v738
      %740 = vmatprep.mubr.bf16.mxu0 0
      %741 = vmatmul.mubr.bf16.gmra.mrb[0].mxu0 %v427
      %v742 = vpop.f32.mrb[0].mxu0
      %v743 = vadd.f32 0.0, %v742
      %v744 = vpop.f32.mrb[0].mxu0
      %v745 = vadd.f32 0.0, %v744
      %v746 = vpop.f32.mrb[0].mxu0
      %v747 = vadd.f32 0.0, %v746
      %v748 = vpop.f32.mrb[0].mxu0
      %v749 = vadd.f32 0.0, %v748
      %750 = vmatprep.mubr.bf16.mxu0 0
      %751 = vmatmul.mubr.bf16.gmra.mrb[0].mxu0 %v430
      %v752 = vpop.f32.mrb[0].mxu0
      %v753 = vadd.f32 0.0, %v752
      %v754 = vpop.f32.mrb[0].mxu0
      %v755 = vadd.f32 0.0, %v754
      %v756 = vpop.f32.mrb[0].mxu0
      %v757 = vadd.f32 0.0, %v756
      %v758 = vpop.f32.mrb[0].mxu0
      %v759 = vadd.f32 0.0, %v758
      %760 = vmatprep.mubr.bf16.mxu0 0
      %761 = vmatmul.mubr.bf16.gmra.mrb[0].mxu0 %v433
      %v762 = vpop.f32.mrb[0].mxu0
      %v763 = vadd.f32 0.0, %v762
      %v764 = vpop.f32.mrb[0].mxu0
      %v765 = vadd.f32 0.0, %v764
      %v766 = vpop.f32.mrb[0].mxu0
      %v767 = vadd.f32 0.0, %v766
      %v768 = vpop.f32.mrb[0].mxu0
      %v769 = vadd.f32 0.0, %v768
      %770 = vmatprep.mubr.bf16.mxu0 0
      %771 = vmatmul.mubr.bf16.gmra.mrb[0].mxu0 %v436
      %v772 = vpop.f32.mrb[0].mxu0
      %v773 = vadd.f32 0.0, %v772
      %v774 = vpop.f32.mrb[0].mxu0
      %v775 = vadd.f32 0.0, %v774
      %v776 = vpop.f32.mrb[0].mxu0
      %v777 = vadd.f32 0.0, %v776
      %v778 = vpop.f32.mrb[0].mxu0
      %v779 = vadd.f32 0.0, %v778
      %780 = vmatprep.mubr.bf16.mxu0 0
      %781 = vmatmul.mubr.bf16.gmra.mrb[0].mxu0 %v439
      %v782 = vpop.f32.mrb[0].mxu0
      %v783 = vadd.f32 0.0, %v782
      %v784 = vpop.f32.mrb[0].mxu0
      %v785 = vadd.f32 0.0, %v784
      %v786 = vpop.f32.mrb[0].mxu0
      %v787 = vadd.f32 0.0, %v786
      %v788 = vpop.f32.mrb[0].mxu0
      %v789 = vadd.f32 0.0, %v788
      %790 = vmatprep.mubr.bf16.mxu0 0
      %791 = vmatmul.mubr.bf16.gmra.mrb[0].mxu0 %v442
      %v792 = vpop.f32.mrb[0].mxu0
      %v793 = vadd.f32 0.0, %v792
      %v794 = vpop.f32.mrb[0].mxu0
      %v795 = vadd.f32 0.0, %v794
      %v796 = vpop.f32.mrb[0].mxu0
      %v797 = vpop.f32.mrb[0].mxu0
      %798 = vdwg.mxu0
      %v800 = vunpack.c.l.b16 %v198
      %v801 = vpack.c.b16 %v800, %v800
      %v803 = vcombine.high %v199, %v199
      %v805 = vunpack.c.l.s4 1983009808
      %v806 = vunpack.c.0.s8 %v805
      %v807 = vlaneseq
      %v808 = vshrl.u32 %v807, 7
      %v809 = vsub.s32 %v806, %v808
      %v810 = vrot.slane %v199, %v809
      %v812 = vunpack.c.l.s4 1983009808
      %v813 = vunpack.c.0.s8 %v812
      %v814 = vlaneseq
      %v815 = vshrl.u32 %v814, 7
      %v816 = vsub.s32 %v813, %v815
      %v817 = vrot.slane %v803, %v816
      %v818 = vcombine.high %v810, %v810
      %v819 = vcombine.high %v817, %v817
      %v820 = vsel %vm401, %v257, 0
      %v822 = vsel %vm401, %v258, 0
      %v824 = vsel %vm401, %v259, 0
      %v826 = vsel %vm401, %v260, 0
      %v828 = vsel %vm401, %v261, 0
      %v830 = vsel %vm401, %v262, 0
      %v832 = vsel %vm401, %v263, 0
      %v834 = vsel %vm401, %v264, 0
      %v836 = vsel %vm401, %v265, 0
      %v838 = vsel %vm401, %v266, 0
      %v840 = vsel %vm401, %v267, 0
      %v842 = vsel %vm401, %v268, 0
      %v844 = vsel %vm401, %v269, 0
      %v847 = vsel %vm401, %v801, 0
      %v850 = vsel %vm444, %v810, 0
      %v853 = vsel %vm444, %v818, 0
      %v856 = vsel %vm444, %v817, 0
      %v859 = vsel %vm444, %v819, 0
      %861 = vmatprep.subr.bf16.mxu0 %v853
      %862 = vmatpush1.bf16.msra.mxu0 %v850
      %863 = vmatprep.subr.bf16.mxu0 0
      %864 = vmatpush1.bf16.msra.mxu0 0
      %865 = vmatprep.subr.bf16.mxu0 0
      %866 = vmatpush1.bf16.msra.mxu0 0
      %867 = vmatprep.subr.bf16.mxu0 0
      %868 = vmatpush1.bf16.msra.mxu0 0
      %869 = vmatprep.subr.bf16.mxu0 0
      %870 = vmatpush1.bf16.msra.mxu0 0
      %871 = vmatprep.subr.bf16.mxu0 0
      %872 = vmatpush1.bf16.msra.mxu0 0
      %873 = vmatprep.subr.bf16.mxu0 0
      %874 = vmatpush1.bf16.msra.mxu0 0
      %875 = vmatprep.subr.bf16.mxu0 0
      %876 = vmatpush1.bf16.msra.mxu0 0
      %877 = vmatprep.subr.bf16.mxu0 0
      %878 = vmatpush1.bf16.msra.mxu0 0
      %879 = vmatprep.subr.bf16.mxu0 0
      %880 = vmatpush1.bf16.msra.mxu0 0
      %881 = vmatprep.subr.bf16.mxu0 0
      %882 = vmatpush1.bf16.msra.mxu0 0
      %883 = vmatprep.subr.bf16.mxu0 0
      %884 = vmatpush1.bf16.msra.mxu0 0
      %885 = vmatprep.subr.bf16.mxu0 0
      %886 = vmatpush1.bf16.msra.mxu0 0
      %887 = vmatprep.subr.bf16.mxu0 0
      %888 = vmatpush1.bf16.msra.mxu0 0
      %889 = vmatprep.subr.bf16.mxu0 0
      %890 = vmatpush1.bf16.msra.mxu0 0
      %891 = vmatprep.subr.bf16.mxu0 0
      %892 = vmatpush1.bf16.msra.mxu0 0
      %893 = vmatprep.mubr.bf16.mxu0 0
      %894 = vmatmul.mubr.bf16.gmra.mrb[0].mxu0 %v820
      %v895 = vpop.f32.mrb[0].mxu0
      %v896 = vadd.f32 %v492, %v895
      %v897 = vpop.f32.mrb[0].mxu0
      %v898 = vadd.f32 %v494, %v897
      %v899 = vpop.f32.mrb[0].mxu0
      %v900 = vadd.f32 %v496, %v899
      %v901 = vpop.f32.mrb[0].mxu0
      %v902 = vadd.f32 %v498, %v901
      %903 = vmatprep.mubr.bf16.mxu0 0
      %904 = vmatmul.mubr.bf16.gmra.mrb[0].mxu0 %v822
      %v905 = vpop.f32.mrb[0].mxu0
      %v906 = vadd.f32 %v502, %v905
      %v907 = vpop.f32.mrb[0].mxu0
      %v908 = vadd.f32 %v504, %v907
      %v909 = vpop.f32.mrb[0].mxu0
      %v910 = vadd.f32 %v506, %v909
      %v911 = vpop.f32.mrb[0].mxu0
      %v912 = vadd.f32 %v508, %v911
      %913 = vmatprep.mubr.bf16.mxu0 0
      %914 = vmatmul.mubr.bf16.gmra.mrb[0].mxu0 %v824
      %v915 = vpop.f32.mrb[0].mxu0
      %v916 = vadd.f32 %v512, %v915
      %v917 = vpop.f32.mrb[0].mxu0
      %v918 = vadd.f32 %v514, %v917
      %v919 = vpop.f32.mrb[0].mxu0
      %v920 = vadd.f32 %v516, %v919
      %v921 = vpop.f32.mrb[0].mxu0
      %v922 = vadd.f32 %v518, %v921
      %923 = vmatprep.mubr.bf16.mxu0 0
      %924 = vmatmul.mubr.bf16.gmra.mrb[0].mxu0 %v826
      %v925 = vpop.f32.mrb[0].mxu0
      %v926 = vadd.f32 %v522, %v925
      %v927 = vpop.f32.mrb[0].mxu0
      %v928 = vadd.f32 %v524, %v927
      %v929 = vpop.f32.mrb[0].mxu0
      %v930 = vadd.f32 %v526, %v929
      %v931 = vpop.f32.mrb[0].mxu0
      %v932 = vadd.f32 %v528, %v931
      %933 = vmatprep.mubr.bf16.mxu0 0
      %934 = vmatmul.mubr.bf16.gmra.mrb[0].mxu0 %v828
      %v935 = vpop.f32.mrb[0].mxu0
      %v936 = vadd.f32 %v532, %v935
      %v937 = vpop.f32.mrb[0].mxu0
      %v938 = vadd.f32 %v534, %v937
      %v939 = vpop.f32.mrb[0].mxu0
      %v940 = vadd.f32 %v536, %v939
      %v941 = vpop.f32.mrb[0].mxu0
      %v942 = vadd.f32 %v538, %v941
      %943 = vmatprep.mubr.bf16.mxu0 0
      %944 = vmatmul.mubr.bf16.gmra.mrb[0].mxu0 %v830
      %v945 = vpop.f32.mrb[0].mxu0
      %v946 = vadd.f32 %v542, %v945
      %v947 = vpop.f32.mrb[0].mxu0
      %v948 = vadd.f32 %v544, %v947
      %v949 = vpop.f32.mrb[0].mxu0
      %v950 = vadd.f32 %v546, %v949
      %v951 = vpop.f32.mrb[0].mxu0
      %v952 = vadd.f32 %v548, %v951
      %953 = vmatprep.mubr.bf16.mxu0 0
      %954 = vmatmul.mubr.bf16.gmra.mrb[0].mxu0 %v832
      %v955 = vpop.f32.mrb[0].mxu0
      %v956 = vadd.f32 %v552, %v955
      %v957 = vpop.f32.mrb[0].mxu0
      %v958 = vadd.f32 %v554, %v957
      %v959 = vpop.f32.mrb[0].mxu0
      %v960 = vadd.f32 %v556, %v959
      %v961 = vpop.f32.mrb[0].mxu0
      %v962 = vadd.f32 %v558, %v961
      %963 = vmatprep.mubr.bf16.mxu0 0
      %964 = vmatmul.mubr.bf16.gmra.mrb[0].mxu0 %v834
      %v965 = vpop.f32.mrb[0].mxu0
      %v966 = vadd.f32 %v562, %v965
      %v967 = vpop.f32.mrb[0].mxu0
      %v968 = vadd.f32 %v564, %v967
      %v969 = vpop.f32.mrb[0].mxu0
      %v970 = vadd.f32 %v566, %v969
      %v971 = vpop.f32.mrb[0].mxu0
      %v972 = vadd.f32 %v568, %v971
      %973 = vmatprep.mubr.bf16.mxu0 0
      %974 = vmatmul.mubr.bf16.gmra.mrb[0].mxu0 %v836
      %v975 = vpop.f32.mrb[0].mxu0
      %v976 = vadd.f32 %v572, %v975
      %v977 = vpop.f32.mrb[0].mxu0
      %v978 = vadd.f32 %v574, %v977
      %v979 = vpop.f32.mrb[0].mxu0
      %v980 = vadd.f32 %v576, %v979
      %v981 = vpop.f32.mrb[0].mxu0
      %v982 = vadd.f32 %v578, %v981
      %983 = vmatprep.mubr.bf16.mxu0 0
      %984 = vmatmul.mubr.bf16.gmra.mrb[0].mxu0 %v838
      %v985 = vpop.f32.mrb[0].mxu0
      %v986 = vadd.f32 %v582, %v985
      %v987 = vpop.f32.mrb[0].mxu0
      %v988 = vadd.f32 %v584, %v987
      %v989 = vpop.f32.mrb[0].mxu0
      %v990 = vadd.f32 %v586, %v989
      %v991 = vpop.f32.mrb[0].mxu0
      %v992 = vadd.f32 %v588, %v991
      %993 = vmatprep.mubr.bf16.mxu0 0
      %994 = vmatmul.mubr.bf16.gmra.mrb[0].mxu0 %v840
      %v995 = vpop.f32.mrb[0].mxu0
      %v996 = vadd.f32 %v592, %v995
      %v997 = vpop.f32.mrb[0].mxu0
      %v998 = vadd.f32 %v594, %v997
      %v999 = vpop.f32.mrb[0].mxu0
      %v1000 = vadd.f32 %v596, %v999
      %v1001 = vpop.f32.mrb[0].mxu0
      %v1002 = vadd.f32 %v598, %v1001
      %1003 = vmatprep.mubr.bf16.mxu0 0
      %1004 = vmatmul.mubr.bf16.gmra.mrb[0].mxu0 %v842
      %v1005 = vpop.f32.mrb[0].mxu0
      %v1006 = vadd.f32 %v602, %v1005
      %v1007 = vpop.f32.mrb[0].mxu0
      %v1008 = vadd.f32 %v604, %v1007
      %v1009 = vpop.f32.mrb[0].mxu0
      %v1010 = vadd.f32 %v606, %v1009
      %v1011 = vpop.f32.mrb[0].mxu0
      %v1012 = vadd.f32 %v608, %v1011
      %1013 = vmatprep.mubr.bf16.mxu0 0
      %1014 = vmatmul.mubr.bf16.gmra.mrb[0].mxu0 %v844
      %v1015 = vpop.f32.mrb[0].mxu0
      %v1016 = vadd.f32 %v612, %v1015
      %v1017 = vpop.f32.mrb[0].mxu0
      %v1018 = vadd.f32 %v614, %v1017
      %v1019 = vpop.f32.mrb[0].mxu0
      %v1020 = vadd.f32 %v616, %v1019
      %v1021 = vpop.f32.mrb[0].mxu0
      %v1022 = vadd.f32 %v618, %v1021
      %1023 = vmatprep.mubr.bf16.mxu0 0
      %1024 = vmatmul.mubr.bf16.gmra.mrb[0].mxu0 %v847
      %v1025 = vpop.f32.mrb[0].mxu0
      %v1026 = vadd.f32 %v622, %v1025
      %v1027 = vpop.f32.mrb[0].mxu0
      %v1028 = vadd.f32 %v624, %v1027
      %v1029 = vpop.f32.mrb[0].mxu0
      %v1030 = vpop.f32.mrb[0].mxu0
      %1031 = vdwg.mxu0
      %1032 = vmatprep.subr.bf16.mxu0 %v859
      %1033 = vmatpush1.bf16.msra.mxu0 %v856
      %1034 = vmatprep.subr.bf16.mxu0 0
      %1035 = vmatpush1.bf16.msra.mxu0 0
      %1036 = vmatprep.subr.bf16.mxu0 0
      %1037 = vmatpush1.bf16.msra.mxu0 0
      %1038 = vmatprep.subr.bf16.mxu0 0
      %1039 = vmatpush1.bf16.msra.mxu0 0
      %1040 = vmatprep.subr.bf16.mxu0 0
      %1041 = vmatpush1.bf16.msra.mxu0 0
      %1042 = vmatprep.subr.bf16.mxu0 0
      %1043 = vmatpush1.bf16.msra.mxu0 0
      %1044 = vmatprep.subr.bf16.mxu0 0
      %1045 = vmatpush1.bf16.msra.mxu0 0
      %1046 = vmatprep.subr.bf16.mxu0 0
      %1047 = vmatpush1.bf16.msra.mxu0 0
      %1048 = vmatprep.subr.bf16.mxu0 0
      %1049 = vmatpush1.bf16.msra.mxu0 0
      %1050 = vmatprep.subr.bf16.mxu0 0
      %1051 = vmatpush1.bf16.msra.mxu0 0
      %1052 = vmatprep.subr.bf16.mxu0 0
      %1053 = vmatpush1.bf16.msra.mxu0 0
      %1054 = vmatprep.subr.bf16.mxu0 0
      %1055 = vmatpush1.bf16.msra.mxu0 0
      %1056 = vmatprep.subr.bf16.mxu0 0
      %1057 = vmatpush1.bf16.msra.mxu0 0
      %1058 = vmatprep.subr.bf16.mxu0 0
      %1059 = vmatpush1.bf16.msra.mxu0 0
      %1060 = vmatprep.subr.bf16.mxu0 0
      %1061 = vmatpush1.bf16.msra.mxu0 0
      %1062 = vmatprep.subr.bf16.mxu0 0
      %1063 = vmatpush1.bf16.msra.mxu0 0
      %1064 = vmatprep.mubr.bf16.mxu0 0
      %1065 = vmatmul.mubr.bf16.gmra.mrb[0].mxu0 %v820
      %v1066 = vpop.f32.mrb[0].mxu0
      %v1067 = vadd.f32 %v663, %v1066
      %v1068 = vpop.f32.mrb[0].mxu0
      %v1069 = vadd.f32 %v665, %v1068
      %v1070 = vpop.f32.mrb[0].mxu0
      %v1071 = vadd.f32 %v667, %v1070
      %v1072 = vpop.f32.mrb[0].mxu0
      %v1073 = vadd.f32 %v669, %v1072
      %1074 = vmatprep.mubr.bf16.mxu0 0
      %1075 = vmatmul.mubr.bf16.gmra.mrb[0].mxu0 %v822
      %v1076 = vpop.f32.mrb[0].mxu0
      %v1077 = vadd.f32 %v673, %v1076
      %v1078 = vpop.f32.mrb[0].mxu0
      %v1079 = vadd.f32 %v675, %v1078
      %v1080 = vpop.f32.mrb[0].mxu0
      %v1081 = vadd.f32 %v677, %v1080
      %v1082 = vpop.f32.mrb[0].mxu0
      %v1083 = vadd.f32 %v679, %v1082
      %1084 = vmatprep.mubr.bf16.mxu0 0
      %1085 = vmatmul.mubr.bf16.gmra.mrb[0].mxu0 %v824
      %v1086 = vpop.f32.mrb[0].mxu0
      %v1087 = vadd.f32 %v683, %v1086
      %v1088 = vpop.f32.mrb[0].mxu0
      %v1089 = vadd.f32 %v685, %v1088
      %v1090 = vpop.f32.mrb[0].mxu0
      %v1091 = vadd.f32 %v687, %v1090
      %v1092 = vpop.f32.mrb[0].mxu0
      %v1093 = vadd.f32 %v689, %v1092
      %1094 = vmatprep.mubr.bf16.mxu0 0
      %1095 = vmatmul.mubr.bf16.gmra.mrb[0].mxu0 %v826
      %v1096 = vpop.f32.mrb[0].mxu0
      %v1097 = vadd.f32 %v693, %v1096
      %v1098 = vpop.f32.mrb[0].mxu0
      %v1099 = vadd.f32 %v695, %v1098
      %v1100 = vpop.f32.mrb[0].mxu0
      %v1101 = vadd.f32 %v697, %v1100
      %v1102 = vpop.f32.mrb[0].mxu0
      %v1103 = vadd.f32 %v699, %v1102
      %1104 = vmatprep.mubr.bf16.mxu0 0
      %1105 = vmatmul.mubr.bf16.gmra.mrb[0].mxu0 %v828
      %v1106 = vpop.f32.mrb[0].mxu0
      %v1107 = vadd.f32 %v703, %v1106
      %v1108 = vpop.f32.mrb[0].mxu0
      %v1109 = vadd.f32 %v705, %v1108
      %v1110 = vpop.f32.mrb[0].mxu0
      %v1111 = vadd.f32 %v707, %v1110
      %v1112 = vpop.f32.mrb[0].mxu0
      %v1113 = vadd.f32 %v709, %v1112
      %1114 = vmatprep.mubr.bf16.mxu0 0
      %1115 = vmatmul.mubr.bf16.gmra.mrb[0].mxu0 %v830
      %v1116 = vpop.f32.mrb[0].mxu0
      %v1117 = vadd.f32 %v713, %v1116
      %v1118 = vpop.f32.mrb[0].mxu0
      %v1119 = vadd.f32 %v715, %v1118
      %v1120 = vpop.f32.mrb[0].mxu0
      %v1121 = vadd.f32 %v717, %v1120
      %v1122 = vpop.f32.mrb[0].mxu0
      %v1123 = vadd.f32 %v719, %v1122
      %1124 = vmatprep.mubr.bf16.mxu0 0
      %1125 = vmatmul.mubr.bf16.gmra.mrb[0].mxu0 %v832
      %v1126 = vpop.f32.mrb[0].mxu0
      %v1127 = vadd.f32 %v723, %v1126
      %v1128 = vpop.f32.mrb[0].mxu0
      %v1129 = vadd.f32 %v725, %v1128
      %v1130 = vpop.f32.mrb[0].mxu0
      %v1131 = vadd.f32 %v727, %v1130
      %v1132 = vpop.f32.mrb[0].mxu0
      %v1133 = vadd.f32 %v729, %v1132
      %1134 = vmatprep.mubr.bf16.mxu0 0
      %1135 = vmatmul.mubr.bf16.gmra.mrb[0].mxu0 %v834
      %v1136 = vpop.f32.mrb[0].mxu0
      %v1137 = vadd.f32 %v733, %v1136
      %v1138 = vpop.f32.mrb[0].mxu0
      %v1139 = vadd.f32 %v735, %v1138
      %v1140 = vpop.f32.mrb[0].mxu0
      %v1141 = vadd.f32 %v737, %v1140
      %v1142 = vpop.f32.mrb[0].mxu0
      %v1143 = vadd.f32 %v739, %v1142
      %1144 = vmatprep.mubr.bf16.mxu0 0
      %1145 = vmatmul.mubr.bf16.gmra.mrb[0].mxu0 %v836
      %v1146 = vpop.f32.mrb[0].mxu0
      %v1147 = vadd.f32 %v743, %v1146
      %v1148 = vpop.f32.mrb[0].mxu0
      %v1149 = vadd.f32 %v745, %v1148
      %v1150 = vpop.f32.mrb[0].mxu0
      %v1151 = vadd.f32 %v747, %v1150
      %v1152 = vpop.f32.mrb[0].mxu0
      %v1153 = vadd.f32 %v749, %v1152
      %1154 = vmatprep.mubr.bf16.mxu0 0
      %1155 = vmatmul.mubr.bf16.gmra.mrb[0].mxu0 %v838
      %v1156 = vpop.f32.mrb[0].mxu0
      %v1157 = vadd.f32 %v753, %v1156
      %v1158 = vpop.f32.mrb[0].mxu0
      %v1159 = vadd.f32 %v755, %v1158
      %v1160 = vpop.f32.mrb[0].mxu0
      %v1161 = vadd.f32 %v757, %v1160
      %v1162 = vpop.f32.mrb[0].mxu0
      %v1163 = vadd.f32 %v759, %v1162
      %1164 = vmatprep.mubr.bf16.mxu0 0
      %1165 = vmatmul.mubr.bf16.gmra.mrb[0].mxu0 %v840
      %v1166 = vpop.f32.mrb[0].mxu0
      %v1167 = vadd.f32 %v763, %v1166
      %v1168 = vpop.f32.mrb[0].mxu0
      %v1169 = vadd.f32 %v765, %v1168
      %v1170 = vpop.f32.mrb[0].mxu0
      %v1171 = vadd.f32 %v767, %v1170
      %v1172 = vpop.f32.mrb[0].mxu0
      %v1173 = vadd.f32 %v769, %v1172
      %1174 = vmatprep.mubr.bf16.mxu0 0
      %1175 = vmatmul.mubr.bf16.gmra.mrb[0].mxu0 %v842
      %v1176 = vpop.f32.mrb[0].mxu0
      %v1177 = vadd.f32 %v773, %v1176
      %v1178 = vpop.f32.mrb[0].mxu0
      %v1179 = vadd.f32 %v775, %v1178
      %v1180 = vpop.f32.mrb[0].mxu0
      %v1181 = vadd.f32 %v777, %v1180
      %v1182 = vpop.f32.mrb[0].mxu0
      %v1183 = vadd.f32 %v779, %v1182
      %1184 = vmatprep.mubr.bf16.mxu0 0
      %1185 = vmatmul.mubr.bf16.gmra.mrb[0].mxu0 %v844
      %v1186 = vpop.f32.mrb[0].mxu0
      %v1187 = vadd.f32 %v783, %v1186
      %v1188 = vpop.f32.mrb[0].mxu0
      %v1189 = vadd.f32 %v785, %v1188
      %v1190 = vpop.f32.mrb[0].mxu0
      %v1191 = vadd.f32 %v787, %v1190
      %v1192 = vpop.f32.mrb[0].mxu0
      %v1193 = vadd.f32 %v789, %v1192
      %1194 = vmatprep.mubr.bf16.mxu0 0
      %1195 = vmatmul.mubr.bf16.gmra.mrb[0].mxu0 %v847
      %v1196 = vpop.f32.mrb[0].mxu0
      %v1197 = vadd.f32 %v793, %v1196
      %v1198 = vpop.f32.mrb[0].mxu0
      %v1199 = vadd.f32 %v795, %v1198
      %v1200 = vpop.f32.mrb[0].mxu0
      %v1201 = vpop.f32.mrb[0].mxu0
      %1202 = vdwg.mxu0
      %v1203 = vld [vmem:[%s165 + $0x4] sm:$0x8]
      %v1204 = vld [vmem:[%s165 + $0x8] sm:$0xf]
      %v1205 = vld [vmem:[%s165 + $0xc] sm:$0xf]
      %v1206 = vld [vmem:[%s165 + $0x10] sm:$0xf]
      %v1207 = vld [vmem:[%s165 + $0x14] sm:$0xf]
      %v1208 = vld [vmem:[%s165 + $0x18] sm:$0xf]
      %v1209 = vld [vmem:[%s165 + $0x1c] sm:$0xf]
      %v1210 = vld [vmem:[%s165 + $0x20] sm:$0xf]
      %v1211 = vld [vmem:[%s165 + $0x24] sm:$0xf]
      %v1212 = vld [vmem:[%s165 + $0x28] sm:$0xf]
      %v1213 = vld [vmem:[%s165 + $0x2c] sm:$0xf]
      %v1214 = vld [vmem:[%s165 + $0x30] sm:$0xf]
      %v1215 = vld [vmem:[%s165 + $0x34] sm:$0xf]
      %v1216 = vld [vmem:[%s165 + $0x38] sm:$0xf]
      %v1217 = vld [vmem:[%s165 + $0x3c] sm:$0xf]
      %v1218 = vld [vmem:[%s165 + $0x40] sm:$0xf]
      %v1219 = vld [vmem:[%s165 + $0x44] sm:$0xf]
      %v1220 = vld [vmem:[%s165 + $0x48] sm:$0xf]
      %v1221 = vld [vmem:[%s165 + $0x4c] sm:$0xf]
      %v1222 = vld [vmem:[%s165 + $0x50] sm:$0xf]
      %v1223 = vld [vmem:[%s165 + $0x54] sm:$0xf]
      %v1224 = vld [vmem:[%s165 + $0x58] sm:$0xf]
      %v1225 = vld [vmem:[%s165 + $0x5c] sm:$0xf]
      %v1226 = vld [vmem:[%s165 + $0x60] sm:$0xf]
      %v1227 = vld [vmem:[%s165 + $0x64] sm:$0xf]
      %v1228 = vld [vmem:[%s165 + $0x68] sm:$0xf]
      %v1229 = vld [vmem:[%s165 + $0x6c] sm:$0xf]
      %v1230 = vld [vmem:[%s165 + $0x70] sm:$0x1]
      %s1231 = scalar_lea.vmem %s1, 16
      %v1232 = vld [vmem:[%s1231] sm:$0xff]
      %v1261 = vunpack.c.l.b16 %v1203
      %v1262 = vunpack.c.l.b16 %v1204
      %v1263 = vunpack.c.l.b16 %v1205
      %v1264 = vunpack.c.l.b16 %v1206
      %v1265 = vunpack.c.l.b16 %v1207
      %v1266 = vunpack.c.l.b16 %v1208
      %v1267 = vunpack.c.l.b16 %v1209
      %v1268 = vunpack.c.l.b16 %v1210
      %v1269 = vunpack.c.l.b16 %v1211
      %v1270 = vunpack.c.l.b16 %v1212
      %v1271 = vunpack.c.l.b16 %v1213
      %v1272 = vunpack.c.l.b16 %v1214
      %v1273 = vunpack.c.l.b16 %v1215
      %v1274 = vunpack.c.l.b16 %v1216
      %v1275 = vunpack.c.l.b16 %v1217
      %v1276 = vunpack.c.l.b16 %v1218
      %v1277 = vunpack.c.l.b16 %v1219
      %v1278 = vunpack.c.l.b16 %v1220
      %v1279 = vunpack.c.l.b16 %v1221
      %v1280 = vunpack.c.l.b16 %v1222
      %v1281 = vunpack.c.l.b16 %v1223
      %v1282 = vunpack.c.l.b16 %v1224
      %v1283 = vunpack.c.l.b16 %v1225
      %v1284 = vunpack.c.l.b16 %v1226
      %v1285 = vunpack.c.l.b16 %v1227
      %v1286 = vunpack.c.l.b16 %v1228
      %v1287 = vunpack.c.l.b16 %v1229
      %v1288 = vunpack.c.l.b16 %v1230
      %v1289 = vpack.c.b16 %v1262, %v1261
      %v1290 = vpack.c.b16 %v1264, %v1263
      %v1291 = vpack.c.b16 %v1266, %v1265
      %v1292 = vpack.c.b16 %v1268, %v1267
      %v1293 = vpack.c.b16 %v1270, %v1269
      %v1294 = vpack.c.b16 %v1272, %v1271
      %v1295 = vpack.c.b16 %v1274, %v1273
      %v1296 = vpack.c.b16 %v1276, %v1275
      %v1297 = vpack.c.b16 %v1278, %v1277
      %v1298 = vpack.c.b16 %v1280, %v1279
      %v1299 = vpack.c.b16 %v1282, %v1281
      %v1300 = vpack.c.b16 %v1284, %v1283
      %v1301 = vpack.c.b16 %v1286, %v1285
      %v1302 = vpack.c.b16 %v1288, %v1287
      %vm1303 = vsmask.f32 4352
      %v1305 = vshrl.u32 %v1289, 16
      %v1307 = vrot.slane %v1305, 3
      %v1308 = vshll.u32 %v1289, 16
      %v1310 = vrot.slane %v1308, 4
      %v1311 = vor.u32 %v1307, %v1310
      %v1313 = vshrl.u32 %v1290, 16
      %v1315 = vrot.slane %v1313, 3
      %v1316 = vshll.u32 %v1290, 16
      %v1318 = vrot.slane %v1316, 4
      %v1319 = vor.u32 %v1315, %v1318
      %v1320 = vsel %vm1303, %v1311, %v1319
      %v1322 = vshrl.u32 %v1291, 16
      %v1324 = vrot.slane %v1322, 3
      %v1325 = vshll.u32 %v1291, 16
      %v1327 = vrot.slane %v1325, 4
      %v1328 = vor.u32 %v1324, %v1327
      %v1329 = vsel %vm1303, %v1319, %v1328
      %v1331 = vshrl.u32 %v1292, 16
      %v1333 = vrot.slane %v1331, 3
      %v1334 = vshll.u32 %v1292, 16
      %v1336 = vrot.slane %v1334, 4
      %v1337 = vor.u32 %v1333, %v1336
      %v1338 = vsel %vm1303, %v1328, %v1337
      %v1340 = vshrl.u32 %v1293, 16
      %v1342 = vrot.slane %v1340, 3
      %v1343 = vshll.u32 %v1293, 16
      %v1345 = vrot.slane %v1343, 4
      %v1346 = vor.u32 %v1342, %v1345
      %v1347 = vsel %vm1303, %v1337, %v1346
      %v1349 = vshrl.u32 %v1294, 16
      %v1351 = vrot.slane %v1349, 3
      %v1352 = vshll.u32 %v1294, 16
      %v1354 = vrot.slane %v1352, 4
      %v1355 = vor.u32 %v1351, %v1354
      %v1356 = vsel %vm1303, %v1346, %v1355
      %v1358 = vshrl.u32 %v1295, 16
      %v1360 = vrot.slane %v1358, 3
      %v1361 = vshll.u32 %v1295, 16
      %v1363 = vrot.slane %v1361, 4
      %v1364 = vor.u32 %v1360, %v1363
      %v1365 = vsel %vm1303, %v1355, %v1364
      %v1367 = vshrl.u32 %v1296, 16
      %v1369 = vrot.slane %v1367, 3
      %v1370 = vshll.u32 %v1296, 16
      %v1372 = vrot.slane %v1370, 4
      %v1373 = vor.u32 %v1369, %v1372
      %v1374 = vsel %vm1303, %v1364, %v1373
      %v1376 = vshrl.u32 %v1297, 16
      %v1378 = vrot.slane %v1376, 3
      %v1379 = vshll.u32 %v1297, 16
      %v1381 = vrot.slane %v1379, 4
      %v1382 = vor.u32 %v1378, %v1381
      %v1383 = vsel %vm1303, %v1373, %v1382
      %v1385 = vshrl.u32 %v1298, 16
      %v1387 = vrot.slane %v1385, 3
      %v1388 = vshll.u32 %v1298, 16
      %v1390 = vrot.slane %v1388, 4
      %v1391 = vor.u32 %v1387, %v1390
      %v1392 = vsel %vm1303, %v1382, %v1391
      %v1394 = vshrl.u32 %v1299, 16
      %v1396 = vrot.slane %v1394, 3
      %v1397 = vshll.u32 %v1299, 16
      %v1399 = vrot.slane %v1397, 4
      %v1400 = vor.u32 %v1396, %v1399
      %v1401 = vsel %vm1303, %v1391, %v1400
      %v1403 = vshrl.u32 %v1300, 16
      %v1405 = vrot.slane %v1403, 3
      %v1406 = vshll.u32 %v1300, 16
      %v1408 = vrot.slane %v1406, 4
      %v1409 = vor.u32 %v1405, %v1408
      %v1410 = vsel %vm1303, %v1400, %v1409
      %v1412 = vshrl.u32 %v1301, 16
      %v1414 = vrot.slane %v1412, 3
      %v1415 = vshll.u32 %v1301, 16
      %v1417 = vrot.slane %v1415, 4
      %v1418 = vor.u32 %v1414, %v1417
      %v1419 = vsel %vm1303, %v1409, %v1418
      %v1421 = vshrl.u32 %v1302, 16
      %v1423 = vrot.slane %v1421, 3
      %v1424 = vshll.u32 %v1302, 16
      %v1426 = vrot.slane %v1424, 4
      %v1427 = vor.u32 %v1423, %v1426
      %v1428 = vsel %vm1303, %v1418, %v1427
      %v1430 = vcombine.high %v1232, %v1232
      %v1432 = vunpack.c.l.s4 1983009808
      %v1433 = vunpack.c.0.s8 %v1432
      %v1434 = vlaneseq
      %v1435 = vshrl.u32 %v1434, 7
      %v1436 = vsub.s32 %v1433, %v1435
      %v1437 = vrot.slane %v1232, %v1436
      %v1439 = vunpack.c.l.s4 1983009808
      %v1440 = vunpack.c.0.s8 %v1439
      %v1441 = vlaneseq
      %v1442 = vshrl.u32 %v1441, 7
      %v1443 = vsub.s32 %v1440, %v1442
      %v1444 = vrot.slane %v1430, %v1443
      %v1445 = vcombine.high %v1437, %v1437
      %v1446 = vcombine.high %v1444, %v1444
      %v1448 = vsel %vm401, %v1320, 0
      %v1451 = vsel %vm401, %v1329, 0
      %v1454 = vsel %vm401, %v1338, 0
      %v1457 = vsel %vm401, %v1347, 0
      %v1460 = vsel %vm401, %v1356, 0
      %v1463 = vsel %vm401, %v1365, 0
      %v1466 = vsel %vm401, %v1374, 0
      %v1469 = vsel %vm401, %v1383, 0
      %v1472 = vsel %vm401, %v1392, 0
      %v1475 = vsel %vm401, %v1401, 0
      %v1478 = vsel %vm401, %v1410, 0
      %v1481 = vsel %vm401, %v1419, 0
      %v1484 = vsel %vm401, %v1428, 0
      %v1487 = vsel %vm401, %v1427, 0
      %v1490 = vsel %vm444, %v1437, 0
      %v1493 = vsel %vm444, %v1445, 0
      %v1496 = vsel %vm444, %v1444, 0
      %v1499 = vsel %vm444, %v1446, 0
      %1501 = vmatprep.subr.bf16.mxu0 %v1493
      %1502 = vmatpush1.bf16.msra.mxu0 %v1490
      %1503 = vmatprep.subr.bf16.mxu0 0
      %1504 = vmatpush1.bf16.msra.mxu0 0
      %1505 = vmatprep.subr.bf16.mxu0 0
      %1506 = vmatpush1.bf16.msra.mxu0 0
      %1507 = vmatprep.subr.bf16.mxu0 0
      %1508 = vmatpush1.bf16.msra.mxu0 0
      %1509 = vmatprep.subr.bf16.mxu0 0
      %1510 = vmatpush1.bf16.msra.mxu0 0
      %1511 = vmatprep.subr.bf16.mxu0 0
      %1512 = vmatpush1.bf16.msra.mxu0 0
      %1513 = vmatprep.subr.bf16.mxu0 0
      %1514 = vmatpush1.bf16.msra.mxu0 0
      %1515 = vmatprep.subr.bf16.mxu0 0
      %1516 = vmatpush1.bf16.msra.mxu0 0
      %1517 = vmatprep.subr.bf16.mxu0 0
      %1518 = vmatpush1.bf16.msra.mxu0 0
      %1519 = vmatprep.subr.bf16.mxu0 0
      %1520 = vmatpush1.bf16.msra.mxu0 0
      %1521 = vmatprep.subr.bf16.mxu0 0
      %1522 = vmatpush1.bf16.msra.mxu0 0
      %1523 = vmatprep.subr.bf16.mxu0 0
      %1524 = vmatpush1.bf16.msra.mxu0 0
      %1525 = vmatprep.subr.bf16.mxu0 0
      %1526 = vmatpush1.bf16.msra.mxu0 0
      %1527 = vmatprep.subr.bf16.mxu0 0
      %1528 = vmatpush1.bf16.msra.mxu0 0
      %1529 = vmatprep.subr.bf16.mxu0 0
      %1530 = vmatpush1.bf16.msra.mxu0 0
      %1531 = vmatprep.subr.bf16.mxu0 0
      %1532 = vmatpush1.bf16.msra.mxu0 0
      %1533 = vmatprep.mubr.bf16.mxu0 0
      %1534 = vmatmul.mubr.bf16.gmra.mrb[0].mxu0 %v1448
      %v1535 = vpop.f32.mrb[0].mxu0
      %v1536 = vadd.f32 0.0, %v1535
      %v1537 = vpop.f32.mrb[0].mxu0
      %v1538 = vadd.f32 0.0, %v1537
      %v1539 = vpop.f32.mrb[0].mxu0
      %v1540 = vadd.f32 0.0, %v1539
      %v1541 = vpop.f32.mrb[0].mxu0
      %v1542 = vadd.f32 0.0, %v1541
      %1543 = vmatprep.mubr.bf16.mxu0 0
      %1544 = vmatmul.mubr.bf16.gmra.mrb[0].mxu0 %v1451
      %v1545 = vpop.f32.mrb[0].mxu0
      %v1546 = vadd.f32 0.0, %v1545
      %v1547 = vpop.f32.mrb[0].mxu0
      %v1548 = vadd.f32 0.0, %v1547
      %v1549 = vpop.f32.mrb[0].mxu0
      %v1550 = vadd.f32 0.0, %v1549
      %v1551 = vpop.f32.mrb[0].mxu0
      %v1552 = vadd.f32 0.0, %v1551
      %1553 = vmatprep.mubr.bf16.mxu0 0
      %1554 = vmatmul.mubr.bf16.gmra.mrb[0].mxu0 %v1454
      %v1555 = vpop.f32.mrb[0].mxu0
      %v1556 = vadd.f32 0.0, %v1555
      %v1557 = vpop.f32.mrb[0].mxu0
      %v1558 = vadd.f32 0.0, %v1557
      %v1559 = vpop.f32.mrb[0].mxu0
      %v1560 = vadd.f32 0.0, %v1559
      %v1561 = vpop.f32.mrb[0].mxu0
      %v1562 = vadd.f32 0.0, %v1561
      %1563 = vmatprep.mubr.bf16.mxu0 0
      %1564 = vmatmul.mubr.bf16.gmra.mrb[0].mxu0 %v1457
      %v1565 = vpop.f32.mrb[0].mxu0
      %v1566 = vadd.f32 0.0, %v1565
      %v1567 = vpop.f32.mrb[0].mxu0
      %v1568 = vadd.f32 0.0, %v1567
      %v1569 = vpop.f32.mrb[0].mxu0
      %v1570 = vadd.f32 0.0, %v1569
      %v1571 = vpop.f32.mrb[0].mxu0
      %v1572 = vadd.f32 0.0, %v1571
      %1573 = vmatprep.mubr.bf16.mxu0 0
      %1574 = vmatmul.mubr.bf16.gmra.mrb[0].mxu0 %v1460
      %v1575 = vpop.f32.mrb[0].mxu0
      %v1576 = vadd.f32 0.0, %v1575
      %v1577 = vpop.f32.mrb[0].mxu0
      %v1578 = vadd.f32 0.0, %v1577
      %v1579 = vpop.f32.mrb[0].mxu0
      %v1580 = vadd.f32 0.0, %v1579
      %v1581 = vpop.f32.mrb[0].mxu0
      %v1582 = vadd.f32 0.0, %v1581
      %1583 = vmatprep.mubr.bf16.mxu0 0
      %1584 = vmatmul.mubr.bf16.gmra.mrb[0].mxu0 %v1463
      %v1585 = vpop.f32.mrb[0].mxu0
      %v1586 = vadd.f32 0.0, %v1585
      %v1587 = vpop.f32.mrb[0].mxu0
      %v1588 = vadd.f32 0.0, %v1587
      %v1589 = vpop.f32.mrb[0].mxu0
      %v1590 = vadd.f32 0.0, %v1589
      %v1591 = vpop.f32.mrb[0].mxu0
      %v1592 = vadd.f32 0.0, %v1591
      %1593 = vmatprep.mubr.bf16.mxu0 0
      %1594 = vmatmul.mubr.bf16.gmra.mrb[0].mxu0 %v1466
      %v1595 = vpop.f32.mrb[0].mxu0
      %v1596 = vadd.f32 0.0, %v1595
      %v1597 = vpop.f32.mrb[0].mxu0
      %v1598 = vadd.f32 0.0, %v1597
      %v1599 = vpop.f32.mrb[0].mxu0
      %v1600 = vadd.f32 0.0, %v1599
      %v1601 = vpop.f32.mrb[0].mxu0
      %v1602 = vadd.f32 0.0, %v1601
      %1603 = vmatprep.mubr.bf16.mxu0 0
      %1604 = vmatmul.mubr.bf16.gmra.mrb[0].mxu0 %v1469
      %v1605 = vpop.f32.mrb[0].mxu0
      %v1606 = vadd.f32 0.0, %v1605
      %v1607 = vpop.f32.mrb[0].mxu0
      %v1608 = vadd.f32 0.0, %v1607
      %v1609 = vpop.f32.mrb[0].mxu0
      %v1610 = vadd.f32 0.0, %v1609
      %v1611 = vpop.f32.mrb[0].mxu0
      %v1612 = vadd.f32 0.0, %v1611
      %1613 = vmatprep.mubr.bf16.mxu0 0
      %1614 = vmatmul.mubr.bf16.gmra.mrb[0].mxu0 %v1472
      %v1615 = vpop.f32.mrb[0].mxu0
      %v1616 = vadd.f32 0.0, %v1615
      %v1617 = vpop.f32.mrb[0].mxu0
      %v1618 = vadd.f32 0.0, %v1617
      %v1619 = vpop.f32.mrb[0].mxu0
      %v1620 = vadd.f32 0.0, %v1619
      %v1621 = vpop.f32.mrb[0].mxu0
      %v1622 = vadd.f32 0.0, %v1621
      %1623 = vmatprep.mubr.bf16.mxu0 0
      %1624 = vmatmul.mubr.bf16.gmra.mrb[0].mxu0 %v1475
      %v1625 = vpop.f32.mrb[0].mxu0
      %v1626 = vadd.f32 0.0, %v1625
      %v1627 = vpop.f32.mrb[0].mxu0
      %v1628 = vadd.f32 0.0, %v1627
      %v1629 = vpop.f32.mrb[0].mxu0
      %v1630 = vadd.f32 0.0, %v1629
      %v1631 = vpop.f32.mrb[0].mxu0
      %v1632 = vadd.f32 0.0, %v1631
      %1633 = vmatprep.mubr.bf16.mxu0 0
      %1634 = vmatmul.mubr.bf16.gmra.mrb[0].mxu0 %v1478
      %v1635 = vpop.f32.mrb[0].mxu0
      %v1636 = vadd.f32 0.0, %v1635
      %v1637 = vpop.f32.mrb[0].mxu0
      %v1638 = vadd.f32 0.0, %v1637
      %v1639 = vpop.f32.mrb[0].mxu0
      %v1640 = vadd.f32 0.0, %v1639
      %v1641 = vpop.f32.mrb[0].mxu0
      %v1642 = vadd.f32 0.0, %v1641
      %1643 = vmatprep.mubr.bf16.mxu0 0
      %1644 = vmatmul.mubr.bf16.gmra.mrb[0].mxu0 %v1481
      %v1645 = vpop.f32.mrb[0].mxu0
      %v1646 = vadd.f32 0.0, %v1645
      %v1647 = vpop.f32.mrb[0].mxu0
      %v1648 = vadd.f32 0.0, %v1647
      %v1649 = vpop.f32.mrb[0].mxu0
      %v1650 = vadd.f32 0.0, %v1649
      %v1651 = vpop.f32.mrb[0].mxu0
      %v1652 = vadd.f32 0.0, %v1651
      %1653 = vmatprep.mubr.bf16.mxu0 0
      %1654 = vmatmul.mubr.bf16.gmra.mrb[0].mxu0 %v1484
      %v1655 = vpop.f32.mrb[0].mxu0
      %v1656 = vadd.f32 0.0, %v1655
      %v1657 = vpop.f32.mrb[0].mxu0
      %v1658 = vadd.f32 0.0, %v1657
      %v1659 = vpop.f32.mrb[0].mxu0
      %v1660 = vadd.f32 0.0, %v1659
      %v1661 = vpop.f32.mrb[0].mxu0
      %v1662 = vadd.f32 0.0, %v1661
      %1663 = vmatprep.mubr.bf16.mxu0 0
      %1664 = vmatmul.mubr.bf16.gmra.mrb[0].mxu0 %v1487
      %v1665 = vpop.f32.mrb[0].mxu0
      %v1666 = vadd.f32 0.0, %v1665
      %v1667 = vpop.f32.mrb[0].mxu0
      %v1668 = vadd.f32 0.0, %v1667
      %v1669 = vpop.f32.mrb[0].mxu0
      %v1670 = vpop.f32.mrb[0].mxu0
      %1671 = vdwg.mxu0
      %1672 = vmatprep.subr.bf16.mxu0 %v1499
      %1673 = vmatpush1.bf16.msra.mxu0 %v1496
      %1674 = vmatprep.subr.bf16.mxu0 0
      %1675 = vmatpush1.bf16.msra.mxu0 0
      %1676 = vmatprep.subr.bf16.mxu0 0
      %1677 = vmatpush1.bf16.msra.mxu0 0
      %1678 = vmatprep.subr.bf16.mxu0 0
      %1679 = vmatpush1.bf16.msra.mxu0 0
      %1680 = vmatprep.subr.bf16.mxu0 0
      %1681 = vmatpush1.bf16.msra.mxu0 0
      %1682 = vmatprep.subr.bf16.mxu0 0
      %1683 = vmatpush1.bf16.msra.mxu0 0
      %1684 = vmatprep.subr.bf16.mxu0 0
      %1685 = vmatpush1.bf16.msra.mxu0 0
      %1686 = vmatprep.subr.bf16.mxu0 0
      %1687 = vmatpush1.bf16.msra.mxu0 0
      %1688 = vmatprep.subr.bf16.mxu0 0
      %1689 = vmatpush1.bf16.msra.mxu0 0
      %1690 = vmatprep.subr.bf16.mxu0 0
      %1691 = vmatpush1.bf16.msra.mxu0 0
      %1692 = vmatprep.subr.bf16.mxu0 0
      %1693 = vmatpush1.bf16.msra.mxu0 0
      %1694 = vmatprep.subr.bf16.mxu0 0
      %1695 = vmatpush1.bf16.msra.mxu0 0
      %1696 = vmatprep.subr.bf16.mxu0 0
      %1697 = vmatpush1.bf16.msra.mxu0 0
      %1698 = vmatprep.subr.bf16.mxu0 0
      %1699 = vmatpush1.bf16.msra.mxu0 0
      %1700 = vmatprep.subr.bf16.mxu0 0
      %1701 = vmatpush1.bf16.msra.mxu0 0
      %1702 = vmatprep.subr.bf16.mxu0 0
      %1703 = vmatpush1.bf16.msra.mxu0 0
      %1704 = vmatprep.mubr.bf16.mxu0 0
      %1705 = vmatmul.mubr.bf16.gmra.mrb[0].mxu0 %v1448
      %v1706 = vpop.f32.mrb[0].mxu0
      %v1707 = vadd.f32 0.0, %v1706
      %v1708 = vpop.f32.mrb[0].mxu0
      %v1709 = vadd.f32 0.0, %v1708
      %v1710 = vpop.f32.mrb[0].mxu0
      %v1711 = vadd.f32 0.0, %v1710
      %v1712 = vpop.f32.mrb[0].mxu0
      %v1713 = vadd.f32 0.0, %v1712
      %1714 = vmatprep.mubr.bf16.mxu0 0
      %1715 = vmatmul.mubr.bf16.gmra.mrb[0].mxu0 %v1451
      %v1716 = vpop.f32.mrb[0].mxu0
      %v1717 = vadd.f32 0.0, %v1716
      %v1718 = vpop.f32.mrb[0].mxu0
      %v1719 = vadd.f32 0.0, %v1718
      %v1720 = vpop.f32.mrb[0].mxu0
      %v1721 = vadd.f32 0.0, %v1720
      %v1722 = vpop.f32.mrb[0].mxu0
      %v1723 = vadd.f32 0.0, %v1722
      %1724 = vmatprep.mubr.bf16.mxu0 0
      %1725 = vmatmul.mubr.bf16.gmra.mrb[0].mxu0 %v1454
      %v1726 = vpop.f32.mrb[0].mxu0
      %v1727 = vadd.f32 0.0, %v1726
      %v1728 = vpop.f32.mrb[0].mxu0
      %v1729 = vadd.f32 0.0, %v1728
      %v1730 = vpop.f32.mrb[0].mxu0
      %v1731 = vadd.f32 0.0, %v1730
      %v1732 = vpop.f32.mrb[0].mxu0
      %v1733 = vadd.f32 0.0, %v1732
      %1734 = vmatprep.mubr.bf16.mxu0 0
      %1735 = vmatmul.mubr.bf16.gmra.mrb[0].mxu0 %v1457
      %v1736 = vpop.f32.mrb[0].mxu0
      %v1737 = vadd.f32 0.0, %v1736
      %v1738 = vpop.f32.mrb[0].mxu0
      %v1739 = vadd.f32 0.0, %v1738
      %v1740 = vpop.f32.mrb[0].mxu0
      %v1741 = vadd.f32 0.0, %v1740
      %v1742 = vpop.f32.mrb[0].mxu0
      %v1743 = vadd.f32 0.0, %v1742
      %1744 = vmatprep.mubr.bf16.mxu0 0
      %1745 = vmatmul.mubr.bf16.gmra.mrb[0].mxu0 %v1460
      %v1746 = vpop.f32.mrb[0].mxu0
      %v1747 = vadd.f32 0.0, %v1746
      %v1748 = vpop.f32.mrb[0].mxu0
      %v1749 = vadd.f32 0.0, %v1748
      %v1750 = vpop.f32.mrb[0].mxu0
      %v1751 = vadd.f32 0.0, %v1750
      %v1752 = vpop.f32.mrb[0].mxu0
      %v1753 = vadd.f32 0.0, %v1752
      %1754 = vmatprep.mubr.bf16.mxu0 0
      %1755 = vmatmul.mubr.bf16.gmra.mrb[0].mxu0 %v1463
      %v1756 = vpop.f32.mrb[0].mxu0
      %v1757 = vadd.f32 0.0, %v1756
      %v1758 = vpop.f32.mrb[0].mxu0
      %v1759 = vadd.f32 0.0, %v1758
      %v1760 = vpop.f32.mrb[0].mxu0
      %v1761 = vadd.f32 0.0, %v1760
      %v1762 = vpop.f32.mrb[0].mxu0
      %v1763 = vadd.f32 0.0, %v1762
      %1764 = vmatprep.mubr.bf16.mxu0 0
      %1765 = vmatmul.mubr.bf16.gmra.mrb[0].mxu0 %v1466
      %v1766 = vpop.f32.mrb[0].mxu0
      %v1767 = vadd.f32 0.0, %v1766
      %v1768 = vpop.f32.mrb[0].mxu0
      %v1769 = vadd.f32 0.0, %v1768
      %v1770 = vpop.f32.mrb[0].mxu0
      %v1771 = vadd.f32 0.0, %v1770
      %v1772 = vpop.f32.mrb[0].mxu0
      %v1773 = vadd.f32 0.0, %v1772
      %1774 = vmatprep.mubr.bf16.mxu0 0
      %1775 = vmatmul.mubr.bf16.gmra.mrb[0].mxu0 %v1469
      %v1776 = vpop.f32.mrb[0].mxu0
      %v1777 = vadd.f32 0.0, %v1776
      %v1778 = vpop.f32.mrb[0].mxu0
      %v1779 = vadd.f32 0.0, %v1778
      %v1780 = vpop.f32.mrb[0].mxu0
      %v1781 = vadd.f32 0.0, %v1780
      %v1782 = vpop.f32.mrb[0].mxu0
      %v1783 = vadd.f32 0.0, %v1782
      %1784 = vmatprep.mubr.bf16.mxu0 0
      %1785 = vmatmul.mubr.bf16.gmra.mrb[0].mxu0 %v1472
      %v1786 = vpop.f32.mrb[0].mxu0
      %v1787 = vadd.f32 0.0, %v1786
      %v1788 = vpop.f32.mrb[0].mxu0
      %v1789 = vadd.f32 0.0, %v1788
      %v1790 = vpop.f32.mrb[0].mxu0
      %v1791 = vadd.f32 0.0, %v1790
      %v1792 = vpop.f32.mrb[0].mxu0
      %v1793 = vadd.f32 0.0, %v1792
      %1794 = vmatprep.mubr.bf16.mxu0 0
      %1795 = vmatmul.mubr.bf16.gmra.mrb[0].mxu0 %v1475
      %v1796 = vpop.f32.mrb[0].mxu0
      %v1797 = vadd.f32 0.0, %v1796
      %v1798 = vpop.f32.mrb[0].mxu0
      %v1799 = vadd.f32 0.0, %v1798
      %v1800 = vpop.f32.mrb[0].mxu0
      %v1801 = vadd.f32 0.0, %v1800
      %v1802 = vpop.f32.mrb[0].mxu0
      %v1803 = vadd.f32 0.0, %v1802
      %1804 = vmatprep.mubr.bf16.mxu0 0
      %1805 = vmatmul.mubr.bf16.gmra.mrb[0].mxu0 %v1478
      %v1806 = vpop.f32.mrb[0].mxu0
      %v1807 = vadd.f32 0.0, %v1806
      %v1808 = vpop.f32.mrb[0].mxu0
      %v1809 = vadd.f32 0.0, %v1808
      %v1810 = vpop.f32.mrb[0].mxu0
      %v1811 = vadd.f32 0.0, %v1810
      %v1812 = vpop.f32.mrb[0].mxu0
      %v1813 = vadd.f32 0.0, %v1812
      %1814 = vmatprep.mubr.bf16.mxu0 0
      %1815 = vmatmul.mubr.bf16.gmra.mrb[0].mxu0 %v1481
      %v1816 = vpop.f32.mrb[0].mxu0
      %v1817 = vadd.f32 0.0, %v1816
      %v1818 = vpop.f32.mrb[0].mxu0
      %v1819 = vadd.f32 0.0, %v1818
      %v1820 = vpop.f32.mrb[0].mxu0
      %v1821 = vadd.f32 0.0, %v1820
      %v1822 = vpop.f32.mrb[0].mxu0
      %v1823 = vadd.f32 0.0, %v1822
      %1824 = vmatprep.mubr.bf16.mxu0 0
      %1825 = vmatmul.mubr.bf16.gmra.mrb[0].mxu0 %v1484
      %v1826 = vpop.f32.mrb[0].mxu0
      %v1827 = vadd.f32 0.0, %v1826
      %v1828 = vpop.f32.mrb[0].mxu0
      %v1829 = vadd.f32 0.0, %v1828
      %v1830 = vpop.f32.mrb[0].mxu0
      %v1831 = vadd.f32 0.0, %v1830
      %v1832 = vpop.f32.mrb[0].mxu0
      %v1833 = vadd.f32 0.0, %v1832
      %1834 = vmatprep.mubr.bf16.mxu0 0
      %1835 = vmatmul.mubr.bf16.gmra.mrb[0].mxu0 %v1487
      %v1836 = vpop.f32.mrb[0].mxu0
      %v1837 = vadd.f32 0.0, %v1836
      %v1838 = vpop.f32.mrb[0].mxu0
      %v1839 = vadd.f32 0.0, %v1838
      %v1840 = vpop.f32.mrb[0].mxu0
      %v1841 = vpop.f32.mrb[0].mxu0
      %1842 = vdwg.mxu0
      %v1843 = vadd.f32 %v896, %v1536
      %v1844 = vadd.f32 %v898, %v1538
      %v1845 = vadd.f32 %v1067, %v1707
      %v1846 = vadd.f32 %v1069, %v1709
      %v1847 = vadd.f32 %v900, %v1540
      %v1848 = vadd.f32 %v902, %v1542
      %v1849 = vadd.f32 %v1071, %v1711
      %v1850 = vadd.f32 %v1073, %v1713
      %v1851 = vadd.f32 %v906, %v1546
      %v1852 = vadd.f32 %v908, %v1548
      %v1853 = vadd.f32 %v1077, %v1717
      %v1854 = vadd.f32 %v1079, %v1719
      %v1855 = vadd.f32 %v910, %v1550
      %v1856 = vadd.f32 %v912, %v1552
      %v1857 = vadd.f32 %v1081, %v1721
      %v1858 = vadd.f32 %v1083, %v1723
      %v1859 = vadd.f32 %v916, %v1556
      %v1860 = vadd.f32 %v918, %v1558
      %v1861 = vadd.f32 %v1087, %v1727
      %v1862 = vadd.f32 %v1089, %v1729
      %v1863 = vadd.f32 %v920, %v1560
      %v1864 = vadd.f32 %v922, %v1562
      %v1865 = vadd.f32 %v1091, %v1731
      %v1866 = vadd.f32 %v1093, %v1733
      %v1867 = vadd.f32 %v926, %v1566
      %v1868 = vadd.f32 %v928, %v1568
      %v1869 = vadd.f32 %v1097, %v1737
      %v1870 = vadd.f32 %v1099, %v1739
      %v1871 = vadd.f32 %v930, %v1570
      %v1872 = vadd.f32 %v932, %v1572
      %v1873 = vadd.f32 %v1101, %v1741
      %v1874 = vadd.f32 %v1103, %v1743
      %v1875 = vadd.f32 %v936, %v1576
      %v1876 = vadd.f32 %v938, %v1578
      %v1877 = vadd.f32 %v1107, %v1747
      %v1878 = vadd.f32 %v1109, %v1749
      %v1879 = vadd.f32 %v940, %v1580
      %v1880 = vadd.f32 %v942, %v1582
      %v1881 = vadd.f32 %v1111, %v1751
      %v1882 = vadd.f32 %v1113, %v1753
      %v1883 = vadd.f32 %v946, %v1586
      %v1884 = vadd.f32 %v948, %v1588
      %v1885 = vadd.f32 %v1117, %v1757
      %v1886 = vadd.f32 %v1119, %v1759
      %v1887 = vadd.f32 %v950, %v1590
      %v1888 = vadd.f32 %v952, %v1592
      %v1889 = vadd.f32 %v1121, %v1761
      %v1890 = vadd.f32 %v1123, %v1763
      %v1891 = vadd.f32 %v956, %v1596
      %v1892 = vadd.f32 %v958, %v1598
      %v1893 = vadd.f32 %v1127, %v1767
      %v1894 = vadd.f32 %v1129, %v1769
      %v1895 = vadd.f32 %v960, %v1600
      %v1896 = vadd.f32 %v962, %v1602
      %v1897 = vadd.f32 %v1131, %v1771
      %v1898 = vadd.f32 %v1133, %v1773
      %v1899 = vadd.f32 %v966, %v1606
      %v1900 = vadd.f32 %v968, %v1608
      %v1901 = vadd.f32 %v1137, %v1777
      %v1902 = vadd.f32 %v1139, %v1779
      %v1903 = vadd.f32 %v970, %v1610
      %v1904 = vadd.f32 %v972, %v1612
      %v1905 = vadd.f32 %v1141, %v1781
      %v1906 = vadd.f32 %v1143, %v1783
      %v1907 = vadd.f32 %v976, %v1616
      %v1908 = vadd.f32 %v978, %v1618
      %v1909 = vadd.f32 %v1147, %v1787
      %v1910 = vadd.f32 %v1149, %v1789
      %v1911 = vadd.f32 %v980, %v1620
      %v1912 = vadd.f32 %v982, %v1622
      %v1913 = vadd.f32 %v1151, %v1791
      %v1914 = vadd.f32 %v1153, %v1793
      %v1915 = vadd.f32 %v986, %v1626
      %v1916 = vadd.f32 %v988, %v1628
      %v1917 = vadd.f32 %v1157, %v1797
      %v1918 = vadd.f32 %v1159, %v1799
      %v1919 = vadd.f32 %v990, %v1630
      %v1920 = vadd.f32 %v992, %v1632
      %v1921 = vadd.f32 %v1161, %v1801
      %v1922 = vadd.f32 %v1163, %v1803
      %v1923 = vadd.f32 %v996, %v1636
      %v1924 = vadd.f32 %v998, %v1638
      %v1925 = vadd.f32 %v1167, %v1807
      %v1926 = vadd.f32 %v1169, %v1809
      %v1927 = vadd.f32 %v1000, %v1640
      %v1928 = vadd.f32 %v1002, %v1642
      %v1929 = vadd.f32 %v1171, %v1811
      %v1930 = vadd.f32 %v1173, %v1813
      %v1931 = vadd.f32 %v1006, %v1646
      %v1932 = vadd.f32 %v1008, %v1648
      %v1933 = vadd.f32 %v1177, %v1817
      %v1934 = vadd.f32 %v1179, %v1819
      %v1935 = vadd.f32 %v1010, %v1650
      %v1936 = vadd.f32 %v1012, %v1652
      %v1937 = vadd.f32 %v1181, %v1821
      %v1938 = vadd.f32 %v1183, %v1823
      %v1939 = vadd.f32 %v1016, %v1656
      %v1940 = vadd.f32 %v1018, %v1658
      %v1941 = vadd.f32 %v1187, %v1827
      %v1942 = vadd.f32 %v1189, %v1829
      %v1943 = vadd.f32 %v1020, %v1660
      %v1944 = vadd.f32 %v1022, %v1662
      %v1945 = vadd.f32 %v1191, %v1831
      %v1946 = vadd.f32 %v1193, %v1833
      %v1947 = vadd.f32 %v1026, %v1666
      %v1948 = vadd.f32 %v1028, %v1668
      %v1949 = vadd.f32 %v1197, %v1837
      %v1950 = vadd.f32 %v1199, %v1839
      %v1951 = vld [vmem:[%s165 + $0x8] sm:$0xf]
      %v1952 = vld [vmem:[%s165 + $0xc] sm:$0xf]
      %v1953 = vld [vmem:[%s165 + $0x10] sm:$0xf]
      %v1954 = vld [vmem:[%s165 + $0x14] sm:$0xf]
      %v1955 = vld [vmem:[%s165 + $0x18] sm:$0xf]
      %v1956 = vld [vmem:[%s165 + $0x1c] sm:$0xf]
      %v1957 = vld [vmem:[%s165 + $0x20] sm:$0xf]
      %v1958 = vld [vmem:[%s165 + $0x24] sm:$0xf]
      %v1959 = vld [vmem:[%s165 + $0x28] sm:$0xf]
      %v1960 = vld [vmem:[%s165 + $0x2c] sm:$0xf]
      %v1961 = vld [vmem:[%s165 + $0x30] sm:$0xf]
      %v1962 = vld [vmem:[%s165 + $0x34] sm:$0xf]
      %v1963 = vld [vmem:[%s165 + $0x38] sm:$0xf]
      %v1964 = vld [vmem:[%s165 + $0x3c] sm:$0xf]
      %v1965 = vld [vmem:[%s165 + $0x40] sm:$0xf]
      %v1966 = vld [vmem:[%s165 + $0x44] sm:$0xf]
      %v1967 = vld [vmem:[%s165 + $0x48] sm:$0xf]
      %v1968 = vld [vmem:[%s165 + $0x4c] sm:$0xf]
      %v1969 = vld [vmem:[%s165 + $0x50] sm:$0xf]
      %v1970 = vld [vmem:[%s165 + $0x54] sm:$0xf]
      %v1971 = vld [vmem:[%s165 + $0x58] sm:$0xf]
      %v1972 = vld [vmem:[%s165 + $0x5c] sm:$0xf]
      %v1973 = vld [vmem:[%s165 + $0x60] sm:$0xf]
      %v1974 = vld [vmem:[%s165 + $0x64] sm:$0xf]
      %v1975 = vld [vmem:[%s165 + $0x68] sm:$0xf]
      %v1976 = vld [vmem:[%s165 + $0x6c] sm:$0xf]
      %v1977 = vld [vmem:[%s165 + $0x70] sm:$0x1]
      %s1978 = scalar_lea.vmem %s1, 24
      %v1979 = vld [vmem:[%s1978] sm:$0xff]
      %v2007 = vunpack.c.l.b16 %v1951
      %v2008 = vunpack.c.l.b16 %v1952
      %v2009 = vunpack.c.l.b16 %v1953
      %v2010 = vunpack.c.l.b16 %v1954
      %v2011 = vunpack.c.l.b16 %v1955
      %v2012 = vunpack.c.l.b16 %v1956
      %v2013 = vunpack.c.l.b16 %v1957
      %v2014 = vunpack.c.l.b16 %v1958
      %v2015 = vunpack.c.l.b16 %v1959
      %v2016 = vunpack.c.l.b16 %v1960
      %v2017 = vunpack.c.l.b16 %v1961
      %v2018 = vunpack.c.l.b16 %v1962
      %v2019 = vunpack.c.l.b16 %v1963
      %v2020 = vunpack.c.l.b16 %v1964
      %v2021 = vunpack.c.l.b16 %v1965
      %v2022 = vunpack.c.l.b16 %v1966
      %v2023 = vunpack.c.l.b16 %v1967
      %v2024 = vunpack.c.l.b16 %v1968
      %v2025 = vunpack.c.l.b16 %v1969
      %v2026 = vunpack.c.l.b16 %v1970
      %v2027 = vunpack.c.l.b16 %v1971
      %v2028 = vunpack.c.l.b16 %v1972
      %v2029 = vunpack.c.l.b16 %v1973
      %v2030 = vunpack.c.l.b16 %v1974
      %v2031 = vunpack.c.l.b16 %v1975
      %v2032 = vunpack.c.l.b16 %v1976
      %v2033 = vunpack.c.l.b16 %v1977
      %v2034 = vpack.c.b16 %v2008, %v2007
      %v2035 = vpack.c.b16 %v2010, %v2009
      %v2036 = vpack.c.b16 %v2012, %v2011
      %v2037 = vpack.c.b16 %v2014, %v2013
      %v2038 = vpack.c.b16 %v2016, %v2015
      %v2039 = vpack.c.b16 %v2018, %v2017
      %v2040 = vpack.c.b16 %v2020, %v2019
      %v2041 = vpack.c.b16 %v2022, %v2021
      %v2042 = vpack.c.b16 %v2024, %v2023
      %v2043 = vpack.c.b16 %v2026, %v2025
      %v2044 = vpack.c.b16 %v2028, %v2027
      %v2045 = vpack.c.b16 %v2030, %v2029
      %v2046 = vpack.c.b16 %v2032, %v2031
      %v2047 = vpack.c.b16 %v2033, %v2033
      %v2049 = vcombine.high %v1979, %v1979
      %v2051 = vunpack.c.l.s4 1983009808
      %v2052 = vunpack.c.0.s8 %v2051
      %v2053 = vlaneseq
      %v2054 = vshrl.u32 %v2053, 7
      %v2055 = vsub.s32 %v2052, %v2054
      %v2056 = vrot.slane %v1979, %v2055
      %v2058 = vunpack.c.l.s4 1983009808
      %v2059 = vunpack.c.0.s8 %v2058
      %v2060 = vlaneseq
      %v2061 = vshrl.u32 %v2060, 7
      %v2062 = vsub.s32 %v2059, %v2061
      %v2063 = vrot.slane %v2049, %v2062
      %v2064 = vcombine.high %v2056, %v2056
      %v2065 = vcombine.high %v2063, %v2063
      %v2067 = vsel %vm401, %v2034, 0
      %v2070 = vsel %vm401, %v2035, 0
      %v2073 = vsel %vm401, %v2036, 0
      %v2076 = vsel %vm401, %v2037, 0
      %v2079 = vsel %vm401, %v2038, 0
      %v2082 = vsel %vm401, %v2039, 0
      %v2085 = vsel %vm401, %v2040, 0
      %v2088 = vsel %vm401, %v2041, 0
      %v2091 = vsel %vm401, %v2042, 0
      %v2094 = vsel %vm401, %v2043, 0
      %v2097 = vsel %vm401, %v2044, 0
      %v2100 = vsel %vm401, %v2045, 0
      %v2103 = vsel %vm401, %v2046, 0
      %v2106 = vsel %vm401, %v2047, 0
      %v2109 = vsel %vm444, %v2056, 0
      %v2112 = vsel %vm444, %v2064, 0
      %v2115 = vsel %vm444, %v2063, 0
      %v2118 = vsel %vm444, %v2065, 0
      %2120 = vmatprep.subr.bf16.mxu0 %v2112
      %2121 = vmatpush1.bf16.msra.mxu0 %v2109
      %2122 = vmatprep.subr.bf16.mxu0 0
      %2123 = vmatpush1.bf16.msra.mxu0 0
      %2124 = vmatprep.subr.bf16.mxu0 0
      %2125 = vmatpush1.bf16.msra.mxu0 0
      %2126 = vmatprep.subr.bf16.mxu0 0
      %2127 = vmatpush1.bf16.msra.mxu0 0
      %2128 = vmatprep.subr.bf16.mxu0 0
      %2129 = vmatpush1.bf16.msra.mxu0 0
      %2130 = vmatprep.subr.bf16.mxu0 0
      %2131 = vmatpush1.bf16.msra.mxu0 0
      %2132 = vmatprep.subr.bf16.mxu0 0
      %2133 = vmatpush1.bf16.msra.mxu0 0
      %2134 = vmatprep.subr.bf16.mxu0 0
      %2135 = vmatpush1.bf16.msra.mxu0 0
      %2136 = vmatprep.subr.bf16.mxu0 0
      %2137 = vmatpush1.bf16.msra.mxu0 0
      %2138 = vmatprep.subr.bf16.mxu0 0
      %2139 = vmatpush1.bf16.msra.mxu0 0
      %2140 = vmatprep.subr.bf16.mxu0 0
      %2141 = vmatpush1.bf16.msra.mxu0 0
      %2142 = vmatprep.subr.bf16.mxu0 0
      %2143 = vmatpush1.bf16.msra.mxu0 0
      %2144 = vmatprep.subr.bf16.mxu0 0
      %2145 = vmatpush1.bf16.msra.mxu0 0
      %2146 = vmatprep.subr.bf16.mxu0 0
      %2147 = vmatpush1.bf16.msra.mxu0 0
      %2148 = vmatprep.subr.bf16.mxu0 0
      %2149 = vmatpush1.bf16.msra.mxu0 0
      %2150 = vmatprep.subr.bf16.mxu0 0
      %2151 = vmatpush1.bf16.msra.mxu0 0
      %2152 = vmatprep.mubr.bf16.mxu0 0
      %2153 = vmatmul.mubr.bf16.gmra.mrb[0].mxu0 %v2067
      %v2154 = vpop.f32.mrb[0].mxu0
      %v2155 = vadd.f32 0.0, %v2154
      %v2156 = vpop.f32.mrb[0].mxu0
      %v2157 = vadd.f32 0.0, %v2156
      %v2158 = vpop.f32.mrb[0].mxu0
      %v2159 = vadd.f32 0.0, %v2158
      %v2160 = vpop.f32.mrb[0].mxu0
      %v2161 = vadd.f32 0.0, %v2160
      %2162 = vmatprep.mubr.bf16.mxu0 0
      %2163 = vmatmul.mubr.bf16.gmra.mrb[0].mxu0 %v2070
      %v2164 = vpop.f32.mrb[0].mxu0
      %v2165 = vadd.f32 0.0, %v2164
      %v2166 = vpop.f32.mrb[0].mxu0
      %v2167 = vadd.f32 0.0, %v2166
      %v2168 = vpop.f32.mrb[0].mxu0
      %v2169 = vadd.f32 0.0, %v2168
      %v2170 = vpop.f32.mrb[0].mxu0
      %v2171 = vadd.f32 0.0, %v2170
      %2172 = vmatprep.mubr.bf16.mxu0 0
      %2173 = vmatmul.mubr.bf16.gmra.mrb[0].mxu0 %v2073
      %v2174 = vpop.f32.mrb[0].mxu0
      %v2175 = vadd.f32 0.0, %v2174
      %v2176 = vpop.f32.mrb[0].mxu0
      %v2177 = vadd.f32 0.0, %v2176
      %v2178 = vpop.f32.mrb[0].mxu0
      %v2179 = vadd.f32 0.0, %v2178
      %v2180 = vpop.f32.mrb[0].mxu0
      %v2181 = vadd.f32 0.0, %v2180
      %2182 = vmatprep.mubr.bf16.mxu0 0
      %2183 = vmatmul.mubr.bf16.gmra.mrb[0].mxu0 %v2076
      %v2184 = vpop.f32.mrb[0].mxu0
      %v2185 = vadd.f32 0.0, %v2184
      %v2186 = vpop.f32.mrb[0].mxu0
      %v2187 = vadd.f32 0.0, %v2186
      %v2188 = vpop.f32.mrb[0].mxu0
      %v2189 = vadd.f32 0.0, %v2188
      %v2190 = vpop.f32.mrb[0].mxu0
      %v2191 = vadd.f32 0.0, %v2190
      %2192 = vmatprep.mubr.bf16.mxu0 0
      %2193 = vmatmul.mubr.bf16.gmra.mrb[0].mxu0 %v2079
      %v2194 = vpop.f32.mrb[0].mxu0
      %v2195 = vadd.f32 0.0, %v2194
      %v2196 = vpop.f32.mrb[0].mxu0
      %v2197 = vadd.f32 0.0, %v2196
      %v2198 = vpop.f32.mrb[0].mxu0
      %v2199 = vadd.f32 0.0, %v2198
      %v2200 = vpop.f32.mrb[0].mxu0
      %v2201 = vadd.f32 0.0, %v2200
      %2202 = vmatprep.mubr.bf16.mxu0 0
      %2203 = vmatmul.mubr.bf16.gmra.mrb[0].mxu0 %v2082
      %v2204 = vpop.f32.mrb[0].mxu0
      %v2205 = vadd.f32 0.0, %v2204
      %v2206 = vpop.f32.mrb[0].mxu0
      %v2207 = vadd.f32 0.0, %v2206
      %v2208 = vpop.f32.mrb[0].mxu0
      %v2209 = vadd.f32 0.0, %v2208
      %v2210 = vpop.f32.mrb[0].mxu0
      %v2211 = vadd.f32 0.0, %v2210
      %2212 = vmatprep.mubr.bf16.mxu0 0
      %2213 = vmatmul.mubr.bf16.gmra.mrb[0].mxu0 %v2085
      %v2214 = vpop.f32.mrb[0].mxu0
      %v2215 = vadd.f32 0.0, %v2214
      %v2216 = vpop.f32.mrb[0].mxu0
      %v2217 = vadd.f32 0.0, %v2216
      %v2218 = vpop.f32.mrb[0].mxu0
      %v2219 = vadd.f32 0.0, %v2218
      %v2220 = vpop.f32.mrb[0].mxu0
      %v2221 = vadd.f32 0.0, %v2220
      %2222 = vmatprep.mubr.bf16.mxu0 0
      %2223 = vmatmul.mubr.bf16.gmra.mrb[0].mxu0 %v2088
      %v2224 = vpop.f32.mrb[0].mxu0
      %v2225 = vadd.f32 0.0, %v2224
      %v2226 = vpop.f32.mrb[0].mxu0
      %v2227 = vadd.f32 0.0, %v2226
      %v2228 = vpop.f32.mrb[0].mxu0
      %v2229 = vadd.f32 0.0, %v2228
      %v2230 = vpop.f32.mrb[0].mxu0
      %v2231 = vadd.f32 0.0, %v2230
      %2232 = vmatprep.mubr.bf16.mxu0 0
      %2233 = vmatmul.mubr.bf16.gmra.mrb[0].mxu0 %v2091
      %v2234 = vpop.f32.mrb[0].mxu0
      %v2235 = vadd.f32 0.0, %v2234
      %v2236 = vpop.f32.mrb[0].mxu0
      %v2237 = vadd.f32 0.0, %v2236
      %v2238 = vpop.f32.mrb[0].mxu0
      %v2239 = vadd.f32 0.0, %v2238
      %v2240 = vpop.f32.mrb[0].mxu0
      %v2241 = vadd.f32 0.0, %v2240
      %2242 = vmatprep.mubr.bf16.mxu0 0
      %2243 = vmatmul.mubr.bf16.gmra.mrb[0].mxu0 %v2094
      %v2244 = vpop.f32.mrb[0].mxu0
      %v2245 = vadd.f32 0.0, %v2244
      %v2246 = vpop.f32.mrb[0].mxu0
      %v2247 = vadd.f32 0.0, %v2246
      %v2248 = vpop.f32.mrb[0].mxu0
      %v2249 = vadd.f32 0.0, %v2248
      %v2250 = vpop.f32.mrb[0].mxu0
      %v2251 = vadd.f32 0.0, %v2250
      %2252 = vmatprep.mubr.bf16.mxu0 0
      %2253 = vmatmul.mubr.bf16.gmra.mrb[0].mxu0 %v2097
      %v2254 = vpop.f32.mrb[0].mxu0
      %v2255 = vadd.f32 0.0, %v2254
      %v2256 = vpop.f32.mrb[0].mxu0
      %v2257 = vadd.f32 0.0, %v2256
      %v2258 = vpop.f32.mrb[0].mxu0
      %v2259 = vadd.f32 0.0, %v2258
      %v2260 = vpop.f32.mrb[0].mxu0
      %v2261 = vadd.f32 0.0, %v2260
      %2262 = vmatprep.mubr.bf16.mxu0 0
      %2263 = vmatmul.mubr.bf16.gmra.mrb[0].mxu0 %v2100
      %v2264 = vpop.f32.mrb[0].mxu0
      %v2265 = vadd.f32 0.0, %v2264
      %v2266 = vpop.f32.mrb[0].mxu0
      %v2267 = vadd.f32 0.0, %v2266
      %v2268 = vpop.f32.mrb[0].mxu0
      %v2269 = vadd.f32 0.0, %v2268
      %v2270 = vpop.f32.mrb[0].mxu0
      %v2271 = vadd.f32 0.0, %v2270
      %2272 = vmatprep.mubr.bf16.mxu0 0
      %2273 = vmatmul.mubr.bf16.gmra.mrb[0].mxu0 %v2103
      %v2274 = vpop.f32.mrb[0].mxu0
      %v2275 = vadd.f32 0.0, %v2274
      %v2276 = vpop.f32.mrb[0].mxu0
      %v2277 = vadd.f32 0.0, %v2276
      %v2278 = vpop.f32.mrb[0].mxu0
      %v2279 = vadd.f32 0.0, %v2278
      %v2280 = vpop.f32.mrb[0].mxu0
      %v2281 = vadd.f32 0.0, %v2280
      %2282 = vmatprep.mubr.bf16.mxu0 0
      %2283 = vmatmul.mubr.bf16.gmra.mrb[0].mxu0 %v2106
      %v2284 = vpop.f32.mrb[0].mxu0
      %v2285 = vadd.f32 0.0, %v2284
      %v2286 = vpop.f32.mrb[0].mxu0
      %v2287 = vadd.f32 0.0, %v2286
      %v2288 = vpop.f32.mrb[0].mxu0
      %v2289 = vpop.f32.mrb[0].mxu0
      %2290 = vdwg.mxu0
      %2291 = vmatprep.subr.bf16.mxu0 %v2118
      %2292 = vmatpush1.bf16.msra.mxu0 %v2115
      %2293 = vmatprep.subr.bf16.mxu0 0
      %2294 = vmatpush1.bf16.msra.mxu0 0
      %2295 = vmatprep.subr.bf16.mxu0 0
      %2296 = vmatpush1.bf16.msra.mxu0 0
      %2297 = vmatprep.subr.bf16.mxu0 0
      %2298 = vmatpush1.bf16.msra.mxu0 0
      %2299 = vmatprep.subr.bf16.mxu0 0
      %2300 = vmatpush1.bf16.msra.mxu0 0
      %2301 = vmatprep.subr.bf16.mxu0 0
      %2302 = vmatpush1.bf16.msra.mxu0 0
      %2303 = vmatprep.subr.bf16.mxu0 0
      %2304 = vmatpush1.bf16.msra.mxu0 0
      %2305 = vmatprep.subr.bf16.mxu0 0
      %2306 = vmatpush1.bf16.msra.mxu0 0
      %2307 = vmatprep.subr.bf16.mxu0 0
      %2308 = vmatpush1.bf16.msra.mxu0 0
      %2309 = vmatprep.subr.bf16.mxu0 0
      %2310 = vmatpush1.bf16.msra.mxu0 0
      %2311 = vmatprep.subr.bf16.mxu0 0
      %2312 = vmatpush1.bf16.msra.mxu0 0
      %2313 = vmatprep.subr.bf16.mxu0 0
      %2314 = vmatpush1.bf16.msra.mxu0 0
      %2315 = vmatprep.subr.bf16.mxu0 0
      %2316 = vmatpush1.bf16.msra.mxu0 0
      %2317 = vmatprep.subr.bf16.mxu0 0
      %2318 = vmatpush1.bf16.msra.mxu0 0
      %2319 = vmatprep.subr.bf16.mxu0 0
      %2320 = vmatpush1.bf16.msra.mxu0 0
      %2321 = vmatprep.subr.bf16.mxu0 0
      %2322 = vmatpush1.bf16.msra.mxu0 0
      %2323 = vmatprep.mubr.bf16.mxu0 0
      %2324 = vmatmul.mubr.bf16.gmra.mrb[0].mxu0 %v2067
      %v2325 = vpop.f32.mrb[0].mxu0
      %v2326 = vadd.f32 0.0, %v2325
      %v2327 = vpop.f32.mrb[0].mxu0
      %v2328 = vadd.f32 0.0, %v2327
      %v2329 = vpop.f32.mrb[0].mxu0
      %v2330 = vadd.f32 0.0, %v2329
      %v2331 = vpop.f32.mrb[0].mxu0
      %v2332 = vadd.f32 0.0, %v2331
      %2333 = vmatprep.mubr.bf16.mxu0 0
      %2334 = vmatmul.mubr.bf16.gmra.mrb[0].mxu0 %v2070
      %v2335 = vpop.f32.mrb[0].mxu0
      %v2336 = vadd.f32 0.0, %v2335
      %v2337 = vpop.f32.mrb[0].mxu0
      %v2338 = vadd.f32 0.0, %v2337
      %v2339 = vpop.f32.mrb[0].mxu0
      %v2340 = vadd.f32 0.0, %v2339
      %v2341 = vpop.f32.mrb[0].mxu0
      %v2342 = vadd.f32 0.0, %v2341
      %2343 = vmatprep.mubr.bf16.mxu0 0
      %2344 = vmatmul.mubr.bf16.gmra.mrb[0].mxu0 %v2073
      %v2345 = vpop.f32.mrb[0].mxu0
      %v2346 = vadd.f32 0.0, %v2345
      %v2347 = vpop.f32.mrb[0].mxu0
      %v2348 = vadd.f32 0.0, %v2347
      %v2349 = vpop.f32.mrb[0].mxu0
      %v2350 = vadd.f32 0.0, %v2349
      %v2351 = vpop.f32.mrb[0].mxu0
      %v2352 = vadd.f32 0.0, %v2351
      %2353 = vmatprep.mubr.bf16.mxu0 0
      %2354 = vmatmul.mubr.bf16.gmra.mrb[0].mxu0 %v2076
      %v2355 = vpop.f32.mrb[0].mxu0
      %v2356 = vadd.f32 0.0, %v2355
      %v2357 = vpop.f32.mrb[0].mxu0
      %v2358 = vadd.f32 0.0, %v2357
      %v2359 = vpop.f32.mrb[0].mxu0
      %v2360 = vadd.f32 0.0, %v2359
      %v2361 = vpop.f32.mrb[0].mxu0
      %v2362 = vadd.f32 0.0, %v2361
      %2363 = vmatprep.mubr.bf16.mxu0 0
      %2364 = vmatmul.mubr.bf16.gmra.mrb[0].mxu0 %v2079
      %v2365 = vpop.f32.mrb[0].mxu0
      %v2366 = vadd.f32 0.0, %v2365
      %v2367 = vpop.f32.mrb[0].mxu0
      %v2368 = vadd.f32 0.0, %v2367
      %v2369 = vpop.f32.mrb[0].mxu0
      %v2370 = vadd.f32 0.0, %v2369
      %v2371 = vpop.f32.mrb[0].mxu0
      %v2372 = vadd.f32 0.0, %v2371
      %2373 = vmatprep.mubr.bf16.mxu0 0
      %2374 = vmatmul.mubr.bf16.gmra.mrb[0].mxu0 %v2082
      %v2375 = vpop.f32.mrb[0].mxu0
      %v2376 = vadd.f32 0.0, %v2375
      %v2377 = vpop.f32.mrb[0].mxu0
      %v2378 = vadd.f32 0.0, %v2377
      %v2379 = vpop.f32.mrb[0].mxu0
      %v2380 = vadd.f32 0.0, %v2379
      %v2381 = vpop.f32.mrb[0].mxu0
      %v2382 = vadd.f32 0.0, %v2381
      %2383 = vmatprep.mubr.bf16.mxu0 0
      %2384 = vmatmul.mubr.bf16.gmra.mrb[0].mxu0 %v2085
      %v2385 = vpop.f32.mrb[0].mxu0
      %v2386 = vadd.f32 0.0, %v2385
      %v2387 = vpop.f32.mrb[0].mxu0
      %v2388 = vadd.f32 0.0, %v2387
      %v2389 = vpop.f32.mrb[0].mxu0
      %v2390 = vadd.f32 0.0, %v2389
      %v2391 = vpop.f32.mrb[0].mxu0
      %v2392 = vadd.f32 0.0, %v2391
      %2393 = vmatprep.mubr.bf16.mxu0 0
      %2394 = vmatmul.mubr.bf16.gmra.mrb[0].mxu0 %v2088
      %v2395 = vpop.f32.mrb[0].mxu0
      %v2396 = vadd.f32 0.0, %v2395
      %v2397 = vpop.f32.mrb[0].mxu0
      %v2398 = vadd.f32 0.0, %v2397
      %v2399 = vpop.f32.mrb[0].mxu0
      %v2400 = vadd.f32 0.0, %v2399
      %v2401 = vpop.f32.mrb[0].mxu0
      %v2402 = vadd.f32 0.0, %v2401
      %2403 = vmatprep.mubr.bf16.mxu0 0
      %2404 = vmatmul.mubr.bf16.gmra.mrb[0].mxu0 %v2091
      %v2405 = vpop.f32.mrb[0].mxu0
      %v2406 = vadd.f32 0.0, %v2405
      %v2407 = vpop.f32.mrb[0].mxu0
      %v2408 = vadd.f32 0.0, %v2407
      %v2409 = vpop.f32.mrb[0].mxu0
      %v2410 = vadd.f32 0.0, %v2409
      %v2411 = vpop.f32.mrb[0].mxu0
      %v2412 = vadd.f32 0.0, %v2411
      %2413 = vmatprep.mubr.bf16.mxu0 0
      %2414 = vmatmul.mubr.bf16.gmra.mrb[0].mxu0 %v2094
      %v2415 = vpop.f32.mrb[0].mxu0
      %v2416 = vadd.f32 0.0, %v2415
      %v2417 = vpop.f32.mrb[0].mxu0
      %v2418 = vadd.f32 0.0, %v2417
      %v2419 = vpop.f32.mrb[0].mxu0
      %v2420 = vadd.f32 0.0, %v2419
      %v2421 = vpop.f32.mrb[0].mxu0
      %v2422 = vadd.f32 0.0, %v2421
      %2423 = vmatprep.mubr.bf16.mxu0 0
      %2424 = vmatmul.mubr.bf16.gmra.mrb[0].mxu0 %v2097
      %v2425 = vpop.f32.mrb[0].mxu0
      %v2426 = vadd.f32 0.0, %v2425
      %v2427 = vpop.f32.mrb[0].mxu0
      %v2428 = vadd.f32 0.0, %v2427
      %v2429 = vpop.f32.mrb[0].mxu0
      %v2430 = vadd.f32 0.0, %v2429
      %v2431 = vpop.f32.mrb[0].mxu0
      %v2432 = vadd.f32 0.0, %v2431
      %2433 = vmatprep.mubr.bf16.mxu0 0
      %2434 = vmatmul.mubr.bf16.gmra.mrb[0].mxu0 %v2100
      %v2435 = vpop.f32.mrb[0].mxu0
      %v2436 = vadd.f32 0.0, %v2435
      %v2437 = vpop.f32.mrb[0].mxu0
      %v2438 = vadd.f32 0.0, %v2437
      %v2439 = vpop.f32.mrb[0].mxu0
      %v2440 = vadd.f32 0.0, %v2439
      %v2441 = vpop.f32.mrb[0].mxu0
      %v2442 = vadd.f32 0.0, %v2441
      %2443 = vmatprep.mubr.bf16.mxu0 0
      %2444 = vmatmul.mubr.bf16.gmra.mrb[0].mxu0 %v2103
      %v2445 = vpop.f32.mrb[0].mxu0
      %v2446 = vadd.f32 0.0, %v2445
      %v2447 = vpop.f32.mrb[0].mxu0
      %v2448 = vadd.f32 0.0, %v2447
      %v2449 = vpop.f32.mrb[0].mxu0
      %v2450 = vadd.f32 0.0, %v2449
      %v2451 = vpop.f32.mrb[0].mxu0
      %v2452 = vadd.f32 0.0, %v2451
      %2453 = vmatprep.mubr.bf16.mxu0 0
      %2454 = vmatmul.mubr.bf16.gmra.mrb[0].mxu0 %v2106
      %v2455 = vpop.f32.mrb[0].mxu0
      %v2456 = vadd.f32 0.0, %v2455
      %v2457 = vpop.f32.mrb[0].mxu0
      %v2458 = vadd.f32 0.0, %v2457
      %v2459 = vpop.f32.mrb[0].mxu0
      %v2460 = vpop.f32.mrb[0].mxu0
      %2461 = vdwg.mxu0
      %v2462 = vadd.f32 %v1843, %v2155
      %v2463 = vadd.f32 %v1844, %v2157
      %v2464 = vadd.f32 %v1845, %v2326
      %v2465 = vadd.f32 %v1846, %v2328
      %v2466 = vadd.f32 %v1847, %v2159
      %v2467 = vadd.f32 %v1848, %v2161
      %v2468 = vadd.f32 %v1849, %v2330
      %v2469 = vadd.f32 %v1850, %v2332
      %v2470 = vadd.f32 %v1851, %v2165
      %v2471 = vadd.f32 %v1852, %v2167
      %v2472 = vadd.f32 %v1853, %v2336
      %v2473 = vadd.f32 %v1854, %v2338
      %v2474 = vadd.f32 %v1855, %v2169
      %v2475 = vadd.f32 %v1856, %v2171
      %v2476 = vadd.f32 %v1857, %v2340
      %v2477 = vadd.f32 %v1858, %v2342
      %v2478 = vadd.f32 %v1859, %v2175
      %v2479 = vadd.f32 %v1860, %v2177
      %v2480 = vadd.f32 %v1861, %v2346
      %v2481 = vadd.f32 %v1862, %v2348
      %v2482 = vadd.f32 %v1863, %v2179
      %v2483 = vadd.f32 %v1864, %v2181
      %v2484 = vadd.f32 %v1865, %v2350
      %v2485 = vadd.f32 %v1866, %v2352
      %v2486 = vadd.f32 %v1867, %v2185
      %v2487 = vadd.f32 %v1868, %v2187
      %v2488 = vadd.f32 %v1869, %v2356
      %v2489 = vadd.f32 %v1870, %v2358
      %v2490 = vadd.f32 %v1871, %v2189
      %v2491 = vadd.f32 %v1872, %v2191
      %v2492 = vadd.f32 %v1873, %v2360
      %v2493 = vadd.f32 %v1874, %v2362
      %v2494 = vadd.f32 %v1875, %v2195
      %v2495 = vadd.f32 %v1876, %v2197
      %v2496 = vadd.f32 %v1877, %v2366
      %v2497 = vadd.f32 %v1878, %v2368
      %v2498 = vadd.f32 %v1879, %v2199
      %v2499 = vadd.f32 %v1880, %v2201
      %v2500 = vadd.f32 %v1881, %v2370
      %v2501 = vadd.f32 %v1882, %v2372
      %v2502 = vadd.f32 %v1883, %v2205
      %v2503 = vadd.f32 %v1884, %v2207
      %v2504 = vadd.f32 %v1885, %v2376
      %v2505 = vadd.f32 %v1886, %v2378
      %v2506 = vadd.f32 %v1887, %v2209
      %v2507 = vadd.f32 %v1888, %v2211
      %v2508 = vadd.f32 %v1889, %v2380
      %v2509 = vadd.f32 %v1890, %v2382
      %v2510 = vadd.f32 %v1891, %v2215
      %v2511 = vadd.f32 %v1892, %v2217
      %v2512 = vadd.f32 %v1893, %v2386
      %v2513 = vadd.f32 %v1894, %v2388
      %v2514 = vadd.f32 %v1895, %v2219
      %v2515 = vadd.f32 %v1896, %v2221
      %v2516 = vadd.f32 %v1897, %v2390
      %v2517 = vadd.f32 %v1898, %v2392
      %v2518 = vadd.f32 %v1899, %v2225
      %v2519 = vadd.f32 %v1900, %v2227
      %v2520 = vadd.f32 %v1901, %v2396
      %v2521 = vadd.f32 %v1902, %v2398
      %v2522 = vadd.f32 %v1903, %v2229
      %v2523 = vadd.f32 %v1904, %v2231
      %v2524 = vadd.f32 %v1905, %v2400
      %v2525 = vadd.f32 %v1906, %v2402
      %v2526 = vadd.f32 %v1907, %v2235
      %v2527 = vadd.f32 %v1908, %v2237
      %v2528 = vadd.f32 %v1909, %v2406
      %v2529 = vadd.f32 %v1910, %v2408
      %v2530 = vadd.f32 %v1911, %v2239
      %v2531 = vadd.f32 %v1912, %v2241
      %v2532 = vadd.f32 %v1913, %v2410
      %v2533 = vadd.f32 %v1914, %v2412
      %v2534 = vadd.f32 %v1915, %v2245
      %v2535 = vadd.f32 %v1916, %v2247
      %v2536 = vadd.f32 %v1917, %v2416
      %v2537 = vadd.f32 %v1918, %v2418
      %v2538 = vadd.f32 %v1919, %v2249
      %v2539 = vadd.f32 %v1920, %v2251
      %v2540 = vadd.f32 %v1921, %v2420
      %v2541 = vadd.f32 %v1922, %v2422
      %v2542 = vadd.f32 %v1923, %v2255
      %v2543 = vadd.f32 %v1924, %v2257
      %v2544 = vadd.f32 %v1925, %v2426
      %v2545 = vadd.f32 %v1926, %v2428
      %v2546 = vadd.f32 %v1927, %v2259
      %v2547 = vadd.f32 %v1928, %v2261
      %v2548 = vadd.f32 %v1929, %v2430
      %v2549 = vadd.f32 %v1930, %v2432
      %v2550 = vadd.f32 %v1931, %v2265
      %v2551 = vadd.f32 %v1932, %v2267
      %v2552 = vadd.f32 %v1933, %v2436
      %v2553 = vadd.f32 %v1934, %v2438
      %v2554 = vadd.f32 %v1935, %v2269
      %v2555 = vadd.f32 %v1936, %v2271
      %v2556 = vadd.f32 %v1937, %v2440
      %v2557 = vadd.f32 %v1938, %v2442
      %v2558 = vadd.f32 %v1939, %v2275
      %v2559 = vadd.f32 %v1940, %v2277
      %v2560 = vadd.f32 %v1941, %v2446
      %v2561 = vadd.f32 %v1942, %v2448
      %v2562 = vadd.f32 %v1943, %v2279
      %v2563 = vadd.f32 %v1944, %v2281
      %v2564 = vadd.f32 %v1945, %v2450
      %v2565 = vadd.f32 %v1946, %v2452
      %v2566 = vadd.f32 %v1947, %v2285
      %v2567 = vadd.f32 %v1948, %v2287
      %v2568 = vadd.f32 %v1949, %v2456
      %v2569 = vadd.f32 %v1950, %v2458
      %v2570 = vmax.f32 %v2462, %v2463
      %v2571 = vmax.f32 %v2466, %v2467
      %v2572 = vmax.f32 %v2470, %v2471
      %v2573 = vmax.f32 %v2474, %v2475
      %v2574 = vmax.f32 %v2478, %v2479
      %v2575 = vmax.f32 %v2482, %v2483
      %v2576 = vmax.f32 %v2486, %v2487
      %v2577 = vmax.f32 %v2490, %v2491
      %v2578 = vmax.f32 %v2494, %v2495
      %v2579 = vmax.f32 %v2498, %v2499
      %v2580 = vmax.f32 %v2502, %v2503
      %v2581 = vmax.f32 %v2506, %v2507
      %v2582 = vmax.f32 %v2510, %v2511
      %v2583 = vmax.f32 %v2514, %v2515
      %v2584 = vmax.f32 %v2518, %v2519
      %v2585 = vmax.f32 %v2522, %v2523
      %v2586 = vmax.f32 %v2526, %v2527
      %v2587 = vmax.f32 %v2530, %v2531
      %v2588 = vmax.f32 %v2534, %v2535
      %v2589 = vmax.f32 %v2538, %v2539
      %v2590 = vmax.f32 %v2542, %v2543
      %v2591 = vmax.f32 %v2546, %v2547
      %v2592 = vmax.f32 %v2550, %v2551
      %v2593 = vmax.f32 %v2554, %v2555
      %v2594 = vmax.f32 %v2558, %v2559
      %v2595 = vmax.f32 %v2562, %v2563
      %v2596 = vmax.f32 %v2566, %v2567
      %v2597 = vmax.f32 %v2464, %v2465
      %v2598 = vmax.f32 %v2468, %v2469
      %v2599 = vmax.f32 %v2472, %v2473
      %v2600 = vmax.f32 %v2476, %v2477
      %v2601 = vmax.f32 %v2480, %v2481
      %v2602 = vmax.f32 %v2484, %v2485
      %v2603 = vmax.f32 %v2488, %v2489
      %v2604 = vmax.f32 %v2492, %v2493
      %v2605 = vmax.f32 %v2496, %v2497
      %v2606 = vmax.f32 %v2500, %v2501
      %v2607 = vmax.f32 %v2504, %v2505
      %v2608 = vmax.f32 %v2508, %v2509
      %v2609 = vmax.f32 %v2512, %v2513
      %v2610 = vmax.f32 %v2516, %v2517
      %v2611 = vmax.f32 %v2520, %v2521
      %v2612 = vmax.f32 %v2524, %v2525
      %v2613 = vmax.f32 %v2528, %v2529
      %v2614 = vmax.f32 %v2532, %v2533
      %v2615 = vmax.f32 %v2536, %v2537
      %v2616 = vmax.f32 %v2540, %v2541
      %v2617 = vmax.f32 %v2544, %v2545
      %v2618 = vmax.f32 %v2548, %v2549
      %v2619 = vmax.f32 %v2552, %v2553
      %v2620 = vmax.f32 %v2556, %v2557
      %v2621 = vmax.f32 %v2560, %v2561
      %v2622 = vmax.f32 %v2564, %v2565
      %v2623 = vmax.f32 %v2568, %v2569
      %v2624 = vmax.f32 %v2570, %v2597
      %v2625 = vmax.f32 %v2571, %v2598
      %v2626 = vmax.f32 %v2572, %v2599
      %v2627 = vmax.f32 %v2573, %v2600
      %v2628 = vmax.f32 %v2574, %v2601
      %v2629 = vmax.f32 %v2575, %v2602
      %v2630 = vmax.f32 %v2576, %v2603
      %v2631 = vmax.f32 %v2577, %v2604
      %v2632 = vmax.f32 %v2578, %v2605
      %v2633 = vmax.f32 %v2579, %v2606
      %v2634 = vmax.f32 %v2580, %v2607
      %v2635 = vmax.f32 %v2581, %v2608
      %v2636 = vmax.f32 %v2582, %v2609
      %v2637 = vmax.f32 %v2583, %v2610
      %v2638 = vmax.f32 %v2584, %v2611
      %v2639 = vmax.f32 %v2585, %v2612
      %v2640 = vmax.f32 %v2586, %v2613
      %v2641 = vmax.f32 %v2587, %v2614
      %v2642 = vmax.f32 %v2588, %v2615
      %v2643 = vmax.f32 %v2589, %v2616
      %v2644 = vmax.f32 %v2590, %v2617
      %v2645 = vmax.f32 %v2591, %v2618
      %v2646 = vmax.f32 %v2592, %v2619
      %v2647 = vmax.f32 %v2593, %v2620
      %v2648 = vmax.f32 %v2594, %v2621
      %v2649 = vmax.f32 %v2595, %v2622
      %v2650 = vmax.f32 %v2596, %v2623
      %v2651 = vld [vmem:[%s2] sm:$0x1]
      %v2653 = vlaneseq
      %v2654 = vshrl.u32 %v2653, 7
      %v2655 = vsub.s32 0, %v2654
      %v2656 = vrot.slane %v2651, %v2655
      %v2658 = vadd.f32 %v2624, %v2656
      %v2659 = vadd.f32 %v2625, %v2656
      %v2660 = vadd.f32 %v2626, %v2656
      %v2661 = vadd.f32 %v2627, %v2656
      %v2662 = vadd.f32 %v2628, %v2656
      %v2663 = vadd.f32 %v2629, %v2656
      %v2664 = vadd.f32 %v2630, %v2656
      %v2665 = vadd.f32 %v2631, %v2656
      %v2666 = vadd.f32 %v2632, %v2656
      %v2667 = vadd.f32 %v2633, %v2656
      %v2668 = vadd.f32 %v2634, %v2656
      %v2669 = vadd.f32 %v2635, %v2656
      %v2670 = vadd.f32 %v2636, %v2656
      %v2671 = vadd.f32 %v2637, %v2656
      %v2672 = vadd.f32 %v2638, %v2656
      %v2673 = vadd.f32 %v2639, %v2656
      %v2674 = vadd.f32 %v2640, %v2656
      %v2675 = vadd.f32 %v2641, %v2656
      %v2676 = vadd.f32 %v2642, %v2656
      %v2677 = vadd.f32 %v2643, %v2656
      %v2678 = vadd.f32 %v2644, %v2656
      %v2679 = vadd.f32 %v2645, %v2656
      %v2680 = vadd.f32 %v2646, %v2656
      %v2681 = vadd.f32 %v2647, %v2656
      %v2682 = vadd.f32 %v2648, %v2656
      %v2683 = vadd.f32 %v2649, %v2656
      %v2684 = vadd.f32 %v2650, %v2656
      %v2685 = vmax.f32 %v2658, 0.0
      %v2686 = vmax.f32 %v2659, 0.0
      %v2687 = vmax.f32 %v2660, 0.0
      %v2688 = vmax.f32 %v2661, 0.0
      %v2689 = vmax.f32 %v2662, 0.0
      %v2690 = vmax.f32 %v2663, 0.0
      %v2691 = vmax.f32 %v2664, 0.0
      %v2692 = vmax.f32 %v2665, 0.0
      %v2693 = vmax.f32 %v2666, 0.0
      %v2694 = vmax.f32 %v2667, 0.0
      %v2695 = vmax.f32 %v2668, 0.0
      %v2696 = vmax.f32 %v2669, 0.0
      %v2697 = vmax.f32 %v2670, 0.0
      %v2698 = vmax.f32 %v2671, 0.0
      %v2699 = vmax.f32 %v2672, 0.0
      %v2700 = vmax.f32 %v2673, 0.0
      %v2701 = vmax.f32 %v2674, 0.0
      %v2702 = vmax.f32 %v2675, 0.0
      %v2703 = vmax.f32 %v2676, 0.0
      %v2704 = vmax.f32 %v2677, 0.0
      %v2705 = vmax.f32 %v2678, 0.0
      %v2706 = vmax.f32 %v2679, 0.0
      %v2707 = vmax.f32 %v2680, 0.0
      %v2708 = vmax.f32 %v2681, 0.0
      %v2709 = vmax.f32 %v2682, 0.0
      %v2710 = vmax.f32 %v2683, 0.0
      %v2711 = vmax.f32 %v2684, 0.0
      %v2712 = vpack.c.bf16 %v2686, %v2685
      %v2713 = vpack.c.bf16 %v2688, %v2687
      %v2714 = vpack.c.bf16 %v2690, %v2689
      %v2715 = vpack.c.bf16 %v2692, %v2691
      %v2716 = vpack.c.bf16 %v2694, %v2693
      %v2717 = vpack.c.bf16 %v2696, %v2695
      %v2718 = vpack.c.bf16 %v2698, %v2697
      %v2719 = vpack.c.bf16 %v2700, %v2699
      %v2720 = vpack.c.bf16 %v2702, %v2701
      %v2721 = vpack.c.bf16 %v2704, %v2703
      %v2722 = vpack.c.bf16 %v2706, %v2705
      %v2723 = vpack.c.bf16 %v2708, %v2707
      %v2724 = vpack.c.bf16 %v2710, %v2709
      %v2725 = vpack.c.bf16 %v2711, %v2711
      %v2740 = vunpack.c.l.b16 %v2712
      %v2741 = vunpack.c.h.b16 %v2712
      %v2742 = vunpack.c.l.b16 %v2713
      %v2743 = vunpack.c.h.b16 %v2713
      %v2744 = vunpack.c.l.b16 %v2714
      %v2745 = vunpack.c.h.b16 %v2714
      %v2746 = vunpack.c.l.b16 %v2715
      %v2747 = vunpack.c.h.b16 %v2715
      %v2748 = vunpack.c.l.b16 %v2716
      %v2749 = vunpack.c.h.b16 %v2716
      %v2750 = vunpack.c.l.b16 %v2717
      %v2751 = vunpack.c.h.b16 %v2717
      %v2752 = vunpack.c.l.b16 %v2718
      %v2753 = vunpack.c.h.b16 %v2718
      %v2754 = vunpack.c.l.b16 %v2719
      %v2755 = vunpack.c.h.b16 %v2719
      %v2756 = vunpack.c.l.b16 %v2720
      %v2757 = vunpack.c.h.b16 %v2720
      %v2758 = vunpack.c.l.b16 %v2721
      %v2759 = vunpack.c.h.b16 %v2721
      %v2760 = vunpack.c.l.b16 %v2722
      %v2761 = vunpack.c.h.b16 %v2722
      %v2762 = vunpack.c.l.b16 %v2723
      %v2763 = vunpack.c.h.b16 %v2723
      %v2764 = vunpack.c.l.b16 %v2724
      %v2765 = vunpack.c.h.b16 %v2724
      %v2766 = vunpack.c.l.b16 %v2725
      %v2767 = vpack.c.b16 %v2740, %v2740
      %v2768 = vpack.c.b16 %v2741, %v2741
      %v2769 = vpack.c.b16 %v2742, %v2742
      %v2770 = vpack.c.b16 %v2743, %v2743
      %v2771 = vpack.c.b16 %v2744, %v2744
      %v2772 = vpack.c.b16 %v2745, %v2745
      %v2773 = vpack.c.b16 %v2746, %v2746
      %v2774 = vpack.c.b16 %v2747, %v2747
      %v2775 = vpack.c.b16 %v2748, %v2748
      %v2776 = vpack.c.b16 %v2749, %v2749
      %v2777 = vpack.c.b16 %v2750, %v2750
      %v2778 = vpack.c.b16 %v2751, %v2751
      %v2779 = vpack.c.b16 %v2752, %v2752
      %v2780 = vpack.c.b16 %v2753, %v2753
      %v2781 = vpack.c.b16 %v2754, %v2754
      %v2782 = vpack.c.b16 %v2755, %v2755
      %v2783 = vpack.c.b16 %v2756, %v2756
      %v2784 = vpack.c.b16 %v2757, %v2757
      %v2785 = vpack.c.b16 %v2758, %v2758
      %v2786 = vpack.c.b16 %v2759, %v2759
      %v2787 = vpack.c.b16 %v2760, %v2760
      %v2788 = vpack.c.b16 %v2761, %v2761
      %v2789 = vpack.c.b16 %v2762, %v2762
      %v2790 = vpack.c.b16 %v2763, %v2763
      %v2791 = vpack.c.b16 %v2764, %v2764
      %v2792 = vpack.c.b16 %v2765, %v2765
      %v2793 = vpack.c.b16 %v2766, %v2766
      %vm2821 = vcmask 125952
      %2822 = vst.msk [vmem:[%s170] sm:$0xf] %vm2821, %v2767
      %2823 = vst.msk [vmem:[%s170 + $0x4] sm:$0xf] %vm2821, %v2768
      %2824 = vst.msk [vmem:[%s170 + $0x8] sm:$0xf] %vm2821, %v2769
      %2825 = vst.msk [vmem:[%s170 + $0xc] sm:$0xf] %vm2821, %v2770
      %2826 = vst.msk [vmem:[%s170 + $0x10] sm:$0xf] %vm2821, %v2771
      %2827 = vst.msk [vmem:[%s170 + $0x14] sm:$0xf] %vm2821, %v2772
      %2828 = vst.msk [vmem:[%s170 + $0x18] sm:$0xf] %vm2821, %v2773
      %2829 = vst.msk [vmem:[%s170 + $0x1c] sm:$0xf] %vm2821, %v2774
      %2830 = vst.msk [vmem:[%s170 + $0x20] sm:$0xf] %vm2821, %v2775
      %2831 = vst.msk [vmem:[%s170 + $0x24] sm:$0xf] %vm2821, %v2776
      %2832 = vst.msk [vmem:[%s170 + $0x28] sm:$0xf] %vm2821, %v2777
      %2833 = vst.msk [vmem:[%s170 + $0x2c] sm:$0xf] %vm2821, %v2778
      %2834 = vst.msk [vmem:[%s170 + $0x30] sm:$0xf] %vm2821, %v2779
      %2835 = vst.msk [vmem:[%s170 + $0x34] sm:$0xf] %vm2821, %v2780
      %2836 = vst.msk [vmem:[%s170 + $0x38] sm:$0xf] %vm2821, %v2781
      %2837 = vst.msk [vmem:[%s170 + $0x3c] sm:$0xf] %vm2821, %v2782
      %2838 = vst.msk [vmem:[%s170 + $0x40] sm:$0xf] %vm2821, %v2783
      %2839 = vst.msk [vmem:[%s170 + $0x44] sm:$0xf] %vm2821, %v2784
      %2840 = vst.msk [vmem:[%s170 + $0x48] sm:$0xf] %vm2821, %v2785
      %2841 = vst.msk [vmem:[%s170 + $0x4c] sm:$0xf] %vm2821, %v2786
      %2842 = vst.msk [vmem:[%s170 + $0x50] sm:$0xf] %vm2821, %v2787
      %2843 = vst.msk [vmem:[%s170 + $0x54] sm:$0xf] %vm2821, %v2788
      %2844 = vst.msk [vmem:[%s170 + $0x58] sm:$0xf] %vm2821, %v2789
      %2845 = vst.msk [vmem:[%s170 + $0x5c] sm:$0xf] %vm2821, %v2790
      %2846 = vst.msk [vmem:[%s170 + $0x60] sm:$0xf] %vm2821, %v2791
      %2847 = vst.msk [vmem:[%s170 + $0x64] sm:$0xf] %vm2821, %v2792
      %vm2848 = vcmask 122880
      %2849 = vst.msk [vmem:[%s170 + $0x68] sm:$0x1] %vm2848, %v2793
      %p2850 = scmp.lt.s32.totalorder %s14, 1
      %s2851 = scalar_select %p2850, %s14, 1
      %s2852 = smul.addr %s2851, 27
      %s2853 = smul.addr %s2852, 4
      %s2854 = scalar_lea.vmem %s3, %s2853
      // Predicated region
      $region33: #{simple_cnn_forward.3} parent=31 // pred_check
        %p2855 = pneg %p100
      $region34: #{simple_cnn_forward.3} parent=31 // pred_check_branch
        %2857 = sbr.rel (%p2855) target = $region36
      $region35: #{simple_cnn_forward.3} parent=31 // pred_region
        _
      $region36: #{simple_cnn_forward.3} parent=31 // pred_fallthru
        _
    $region32: #{simple_cnn_forward.3} parent=5 // pred_fallthru
      _
    %p2858 = scmp.le.s32.totalorder 2, %s9
    // Predicated region
    $region37: #{simple_cnn_forward.3} parent=5 // pred_check
      %p2859 = pneg %p2858
    $region38: #{simple_cnn_forward.3} parent=5 // pred_check_branch
      %2861 = sbr.rel (%p2859) target = $region40
    $region39: #{simple_cnn_forward.3} parent=5 // pred_region
      %s2862 = ssub.s32 %s9, 2
      // Predicated region
      $region41: #{simple_cnn_forward.3} parent=39 // pred_check
        %p2863 = pneg %p106
      $region42: #{simple_cnn_forward.3} parent=39 // pred_check_branch
        %2865 = sbr.rel (%p2863) target = $region44
      $region43: #{simple_cnn_forward.3} parent=39 // pred_region
        %p2866 = scmp.lt.s32.totalorder %s15, 1
        %s2867 = scalar_select %p2866, %s15, 1
        %s2868 = smul.addr %s2867, 27
        %s2869 = smul.addr %s2868, 4
        %s2870 = scalar_lea.vmem %s3, %s2869
      $region44: #{simple_cnn_forward.3} parent=39 // pred_fallthru
        _
    $region40: #{simple_cnn_forward.3} parent=5 // pred_fallthru
      _
  $region6: #{simple_cnn_forward.3} parent=0 // loop_footer
    %s13 = sadd.s32 1, %s9
  $region7: #{simple_cnn_forward.3} parent=0 // loop_footer_branch
    %8 = sbr.rel target = $region3
  $region8: #{simple_cnn_forward.3} parent=0 // loop_exit
    _

// kernel: simple_cnn_forward.4
$region0: #{simple_cnn_forward.4}
  #allocation0 [shape = 'u32[]', space=smem, size = 0x4, offset = 0x4, fixed_abs, tag = 'smem constant byte address 0x4 - core index']
  #allocation1 [shape = 'u32[144,128]{1,0:T(1,128)}', space=vmem, size = 0x12000, scoped, tag = 'internal scratch']
  %s0 = inlined_call_operand.vmem [shape: bf16[2,72,64], index: 0, kind: input, shape index: {}]
  %s1 = inlined_call_operand.vmem [shape: bf16[4,64,512], index: 1, kind: input, shape index: {}]
  %s2 = inlined_call_operand.vmem [shape: f32[1,32], index: 2, kind: input, shape index: {}]
  %s3 = inlined_call_operand.vmem [shape: bf16[2,56,32], index: 3, kind: output, shape index: {}]
  %s4 = sld [smem:[#allocation0]]
  $region45: #{simple_cnn_forward.4} parent=0
    _
  %s6 = ssub.s32 1, %s4
  %s7 = scalar_select 0, %s6, %s4
  loop: start=0, step=1, limit=4
  $region2: #{simple_cnn_forward.4} parent=0 // loop_pre_header
    _
  $region3: #{simple_cnn_forward.4} parent=0 // loop_header
    %s9 = sphi 0, %s13
    %p10 = scmp.ge.s32.totalorder %s9, 4
    %s19 = sphi 0, %s21
    %s22 = sphi 0, %s19
    %s23 = sphi 0, %s22
    %s39 = sphi 0, %s23
    %s43 = sphi 0, %s43
    %s45 = sphi 0, %s43
    %s46 = sphi 0, %s45
    %s60 = sphi 0, %s46
    %s64 = sphi 0, %s64
    %s66 = sphi 0, %s64
    %s67 = sphi 0, %s66
    %s81 = sphi 0, %s67
    %s87 = sphi 0, %s89
    %s90 = sphi 0, %s87
    %s91 = sphi 0, %s90
    %s107 = sphi 0, %s91
  $region4: #{simple_cnn_forward.4} parent=0 // loop_header_branch
    %12 = sbr.rel (%p10) target = $region8
  $region5: #{simple_cnn_forward.4} parent=0 // loop_body
    %s14 = ssub.s32 %s9, 1
    %s15 = ssub.s32 %s9, 2
    %s16 = sadd.s32 %s9, 1
    %s17 = ssub.s32 %s9, %s16
    %p18 = scmp.eq.s32.totalorder %s17, 0
    %s20 = sadd.s32 %s19, 1
    %s21 = scalar_select %p18, %s19, %s20
    %p24 = pneg %p18
    %p25 = scmp.eq.s32.totalorder %s9, 1
    %p26 = por %p24, %p25
    %p27 = scmp.ne.s32.totalorder %s19, %s22
    %p28 = scmp.eq.s32.totalorder %s9, 0
    %p29 = por %p27, %p28
    %p30 = scmp.ne.s32.totalorder %s19, %s22
    %p31 = scmp.eq.s32.totalorder %s14, 1
    %p32 = por %p30, %p31
    %p33 = scmp.ne.s32.totalorder %s22, %s23
    %p34 = scmp.eq.s32.totalorder %s14, 0
    %p35 = por %p33, %p34
    %p36 = scmp.ne.s32.totalorder %s22, %s23
    %p37 = scmp.eq.s32.totalorder %s15, 1
    %p38 = por %p36, %p37
    %p40 = scmp.ne.s32.totalorder %s23, %s39
    %p41 = scmp.eq.s32.totalorder %s15, 0
    %p42 = por %p40, %p41
    %s44 = sadd.s32 %s43, 1
    %p47 = scmp.eq.s32.totalorder %s9, 1
    %p48 = scmp.ne.s32.totalorder %s43, %s45
    %p49 = scmp.eq.s32.totalorder %s9, 0
    %p50 = por %p48, %p49
    %p51 = scmp.ne.s32.totalorder %s43, %s45
    %p52 = scmp.eq.s32.totalorder %s14, 1
    %p53 = por %p51, %p52
    %p54 = scmp.ne.s32.totalorder %s45, %s46
    %p55 = scmp.eq.s32.totalorder %s14, 0
    %p56 = por %p54, %p55
    %p57 = scmp.ne.s32.totalorder %s45, %s46
    %p58 = scmp.eq.s32.totalorder %s15, 1
    %p59 = por %p57, %p58
    %p61 = scmp.ne.s32.totalorder %s46, %s60
    %p62 = scmp.eq.s32.totalorder %s15, 0
    %p63 = por %p61, %p62
    %s65 = sadd.s32 %s64, 1
    %p68 = scmp.eq.s32.totalorder %s9, 1
    %p69 = scmp.ne.s32.totalorder %s64, %s66
    %p70 = scmp.eq.s32.totalorder %s9, 0
    %p71 = por %p69, %p70
    %p72 = scmp.ne.s32.totalorder %s64, %s66
    %p73 = scmp.eq.s32.totalorder %s14, 1
    %p74 = por %p72, %p73
    %p75 = scmp.ne.s32.totalorder %s66, %s67
    %p76 = scmp.eq.s32.totalorder %s14, 0
    %p77 = por %p75, %p76
    %p78 = scmp.ne.s32.totalorder %s66, %s67
    %p79 = scmp.eq.s32.totalorder %s15, 1
    %p80 = por %p78, %p79
    %p82 = scmp.ne.s32.totalorder %s67, %s81
    %p83 = scmp.eq.s32.totalorder %s15, 0
    %p84 = por %p82, %p83
    %s85 = ssub.s32 %s9, %s16
    %p86 = scmp.eq.s32.totalorder %s85, 0
    %s88 = sadd.s32 %s87, 1
    %s89 = scalar_select %p86, %s87, %s88
    %p92 = pneg %p86
    %p93 = scmp.eq.s32.totalorder %s9, 1
    %p94 = por %p92, %p93
    %p95 = scmp.ne.s32.totalorder %s87, %s90
    %p96 = scmp.eq.s32.totalorder %s9, 0
    %p97 = por %p95, %p96
    %p98 = scmp.ne.s32.totalorder %s87, %s90
    %p99 = scmp.eq.s32.totalorder %s14, 1
    %p100 = por %p98, %p99
    %p101 = scmp.ne.s32.totalorder %s90, %s91
    %p102 = scmp.eq.s32.totalorder %s14, 0
    %p103 = por %p101, %p102
    %p104 = scmp.ne.s32.totalorder %s90, %s91
    %p105 = scmp.eq.s32.totalorder %s15, 1
    %p106 = por %p104, %p105
    %p108 = scmp.ne.s32.totalorder %s91, %s107
    %p109 = scmp.eq.s32.totalorder %s15, 0
    %p110 = por %p108, %p109
    %p111 = scmp.le.s32.totalorder 1, %s9
    %p112 = scmp.lt.s32.totalorder %s9, 3
    %p113 = pnand %p111, %p112
    %p114 = pneg %p113
    // Predicated region
    $region9: #{simple_cnn_forward.4} parent=5 // pred_check
      _
    $region10: #{simple_cnn_forward.4} parent=5 // pred_check_branch
      %116 = sbr.rel (%p113) target = $region12
    $region11: #{simple_cnn_forward.4} parent=5 // pred_region
      %s117 = ssub.s32 %s9, 1
      // Predicated region
      $region13: #{simple_cnn_forward.4} parent=11 // pred_check
        %p118 = pneg %p56
      $region14: #{simple_cnn_forward.4} parent=11 // pred_check_branch
        %120 = sbr.rel (%p118) target = $region16
      $region15: #{simple_cnn_forward.4} parent=11 // pred_region
        _
      $region16: #{simple_cnn_forward.4} parent=11 // pred_fallthru
        _
      // Predicated region
      $region17: #{simple_cnn_forward.4} parent=11 // pred_check
        %p121 = pneg %p77
      $region18: #{simple_cnn_forward.4} parent=11 // pred_check_branch
        %123 = sbr.rel (%p121) target = $region20
      $region19: #{simple_cnn_forward.4} parent=11 // pred_region
        _
      $region20: #{simple_cnn_forward.4} parent=11 // pred_fallthru
        _
    $region12: #{simple_cnn_forward.4} parent=5 // pred_fallthru
      _
    %p124 = scmp.lt.s32.totalorder %s9, 2
    // Predicated region
    $region21: #{simple_cnn_forward.4} parent=5 // pred_check
      %p125 = pneg %p124
    $region22: #{simple_cnn_forward.4} parent=5 // pred_check_branch
      %127 = sbr.rel (%p125) target = $region24
    $region23: #{simple_cnn_forward.4} parent=5 // pred_region
      // Predicated region
      $region25: #{simple_cnn_forward.4} parent=23 // pred_check
        %p128 = pneg %p29
      $region26: #{simple_cnn_forward.4} parent=23 // pred_check_branch
        %130 = sbr.rel (%p128) target = $region28
      $region27: #{simple_cnn_forward.4} parent=23 // pred_region
        %p131 = scmp.lt.s32.totalorder %s9, 1
        %s132 = scalar_select %p131, %s9, 1
        %s133 = smul.addr %s132, 9
        %s134 = smul.addr %s133, 4
        %s135 = scalar_lea.vmem %s0, %s134
      $region28: #{simple_cnn_forward.4} parent=23 // pred_fallthru
        _
    $region24: #{simple_cnn_forward.4} parent=5 // pred_fallthru
      _
    %p136 = scmp.le.s32.totalorder 1, %s9
    %p137 = scmp.lt.s32.totalorder %s9, 3
    %p138 = pnand %p136, %p137
    %p139 = pneg %p138
    // Predicated region
    $region29: #{simple_cnn_forward.4} parent=5 // pred_check
      _
    $region30: #{simple_cnn_forward.4} parent=5 // pred_check_branch
      %141 = sbr.rel (%p138) target = $region32
    $region31: #{simple_cnn_forward.4} parent=5 // pred_region
      %s142 = ssub.s32 %s9, 1
      %p143 = scmp.lt.s32.totalorder %s14, 1
      %s144 = scalar_select %p143, %s14, 1
      %s145 = smul.addr %s144, 9
      %s146 = smul.addr %s145, 4
      %s147 = scalar_lea.vmem %s0, %s146
      %p148 = pneg %p35
      %p149 = pneg %p32
      %p150 = pneg %p56
      %p151 = pneg %p53
      %p152 = pneg %p77
      %p153 = pneg %p74
      %p154 = pneg %p103
      %p155 = pneg %p100
      %p156 = scmp.lt.s32.totalorder %s14, 1
      %s157 = scalar_select %p156, %s14, 1
      %s158 = smul.addr %s157, 7
      %s159 = smul.addr %s158, 4
      %s160 = scalar_lea.vmem %s3, %s159
      %p161 = scmp.lt.s32.totalorder %s14, 1
      %s162 = scalar_select %p161, %s14, 1
      %s163 = smul.addr %s162, 9
      %s164 = smul.addr %s163, 4
      %s165 = scalar_lea.vmem %s0, %s164
      %p166 = scmp.lt.s32.totalorder %s14, 1
      %s167 = scalar_select %p166, %s14, 1
      %s168 = smul.addr %s167, 7
      %s169 = smul.addr %s168, 4
      %s170 = scalar_lea.vmem %s3, %s169
      %v172 = vld [vmem:[%s165] sm:$0xf]
      %v173 = vld [vmem:[%s165 + $0x4] sm:$0xf]
      %v174 = vld [vmem:[%s165 + $0x8] sm:$0xf]
      %v175 = vld [vmem:[%s165 + $0xc] sm:$0xf]
      %v176 = vld [vmem:[%s165 + $0x10] sm:$0xf]
      %v177 = vld [vmem:[%s165 + $0x14] sm:$0xf]
      %v178 = vld [vmem:[%s165 + $0x18] sm:$0xf]
      %v179 = vld [vmem:[%s1] sm:$0xff]
      %v180 = vld [vmem:[%s1 + $0x8] sm:$0xff]
      %v181 = vld [vmem:[%s1 + $0x10] sm:$0xff]
      %v182 = vld [vmem:[%s1 + $0x18] sm:$0xff]
      %v183 = vld [vmem:[%s1 + $0x20] sm:$0xff]
      %v184 = vld [vmem:[%s1 + $0x28] sm:$0xff]
      %v185 = vld [vmem:[%s1 + $0x30] sm:$0xff]
      %v186 = vld [vmem:[%s1 + $0x38] sm:$0xff]
      %v187 = vld [vmem:[%s1 + $0x40] sm:$0xff]
      %v188 = vld [vmem:[%s1 + $0x48] sm:$0xff]
      %v189 = vld [vmem:[%s1 + $0x50] sm:$0xff]
      %v190 = vld [vmem:[%s1 + $0x58] sm:$0xff]
      %v191 = vld [vmem:[%s1 + $0x60] sm:$0xff]
      %v192 = vld [vmem:[%s1 + $0x68] sm:$0xff]
      %v193 = vld [vmem:[%s1 + $0x70] sm:$0xff]
      %v194 = vld [vmem:[%s1 + $0x78] sm:$0xff]
      %v195 = vld [vmem:[%s165 + $0x1c] sm:$0x1]
      %s196 = scalar_lea.vmem %s1, 128
      %v197 = vld [vmem:[%s196] sm:$0xff]
      %v198 = vld [vmem:[%s196 + $0x8] sm:$0xff]
      %v199 = vld [vmem:[%s196 + $0x10] sm:$0xff]
      %v200 = vld [vmem:[%s196 + $0x18] sm:$0xff]
      %v201 = vld [vmem:[%s196 + $0x20] sm:$0xff]
      %v202 = vld [vmem:[%s196 + $0x28] sm:$0xff]
      %v203 = vld [vmem:[%s196 + $0x30] sm:$0xff]
      %v204 = vld [vmem:[%s196 + $0x38] sm:$0xff]
      %v205 = vld [vmem:[%s196 + $0x40] sm:$0xff]
      %v206 = vld [vmem:[%s196 + $0x48] sm:$0xff]
      %v207 = vld [vmem:[%s196 + $0x50] sm:$0xff]
      %v208 = vld [vmem:[%s196 + $0x58] sm:$0xff]
      %v209 = vld [vmem:[%s196 + $0x60] sm:$0xff]
      %v210 = vld [vmem:[%s196 + $0x68] sm:$0xff]
      %v211 = vld [vmem:[%s196 + $0x70] sm:$0xff]
      %v212 = vld [vmem:[%s196 + $0x78] sm:$0xff]
      %v221 = vunpack.c.l.b16 %v172
      %v222 = vunpack.c.l.b16 %v173
      %v223 = vunpack.c.l.b16 %v174
      %v224 = vunpack.c.l.b16 %v175
      %v225 = vunpack.c.l.b16 %v176
      %v226 = vunpack.c.l.b16 %v177
      %v227 = vunpack.c.l.b16 %v178
      %v228 = vunpack.c.l.b16 %v195
      %v229 = vpack.c.b16 %v222, %v221
      %v230 = vpack.c.b16 %v224, %v223
      %v231 = vpack.c.b16 %v226, %v225
      %v232 = vpack.c.b16 %v228, %v227
      %vm233 = vsmask.f32 7424
      %v235 = vshrl.u32 %v229, 16
      %v237 = vshll.u32 %v229, 16
      %v239 = vrot.slane %v237, 1
      %v240 = vor.u32 %v235, %v239
      %v242 = vshll.u32 %v230, 16
      %v244 = vrot.slane %v242, 1
      %v245 = vsel %vm233, %v240, %v244
      %v246 = vshrl.u32 %v230, 16
      %v248 = vor.u32 %v246, %v244
      %v250 = vshll.u32 %v231, 16
      %v252 = vrot.slane %v250, 1
      %v253 = vsel %vm233, %v248, %v252
      %v254 = vshrl.u32 %v231, 16
      %v256 = vor.u32 %v254, %v252
      %v258 = vshll.u32 %v232, 16
      %v260 = vrot.slane %v258, 1
      %v261 = vsel %vm233, %v256, %v260
      %v262 = vshrl.u32 %v232, 16
      %v264 = vor.u32 %v262, %v260
      %v281 = vunpack.c.l.b16 %v197
      %v282 = vunpack.c.h.b16 %v197
      %v283 = vunpack.c.l.b16 %v198
      %v284 = vunpack.c.h.b16 %v198
      %v285 = vunpack.c.l.b16 %v199
      %v286 = vunpack.c.h.b16 %v199
      %v287 = vunpack.c.l.b16 %v200
      %v288 = vunpack.c.h.b16 %v200
      %v289 = vunpack.c.l.b16 %v201
      %v290 = vunpack.c.h.b16 %v201
      %v291 = vunpack.c.l.b16 %v202
      %v292 = vunpack.c.h.b16 %v202
      %v293 = vunpack.c.l.b16 %v203
      %v294 = vunpack.c.h.b16 %v203
      %v295 = vunpack.c.l.b16 %v204
      %v296 = vunpack.c.h.b16 %v204
      %v297 = vunpack.c.l.b16 %v205
      %v298 = vunpack.c.h.b16 %v205
      %v299 = vunpack.c.l.b16 %v206
      %v300 = vunpack.c.h.b16 %v206
      %v301 = vunpack.c.l.b16 %v207
      %v302 = vunpack.c.h.b16 %v207
      %v303 = vunpack.c.l.b16 %v208
      %v304 = vunpack.c.h.b16 %v208
      %v305 = vunpack.c.l.b16 %v209
      %v306 = vunpack.c.h.b16 %v209
      %v307 = vunpack.c.l.b16 %v210
      %v308 = vunpack.c.h.b16 %v210
      %v309 = vunpack.c.l.b16 %v211
      %v310 = vunpack.c.h.b16 %v211
      %v311 = vunpack.c.l.b16 %v212
      %v312 = vunpack.c.h.b16 %v212
      %v313 = vpack.c.b16 %v285, %v281
      %v314 = vpack.c.b16 %v286, %v282
      %v315 = vpack.c.b16 %v287, %v283
      %v316 = vpack.c.b16 %v288, %v284
      %v317 = vpack.c.b16 %v293, %v289
      %v318 = vpack.c.b16 %v294, %v290
      %v319 = vpack.c.b16 %v295, %v291
      %v320 = vpack.c.b16 %v296, %v292
      %v321 = vpack.c.b16 %v301, %v297
      %v322 = vpack.c.b16 %v302, %v298
      %v323 = vpack.c.b16 %v303, %v299
      %v324 = vpack.c.b16 %v304, %v300
      %v325 = vpack.c.b16 %v309, %v305
      %v326 = vpack.c.b16 %v310, %v306
      %v327 = vpack.c.b16 %v311, %v307
      %v328 = vpack.c.b16 %v312, %v308
      %vm345 = vcmask 523264
      %v347 = vsel %vm345, %v245, 0
      %v350 = vsel %vm345, %v253, 0
      %v353 = vsel %vm345, %v261, 0
      %v356 = vsel %vm345, %v264, 0
      %358 = vmatprep.subr.bf16.mxu0 %v314
      %359 = vmatpush1.bf16.msra.mxu0 %v313
      %360 = vmatprep.subr.bf16.mxu0 %v318
      %361 = vmatpush1.bf16.msra.mxu0 %v317
      %362 = vmatprep.subr.bf16.mxu0 %v322
      %363 = vmatpush1.bf16.msra.mxu0 %v321
      %364 = vmatprep.subr.bf16.mxu0 %v326
      %365 = vmatpush1.bf16.msra.mxu0 %v325
      %366 = vmatprep.subr.bf16.mxu0 0
      %367 = vmatpush1.bf16.msra.mxu0 0
      %368 = vmatprep.subr.bf16.mxu0 0
      %369 = vmatpush1.bf16.msra.mxu0 0
      %370 = vmatprep.subr.bf16.mxu0 0
      %371 = vmatpush1.bf16.msra.mxu0 0
      %372 = vmatprep.subr.bf16.mxu0 0
      %373 = vmatpush1.bf16.msra.mxu0 0
      %374 = vmatprep.subr.bf16.mxu0 0
      %375 = vmatpush1.bf16.msra.mxu0 0
      %376 = vmatprep.subr.bf16.mxu0 0
      %377 = vmatpush1.bf16.msra.mxu0 0
      %378 = vmatprep.subr.bf16.mxu0 0
      %379 = vmatpush1.bf16.msra.mxu0 0
      %380 = vmatprep.subr.bf16.mxu0 0
      %381 = vmatpush1.bf16.msra.mxu0 0
      %382 = vmatprep.subr.bf16.mxu0 0
      %383 = vmatpush1.bf16.msra.mxu0 0
      %384 = vmatprep.subr.bf16.mxu0 0
      %385 = vmatpush1.bf16.msra.mxu0 0
      %386 = vmatprep.subr.bf16.mxu0 0
      %387 = vmatpush1.bf16.msra.mxu0 0
      %388 = vmatprep.subr.bf16.mxu0 0
      %389 = vmatpush1.bf16.msra.mxu0 0
      %390 = vmatprep.mubr.bf16.mxu0 0
      %391 = vmatmul.mubr.bf16.gmra.mrb[0].mxu0 %v347
      %v392 = vpop.f32.mrb[0].mxu0
      %v393 = vadd.f32 0.0, %v392
      %v394 = vpop.f32.mrb[0].mxu0
      %v395 = vadd.f32 0.0, %v394
      %v396 = vpop.f32.mrb[0].mxu0
      %v397 = vadd.f32 0.0, %v396
      %v398 = vpop.f32.mrb[0].mxu0
      %v399 = vadd.f32 0.0, %v398
      %400 = vmatprep.mubr.bf16.mxu0 0
      %401 = vmatmul.mubr.bf16.gmra.mrb[0].mxu0 %v350
      %v402 = vpop.f32.mrb[0].mxu0
      %v403 = vadd.f32 0.0, %v402
      %v404 = vpop.f32.mrb[0].mxu0
      %v405 = vadd.f32 0.0, %v404
      %v406 = vpop.f32.mrb[0].mxu0
      %v407 = vadd.f32 0.0, %v406
      %v408 = vpop.f32.mrb[0].mxu0
      %v409 = vadd.f32 0.0, %v408
      %410 = vmatprep.mubr.bf16.mxu0 0
      %411 = vmatmul.mubr.bf16.gmra.mrb[0].mxu0 %v353
      %v412 = vpop.f32.mrb[0].mxu0
      %v413 = vadd.f32 0.0, %v412
      %v414 = vpop.f32.mrb[0].mxu0
      %v415 = vadd.f32 0.0, %v414
      %v416 = vpop.f32.mrb[0].mxu0
      %v417 = vadd.f32 0.0, %v416
      %v418 = vpop.f32.mrb[0].mxu0
      %v419 = vadd.f32 0.0, %v418
      %420 = vmatprep.mubr.bf16.mxu0 0
      %421 = vmatmul.mubr.bf16.gmra.mrb[0].mxu0 %v356
      %v422 = vpop.f32.mrb[0].mxu0
      %v423 = vadd.f32 0.0, %v422
      %v424 = vpop.f32.mrb[0].mxu0
      %v425 = vadd.f32 0.0, %v424
      %v426 = vpop.f32.mrb[0].mxu0
      %v427 = vpop.f32.mrb[0].mxu0
      %428 = vdwg.mxu0
      %429 = vmatprep.subr.bf16.mxu0 %v316
      %430 = vmatpush1.bf16.msra.mxu0 %v315
      %431 = vmatprep.subr.bf16.mxu0 %v320
      %432 = vmatpush1.bf16.msra.mxu0 %v319
      %433 = vmatprep.subr.bf16.mxu0 %v324
      %434 = vmatpush1.bf16.msra.mxu0 %v323
      %435 = vmatprep.subr.bf16.mxu0 %v328
      %436 = vmatpush1.bf16.msra.mxu0 %v327
      %437 = vmatprep.subr.bf16.mxu0 0
      %438 = vmatpush1.bf16.msra.mxu0 0
      %439 = vmatprep.subr.bf16.mxu0 0
      %440 = vmatpush1.bf16.msra.mxu0 0
      %441 = vmatprep.subr.bf16.mxu0 0
      %442 = vmatpush1.bf16.msra.mxu0 0
      %443 = vmatprep.subr.bf16.mxu0 0
      %444 = vmatpush1.bf16.msra.mxu0 0
      %445 = vmatprep.subr.bf16.mxu0 0
      %446 = vmatpush1.bf16.msra.mxu0 0
      %447 = vmatprep.subr.bf16.mxu0 0
      %448 = vmatpush1.bf16.msra.mxu0 0
      %449 = vmatprep.subr.bf16.mxu0 0
      %450 = vmatpush1.bf16.msra.mxu0 0
      %451 = vmatprep.subr.bf16.mxu0 0
      %452 = vmatpush1.bf16.msra.mxu0 0
      %453 = vmatprep.subr.bf16.mxu0 0
      %454 = vmatpush1.bf16.msra.mxu0 0
      %455 = vmatprep.subr.bf16.mxu0 0
      %456 = vmatpush1.bf16.msra.mxu0 0
      %457 = vmatprep.subr.bf16.mxu0 0
      %458 = vmatpush1.bf16.msra.mxu0 0
      %459 = vmatprep.subr.bf16.mxu0 0
      %460 = vmatpush1.bf16.msra.mxu0 0
      %461 = vmatprep.mubr.bf16.mxu0 0
      %462 = vmatmul.mubr.bf16.gmra.mrb[0].mxu0 %v347
      %v463 = vpop.f32.mrb[0].mxu0
      %v464 = vadd.f32 0.0, %v463
      %v465 = vpop.f32.mrb[0].mxu0
      %v466 = vadd.f32 0.0, %v465
      %v467 = vpop.f32.mrb[0].mxu0
      %v468 = vadd.f32 0.0, %v467
      %v469 = vpop.f32.mrb[0].mxu0
      %v470 = vadd.f32 0.0, %v469
      %471 = vmatprep.mubr.bf16.mxu0 0
      %472 = vmatmul.mubr.bf16.gmra.mrb[0].mxu0 %v350
      %v473 = vpop.f32.mrb[0].mxu0
      %v474 = vadd.f32 0.0, %v473
      %v475 = vpop.f32.mrb[0].mxu0
      %v476 = vadd.f32 0.0, %v475
      %v477 = vpop.f32.mrb[0].mxu0
      %v478 = vadd.f32 0.0, %v477
      %v479 = vpop.f32.mrb[0].mxu0
      %v480 = vadd.f32 0.0, %v479
      %481 = vmatprep.mubr.bf16.mxu0 0
      %482 = vmatmul.mubr.bf16.gmra.mrb[0].mxu0 %v353
      %v483 = vpop.f32.mrb[0].mxu0
      %v484 = vadd.f32 0.0, %v483
      %v485 = vpop.f32.mrb[0].mxu0
      %v486 = vadd.f32 0.0, %v485
      %v487 = vpop.f32.mrb[0].mxu0
      %v488 = vadd.f32 0.0, %v487
      %v489 = vpop.f32.mrb[0].mxu0
      %v490 = vadd.f32 0.0, %v489
      %491 = vmatprep.mubr.bf16.mxu0 0
      %492 = vmatmul.mubr.bf16.gmra.mrb[0].mxu0 %v356
      %v493 = vpop.f32.mrb[0].mxu0
      %v494 = vadd.f32 0.0, %v493
      %v495 = vpop.f32.mrb[0].mxu0
      %v496 = vadd.f32 0.0, %v495
      %v497 = vpop.f32.mrb[0].mxu0
      %v498 = vpop.f32.mrb[0].mxu0
      %499 = vdwg.mxu0
      %v500 = vpack.c.b16 %v227, %v227
      %v517 = vunpack.c.l.b16 %v179
      %v518 = vunpack.c.h.b16 %v179
      %v519 = vunpack.c.l.b16 %v180
      %v520 = vunpack.c.h.b16 %v180
      %v521 = vunpack.c.l.b16 %v181
      %v522 = vunpack.c.h.b16 %v181
      %v523 = vunpack.c.l.b16 %v182
      %v524 = vunpack.c.h.b16 %v182
      %v525 = vunpack.c.l.b16 %v183
      %v526 = vunpack.c.h.b16 %v183
      %v527 = vunpack.c.l.b16 %v184
      %v528 = vunpack.c.h.b16 %v184
      %v529 = vunpack.c.l.b16 %v185
      %v530 = vunpack.c.h.b16 %v185
      %v531 = vunpack.c.l.b16 %v186
      %v532 = vunpack.c.h.b16 %v186
      %v533 = vunpack.c.l.b16 %v187
      %v534 = vunpack.c.h.b16 %v187
      %v535 = vunpack.c.l.b16 %v188
      %v536 = vunpack.c.h.b16 %v188
      %v537 = vunpack.c.l.b16 %v189
      %v538 = vunpack.c.h.b16 %v189
      %v539 = vunpack.c.l.b16 %v190
      %v540 = vunpack.c.h.b16 %v190
      %v541 = vunpack.c.l.b16 %v191
      %v542 = vunpack.c.h.b16 %v191
      %v543 = vunpack.c.l.b16 %v192
      %v544 = vunpack.c.h.b16 %v192
      %v545 = vunpack.c.l.b16 %v193
      %v546 = vunpack.c.h.b16 %v193
      %v547 = vunpack.c.l.b16 %v194
      %v548 = vunpack.c.h.b16 %v194
      %v549 = vpack.c.b16 %v521, %v517
      %v550 = vpack.c.b16 %v522, %v518
      %v551 = vpack.c.b16 %v523, %v519
      %v552 = vpack.c.b16 %v524, %v520
      %v553 = vpack.c.b16 %v529, %v525
      %v554 = vpack.c.b16 %v530, %v526
      %v555 = vpack.c.b16 %v531, %v527
      %v556 = vpack.c.b16 %v532, %v528
      %v557 = vpack.c.b16 %v537, %v533
      %v558 = vpack.c.b16 %v538, %v534
      %v559 = vpack.c.b16 %v539, %v535
      %v560 = vpack.c.b16 %v540, %v536
      %v561 = vpack.c.b16 %v545, %v541
      %v562 = vpack.c.b16 %v546, %v542
      %v563 = vpack.c.b16 %v547, %v543
      %v564 = vpack.c.b16 %v548, %v544
      %v581 = vsel %vm345, %v229, 0
      %v583 = vsel %vm345, %v230, 0
      %v585 = vsel %vm345, %v231, 0
      %v588 = vsel %vm345, %v500, 0
      %590 = vmatprep.subr.bf16.mxu0 %v550
      %591 = vmatpush1.bf16.msra.mxu0 %v549
      %592 = vmatprep.subr.bf16.mxu0 %v554
      %593 = vmatpush1.bf16.msra.mxu0 %v553
      %594 = vmatprep.subr.bf16.mxu0 %v558
      %595 = vmatpush1.bf16.msra.mxu0 %v557
      %596 = vmatprep.subr.bf16.mxu0 %v562
      %597 = vmatpush1.bf16.msra.mxu0 %v561
      %598 = vmatprep.subr.bf16.mxu0 0
      %599 = vmatpush1.bf16.msra.mxu0 0
      %600 = vmatprep.subr.bf16.mxu0 0
      %601 = vmatpush1.bf16.msra.mxu0 0
      %602 = vmatprep.subr.bf16.mxu0 0
      %603 = vmatpush1.bf16.msra.mxu0 0
      %604 = vmatprep.subr.bf16.mxu0 0
      %605 = vmatpush1.bf16.msra.mxu0 0
      %606 = vmatprep.subr.bf16.mxu0 0
      %607 = vmatpush1.bf16.msra.mxu0 0
      %608 = vmatprep.subr.bf16.mxu0 0
      %609 = vmatpush1.bf16.msra.mxu0 0
      %610 = vmatprep.subr.bf16.mxu0 0
      %611 = vmatpush1.bf16.msra.mxu0 0
      %612 = vmatprep.subr.bf16.mxu0 0
      %613 = vmatpush1.bf16.msra.mxu0 0
      %614 = vmatprep.subr.bf16.mxu0 0
      %615 = vmatpush1.bf16.msra.mxu0 0
      %616 = vmatprep.subr.bf16.mxu0 0
      %617 = vmatpush1.bf16.msra.mxu0 0
      %618 = vmatprep.subr.bf16.mxu0 0
      %619 = vmatpush1.bf16.msra.mxu0 0
      %620 = vmatprep.subr.bf16.mxu0 0
      %621 = vmatpush1.bf16.msra.mxu0 0
      %622 = vmatprep.mubr.bf16.mxu0 0
      %623 = vmatmul.mubr.bf16.gmra.mrb[0].mxu0 %v581
      %v624 = vpop.f32.mrb[0].mxu0
      %v625 = vadd.f32 %v393, %v624
      %v626 = vpop.f32.mrb[0].mxu0
      %v627 = vadd.f32 %v395, %v626
      %v628 = vpop.f32.mrb[0].mxu0
      %v629 = vadd.f32 %v397, %v628
      %v630 = vpop.f32.mrb[0].mxu0
      %v631 = vadd.f32 %v399, %v630
      %632 = vmatprep.mubr.bf16.mxu0 0
      %633 = vmatmul.mubr.bf16.gmra.mrb[0].mxu0 %v583
      %v634 = vpop.f32.mrb[0].mxu0
      %v635 = vadd.f32 %v403, %v634
      %v636 = vpop.f32.mrb[0].mxu0
      %v637 = vadd.f32 %v405, %v636
      %v638 = vpop.f32.mrb[0].mxu0
      %v639 = vadd.f32 %v407, %v638
      %v640 = vpop.f32.mrb[0].mxu0
      %v641 = vadd.f32 %v409, %v640
      %642 = vmatprep.mubr.bf16.mxu0 0
      %643 = vmatmul.mubr.bf16.gmra.mrb[0].mxu0 %v585
      %v644 = vpop.f32.mrb[0].mxu0
      %v645 = vadd.f32 %v413, %v644
      %v646 = vpop.f32.mrb[0].mxu0
      %v647 = vadd.f32 %v415, %v646
      %v648 = vpop.f32.mrb[0].mxu0
      %v649 = vadd.f32 %v417, %v648
      %v650 = vpop.f32.mrb[0].mxu0
      %v651 = vadd.f32 %v419, %v650
      %652 = vmatprep.mubr.bf16.mxu0 0
      %653 = vmatmul.mubr.bf16.gmra.mrb[0].mxu0 %v588
      %v654 = vpop.f32.mrb[0].mxu0
      %v655 = vadd.f32 %v423, %v654
      %v656 = vpop.f32.mrb[0].mxu0
      %v657 = vadd.f32 %v425, %v656
      %v658 = vpop.f32.mrb[0].mxu0
      %v659 = vpop.f32.mrb[0].mxu0
      %660 = vdwg.mxu0
      %661 = vmatprep.subr.bf16.mxu0 %v552
      %662 = vmatpush1.bf16.msra.mxu0 %v551
      %663 = vmatprep.subr.bf16.mxu0 %v556
      %664 = vmatpush1.bf16.msra.mxu0 %v555
      %665 = vmatprep.subr.bf16.mxu0 %v560
      %666 = vmatpush1.bf16.msra.mxu0 %v559
      %667 = vmatprep.subr.bf16.mxu0 %v564
      %668 = vmatpush1.bf16.msra.mxu0 %v563
      %669 = vmatprep.subr.bf16.mxu0 0
      %670 = vmatpush1.bf16.msra.mxu0 0
      %671 = vmatprep.subr.bf16.mxu0 0
      %672 = vmatpush1.bf16.msra.mxu0 0
      %673 = vmatprep.subr.bf16.mxu0 0
      %674 = vmatpush1.bf16.msra.mxu0 0
      %675 = vmatprep.subr.bf16.mxu0 0
      %676 = vmatpush1.bf16.msra.mxu0 0
      %677 = vmatprep.subr.bf16.mxu0 0
      %678 = vmatpush1.bf16.msra.mxu0 0
      %679 = vmatprep.subr.bf16.mxu0 0
      %680 = vmatpush1.bf16.msra.mxu0 0
      %681 = vmatprep.subr.bf16.mxu0 0
      %682 = vmatpush1.bf16.msra.mxu0 0
      %683 = vmatprep.subr.bf16.mxu0 0
      %684 = vmatpush1.bf16.msra.mxu0 0
      %685 = vmatprep.subr.bf16.mxu0 0
      %686 = vmatpush1.bf16.msra.mxu0 0
      %687 = vmatprep.subr.bf16.mxu0 0
      %688 = vmatpush1.bf16.msra.mxu0 0
      %689 = vmatprep.subr.bf16.mxu0 0
      %690 = vmatpush1.bf16.msra.mxu0 0
      %691 = vmatprep.subr.bf16.mxu0 0
      %692 = vmatpush1.bf16.msra.mxu0 0
      %693 = vmatprep.mubr.bf16.mxu0 0
      %694 = vmatmul.mubr.bf16.gmra.mrb[0].mxu0 %v581
      %v695 = vpop.f32.mrb[0].mxu0
      %v696 = vadd.f32 %v464, %v695
      %v697 = vpop.f32.mrb[0].mxu0
      %v698 = vadd.f32 %v466, %v697
      %v699 = vpop.f32.mrb[0].mxu0
      %v700 = vadd.f32 %v468, %v699
      %v701 = vpop.f32.mrb[0].mxu0
      %v702 = vadd.f32 %v470, %v701
      %703 = vmatprep.mubr.bf16.mxu0 0
      %704 = vmatmul.mubr.bf16.gmra.mrb[0].mxu0 %v583
      %v705 = vpop.f32.mrb[0].mxu0
      %v706 = vadd.f32 %v474, %v705
      %v707 = vpop.f32.mrb[0].mxu0
      %v708 = vadd.f32 %v476, %v707
      %v709 = vpop.f32.mrb[0].mxu0
      %v710 = vadd.f32 %v478, %v709
      %v711 = vpop.f32.mrb[0].mxu0
      %v712 = vadd.f32 %v480, %v711
      %713 = vmatprep.mubr.bf16.mxu0 0
      %714 = vmatmul.mubr.bf16.gmra.mrb[0].mxu0 %v585
      %v715 = vpop.f32.mrb[0].mxu0
      %v716 = vadd.f32 %v484, %v715
      %v717 = vpop.f32.mrb[0].mxu0
      %v718 = vadd.f32 %v486, %v717
      %v719 = vpop.f32.mrb[0].mxu0
      %v720 = vadd.f32 %v488, %v719
      %v721 = vpop.f32.mrb[0].mxu0
      %v722 = vadd.f32 %v490, %v721
      %723 = vmatprep.mubr.bf16.mxu0 0
      %724 = vmatmul.mubr.bf16.gmra.mrb[0].mxu0 %v588
      %v725 = vpop.f32.mrb[0].mxu0
      %v726 = vadd.f32 %v494, %v725
      %v727 = vpop.f32.mrb[0].mxu0
      %v728 = vadd.f32 %v496, %v727
      %v729 = vpop.f32.mrb[0].mxu0
      %v730 = vpop.f32.mrb[0].mxu0
      %731 = vdwg.mxu0
      %v732 = vld [vmem:[%s165 + $0x1c] sm:$0xf]
      %s733 = scalar_lea.vmem %s1, 256
      %v734 = vld [vmem:[%s733] sm:$0xff]
      %v735 = vld [vmem:[%s733 + $0x8] sm:$0xff]
      %v736 = vld [vmem:[%s733 + $0x10] sm:$0xff]
      %v737 = vld [vmem:[%s733 + $0x18] sm:$0xff]
      %v738 = vld [vmem:[%s733 + $0x20] sm:$0xff]
      %v739 = vld [vmem:[%s733 + $0x28] sm:$0xff]
      %v740 = vld [vmem:[%s733 + $0x30] sm:$0xff]
      %v741 = vld [vmem:[%s733 + $0x38] sm:$0xff]
      %v742 = vld [vmem:[%s733 + $0x40] sm:$0xff]
      %v743 = vld [vmem:[%s733 + $0x48] sm:$0xff]
      %v744 = vld [vmem:[%s733 + $0x50] sm:$0xff]
      %v745 = vld [vmem:[%s733 + $0x58] sm:$0xff]
      %v746 = vld [vmem:[%s733 + $0x60] sm:$0xff]
      %v747 = vld [vmem:[%s733 + $0x68] sm:$0xff]
      %v748 = vld [vmem:[%s733 + $0x70] sm:$0xff]
      %v749 = vld [vmem:[%s733 + $0x78] sm:$0xff]
      %v751 = vunpack.c.l.b16 %v732
      %v752 = vpack.c.b16 %v223, %v222
      %v753 = vpack.c.b16 %v225, %v224
      %v754 = vpack.c.b16 %v227, %v226
      %v755 = vpack.c.b16 %v751, %v751
      %v772 = vunpack.c.l.b16 %v734
      %v773 = vunpack.c.h.b16 %v734
      %v774 = vunpack.c.l.b16 %v735
      %v775 = vunpack.c.h.b16 %v735
      %v776 = vunpack.c.l.b16 %v736
      %v777 = vunpack.c.h.b16 %v736
      %v778 = vunpack.c.l.b16 %v737
      %v779 = vunpack.c.h.b16 %v737
      %v780 = vunpack.c.l.b16 %v738
      %v781 = vunpack.c.h.b16 %v738
      %v782 = vunpack.c.l.b16 %v739
      %v783 = vunpack.c.h.b16 %v739
      %v784 = vunpack.c.l.b16 %v740
      %v785 = vunpack.c.h.b16 %v740
      %v786 = vunpack.c.l.b16 %v741
      %v787 = vunpack.c.h.b16 %v741
      %v788 = vunpack.c.l.b16 %v742
      %v789 = vunpack.c.h.b16 %v742
      %v790 = vunpack.c.l.b16 %v743
      %v791 = vunpack.c.h.b16 %v743
      %v792 = vunpack.c.l.b16 %v744
      %v793 = vunpack.c.h.b16 %v744
      %v794 = vunpack.c.l.b16 %v745
      %v795 = vunpack.c.h.b16 %v745
      %v796 = vunpack.c.l.b16 %v746
      %v797 = vunpack.c.h.b16 %v746
      %v798 = vunpack.c.l.b16 %v747
      %v799 = vunpack.c.h.b16 %v747
      %v800 = vunpack.c.l.b16 %v748
      %v801 = vunpack.c.h.b16 %v748
      %v802 = vunpack.c.l.b16 %v749
      %v803 = vunpack.c.h.b16 %v749
      %v804 = vpack.c.b16 %v776, %v772
      %v805 = vpack.c.b16 %v777, %v773
      %v806 = vpack.c.b16 %v778, %v774
      %v807 = vpack.c.b16 %v779, %v775
      %v808 = vpack.c.b16 %v784, %v780
      %v809 = vpack.c.b16 %v785, %v781
      %v810 = vpack.c.b16 %v786, %v782
      %v811 = vpack.c.b16 %v787, %v783
      %v812 = vpack.c.b16 %v792, %v788
      %v813 = vpack.c.b16 %v793, %v789
      %v814 = vpack.c.b16 %v794, %v790
      %v815 = vpack.c.b16 %v795, %v791
      %v816 = vpack.c.b16 %v800, %v796
      %v817 = vpack.c.b16 %v801, %v797
      %v818 = vpack.c.b16 %v802, %v798
      %v819 = vpack.c.b16 %v803, %v799
      %v837 = vsel %vm345, %v752, 0
      %v840 = vsel %vm345, %v753, 0
      %v843 = vsel %vm345, %v754, 0
      %v846 = vsel %vm345, %v755, 0
      %848 = vmatprep.subr.bf16.mxu0 %v805
      %849 = vmatpush1.bf16.msra.mxu0 %v804
      %850 = vmatprep.subr.bf16.mxu0 %v809
      %851 = vmatpush1.bf16.msra.mxu0 %v808
      %852 = vmatprep.subr.bf16.mxu0 %v813
      %853 = vmatpush1.bf16.msra.mxu0 %v812
      %854 = vmatprep.subr.bf16.mxu0 %v817
      %855 = vmatpush1.bf16.msra.mxu0 %v816
      %856 = vmatprep.subr.bf16.mxu0 0
      %857 = vmatpush1.bf16.msra.mxu0 0
      %858 = vmatprep.subr.bf16.mxu0 0
      %859 = vmatpush1.bf16.msra.mxu0 0
      %860 = vmatprep.subr.bf16.mxu0 0
      %861 = vmatpush1.bf16.msra.mxu0 0
      %862 = vmatprep.subr.bf16.mxu0 0
      %863 = vmatpush1.bf16.msra.mxu0 0
      %864 = vmatprep.subr.bf16.mxu0 0
      %865 = vmatpush1.bf16.msra.mxu0 0
      %866 = vmatprep.subr.bf16.mxu0 0
      %867 = vmatpush1.bf16.msra.mxu0 0
      %868 = vmatprep.subr.bf16.mxu0 0
      %869 = vmatpush1.bf16.msra.mxu0 0
      %870 = vmatprep.subr.bf16.mxu0 0
      %871 = vmatpush1.bf16.msra.mxu0 0
      %872 = vmatprep.subr.bf16.mxu0 0
      %873 = vmatpush1.bf16.msra.mxu0 0
      %874 = vmatprep.subr.bf16.mxu0 0
      %875 = vmatpush1.bf16.msra.mxu0 0
      %876 = vmatprep.subr.bf16.mxu0 0
      %877 = vmatpush1.bf16.msra.mxu0 0
      %878 = vmatprep.subr.bf16.mxu0 0
      %879 = vmatpush1.bf16.msra.mxu0 0
      %880 = vmatprep.mubr.bf16.mxu0 0
      %881 = vmatmul.mubr.bf16.gmra.mrb[0].mxu0 %v837
      %v882 = vpop.f32.mrb[0].mxu0
      %v883 = vadd.f32 0.0, %v882
      %v884 = vpop.f32.mrb[0].mxu0
      %v885 = vadd.f32 0.0, %v884
      %v886 = vpop.f32.mrb[0].mxu0
      %v887 = vadd.f32 0.0, %v886
      %v888 = vpop.f32.mrb[0].mxu0
      %v889 = vadd.f32 0.0, %v888
      %890 = vmatprep.mubr.bf16.mxu0 0
      %891 = vmatmul.mubr.bf16.gmra.mrb[0].mxu0 %v840
      %v892 = vpop.f32.mrb[0].mxu0
      %v893 = vadd.f32 0.0, %v892
      %v894 = vpop.f32.mrb[0].mxu0
      %v895 = vadd.f32 0.0, %v894
      %v896 = vpop.f32.mrb[0].mxu0
      %v897 = vadd.f32 0.0, %v896
      %v898 = vpop.f32.mrb[0].mxu0
      %v899 = vadd.f32 0.0, %v898
      %900 = vmatprep.mubr.bf16.mxu0 0
      %901 = vmatmul.mubr.bf16.gmra.mrb[0].mxu0 %v843
      %v902 = vpop.f32.mrb[0].mxu0
      %v903 = vadd.f32 0.0, %v902
      %v904 = vpop.f32.mrb[0].mxu0
      %v905 = vadd.f32 0.0, %v904
      %v906 = vpop.f32.mrb[0].mxu0
      %v907 = vadd.f32 0.0, %v906
      %v908 = vpop.f32.mrb[0].mxu0
      %v909 = vadd.f32 0.0, %v908
      %910 = vmatprep.mubr.bf16.mxu0 0
      %911 = vmatmul.mubr.bf16.gmra.mrb[0].mxu0 %v846
      %v912 = vpop.f32.mrb[0].mxu0
      %v913 = vadd.f32 0.0, %v912
      %v914 = vpop.f32.mrb[0].mxu0
      %v915 = vadd.f32 0.0, %v914
      %v916 = vpop.f32.mrb[0].mxu0
      %v917 = vpop.f32.mrb[0].mxu0
      %918 = vdwg.mxu0
      %919 = vmatprep.subr.bf16.mxu0 %v807
      %920 = vmatpush1.bf16.msra.mxu0 %v806
      %921 = vmatprep.subr.bf16.mxu0 %v811
      %922 = vmatpush1.bf16.msra.mxu0 %v810
      %923 = vmatprep.subr.bf16.mxu0 %v815
      %924 = vmatpush1.bf16.msra.mxu0 %v814
      %925 = vmatprep.subr.bf16.mxu0 %v819
      %926 = vmatpush1.bf16.msra.mxu0 %v818
      %927 = vmatprep.subr.bf16.mxu0 0
      %928 = vmatpush1.bf16.msra.mxu0 0
      %929 = vmatprep.subr.bf16.mxu0 0
      %930 = vmatpush1.bf16.msra.mxu0 0
      %931 = vmatprep.subr.bf16.mxu0 0
      %932 = vmatpush1.bf16.msra.mxu0 0
      %933 = vmatprep.subr.bf16.mxu0 0
      %934 = vmatpush1.bf16.msra.mxu0 0
      %935 = vmatprep.subr.bf16.mxu0 0
      %936 = vmatpush1.bf16.msra.mxu0 0
      %937 = vmatprep.subr.bf16.mxu0 0
      %938 = vmatpush1.bf16.msra.mxu0 0
      %939 = vmatprep.subr.bf16.mxu0 0
      %940 = vmatpush1.bf16.msra.mxu0 0
      %941 = vmatprep.subr.bf16.mxu0 0
      %942 = vmatpush1.bf16.msra.mxu0 0
      %943 = vmatprep.subr.bf16.mxu0 0
      %944 = vmatpush1.bf16.msra.mxu0 0
      %945 = vmatprep.subr.bf16.mxu0 0
      %946 = vmatpush1.bf16.msra.mxu0 0
      %947 = vmatprep.subr.bf16.mxu0 0
      %948 = vmatpush1.bf16.msra.mxu0 0
      %949 = vmatprep.subr.bf16.mxu0 0
      %950 = vmatpush1.bf16.msra.mxu0 0
      %951 = vmatprep.mubr.bf16.mxu0 0
      %952 = vmatmul.mubr.bf16.gmra.mrb[0].mxu0 %v837
      %v953 = vpop.f32.mrb[0].mxu0
      %v954 = vadd.f32 0.0, %v953
      %v955 = vpop.f32.mrb[0].mxu0
      %v956 = vadd.f32 0.0, %v955
      %v957 = vpop.f32.mrb[0].mxu0
      %v958 = vadd.f32 0.0, %v957
      %v959 = vpop.f32.mrb[0].mxu0
      %v960 = vadd.f32 0.0, %v959
      %961 = vmatprep.mubr.bf16.mxu0 0
      %962 = vmatmul.mubr.bf16.gmra.mrb[0].mxu0 %v840
      %v963 = vpop.f32.mrb[0].mxu0
      %v964 = vadd.f32 0.0, %v963
      %v965 = vpop.f32.mrb[0].mxu0
      %v966 = vadd.f32 0.0, %v965
      %v967 = vpop.f32.mrb[0].mxu0
      %v968 = vadd.f32 0.0, %v967
      %v969 = vpop.f32.mrb[0].mxu0
      %v970 = vadd.f32 0.0, %v969
      %971 = vmatprep.mubr.bf16.mxu0 0
      %972 = vmatmul.mubr.bf16.gmra.mrb[0].mxu0 %v843
      %v973 = vpop.f32.mrb[0].mxu0
      %v974 = vadd.f32 0.0, %v973
      %v975 = vpop.f32.mrb[0].mxu0
      %v976 = vadd.f32 0.0, %v975
      %v977 = vpop.f32.mrb[0].mxu0
      %v978 = vadd.f32 0.0, %v977
      %v979 = vpop.f32.mrb[0].mxu0
      %v980 = vadd.f32 0.0, %v979
      %981 = vmatprep.mubr.bf16.mxu0 0
      %982 = vmatmul.mubr.bf16.gmra.mrb[0].mxu0 %v846
      %v983 = vpop.f32.mrb[0].mxu0
      %v984 = vadd.f32 0.0, %v983
      %v985 = vpop.f32.mrb[0].mxu0
      %v986 = vadd.f32 0.0, %v985
      %v987 = vpop.f32.mrb[0].mxu0
      %v988 = vpop.f32.mrb[0].mxu0
      %989 = vdwg.mxu0
      %v990 = vadd.f32 %v625, %v883
      %v991 = vadd.f32 %v627, %v885
      %v992 = vadd.f32 %v696, %v954
      %v993 = vadd.f32 %v698, %v956
      %v994 = vadd.f32 %v629, %v887
      %v995 = vadd.f32 %v631, %v889
      %v996 = vadd.f32 %v700, %v958
      %v997 = vadd.f32 %v702, %v960
      %v998 = vadd.f32 %v635, %v893
      %v999 = vadd.f32 %v637, %v895
      %v1000 = vadd.f32 %v706, %v964
      %v1001 = vadd.f32 %v708, %v966
      %v1002 = vadd.f32 %v639, %v897
      %v1003 = vadd.f32 %v641, %v899
      %v1004 = vadd.f32 %v710, %v968
      %v1005 = vadd.f32 %v712, %v970
      %v1006 = vadd.f32 %v645, %v903
      %v1007 = vadd.f32 %v647, %v905
      %v1008 = vadd.f32 %v716, %v974
      %v1009 = vadd.f32 %v718, %v976
      %v1010 = vadd.f32 %v649, %v907
      %v1011 = vadd.f32 %v651, %v909
      %v1012 = vadd.f32 %v720, %v978
      %v1013 = vadd.f32 %v722, %v980
      %v1014 = vadd.f32 %v655, %v913
      %v1015 = vadd.f32 %v657, %v915
      %v1016 = vadd.f32 %v726, %v984
      %v1017 = vadd.f32 %v728, %v986
      %v1018 = vld [vmem:[%s165 + $0x4] sm:$0xf]
      %v1019 = vld [vmem:[%s165 + $0x8] sm:$0xf]
      %v1020 = vld [vmem:[%s165 + $0xc] sm:$0xf]
      %v1021 = vld [vmem:[%s165 + $0x10] sm:$0xf]
      %v1022 = vld [vmem:[%s165 + $0x14] sm:$0xf]
      %v1023 = vld [vmem:[%s165 + $0x18] sm:$0xf]
      %v1024 = vld [vmem:[%s165 + $0x1c] sm:$0xf]
      %v1025 = vld [vmem:[%s165 + $0x20] sm:$0x1]
      %s1026 = scalar_lea.vmem %s1, 384
      %v1027 = vld [vmem:[%s1026] sm:$0xff]
      %v1028 = vld [vmem:[%s1026 + $0x8] sm:$0xff]
      %v1029 = vld [vmem:[%s1026 + $0x10] sm:$0xff]
      %v1030 = vld [vmem:[%s1026 + $0x18] sm:$0xff]
      %v1031 = vld [vmem:[%s1026 + $0x20] sm:$0xff]
      %v1032 = vld [vmem:[%s1026 + $0x28] sm:$0xff]
      %v1033 = vld [vmem:[%s1026 + $0x30] sm:$0xff]
      %v1034 = vld [vmem:[%s1026 + $0x38] sm:$0xff]
      %v1035 = vld [vmem:[%s1026 + $0x40] sm:$0xff]
      %v1036 = vld [vmem:[%s1026 + $0x48] sm:$0xff]
      %v1037 = vld [vmem:[%s1026 + $0x50] sm:$0xff]
      %v1038 = vld [vmem:[%s1026 + $0x58] sm:$0xff]
      %v1039 = vld [vmem:[%s1026 + $0x60] sm:$0xff]
      %v1040 = vld [vmem:[%s1026 + $0x68] sm:$0xff]
      %v1041 = vld [vmem:[%s1026 + $0x70] sm:$0xff]
      %v1042 = vld [vmem:[%s1026 + $0x78] sm:$0xff]
      %v1051 = vunpack.c.l.b16 %v1018
      %v1052 = vunpack.c.l.b16 %v1019
      %v1053 = vunpack.c.l.b16 %v1020
      %v1054 = vunpack.c.l.b16 %v1021
      %v1055 = vunpack.c.l.b16 %v1022
      %v1056 = vunpack.c.l.b16 %v1023
      %v1057 = vunpack.c.l.b16 %v1024
      %v1058 = vunpack.c.l.b16 %v1025
      %v1059 = vpack.c.b16 %v1052, %v1051
      %v1060 = vpack.c.b16 %v1054, %v1053
      %v1061 = vpack.c.b16 %v1056, %v1055
      %v1062 = vpack.c.b16 %v1058, %v1057
      %v1064 = vshrl.u32 %v1059, 16
      %v1066 = vshll.u32 %v1059, 16
      %v1068 = vrot.slane %v1066, 1
      %v1069 = vor.u32 %v1064, %v1068
      %v1071 = vshll.u32 %v1060, 16
      %v1073 = vrot.slane %v1071, 1
      %v1074 = vsel %vm233, %v1069, %v1073
      %v1075 = vshrl.u32 %v1060, 16
      %v1077 = vor.u32 %v1075, %v1073
      %v1079 = vshll.u32 %v1061, 16
      %v1081 = vrot.slane %v1079, 1
      %v1082 = vsel %vm233, %v1077, %v1081
      %v1083 = vshrl.u32 %v1061, 16
      %v1085 = vor.u32 %v1083, %v1081
      %v1087 = vshll.u32 %v1062, 16
      %v1089 = vrot.slane %v1087, 1
      %v1090 = vsel %vm233, %v1085, %v1089
      %v1091 = vshrl.u32 %v1062, 16
      %v1093 = vor.u32 %v1091, %v1089
      %v1110 = vunpack.c.l.b16 %v1027
      %v1111 = vunpack.c.h.b16 %v1027
      %v1112 = vunpack.c.l.b16 %v1028
      %v1113 = vunpack.c.h.b16 %v1028
      %v1114 = vunpack.c.l.b16 %v1029
      %v1115 = vunpack.c.h.b16 %v1029
      %v1116 = vunpack.c.l.b16 %v1030
      %v1117 = vunpack.c.h.b16 %v1030
      %v1118 = vunpack.c.l.b16 %v1031
      %v1119 = vunpack.c.h.b16 %v1031
      %v1120 = vunpack.c.l.b16 %v1032
      %v1121 = vunpack.c.h.b16 %v1032
      %v1122 = vunpack.c.l.b16 %v1033
      %v1123 = vunpack.c.h.b16 %v1033
      %v1124 = vunpack.c.l.b16 %v1034
      %v1125 = vunpack.c.h.b16 %v1034
      %v1126 = vunpack.c.l.b16 %v1035
      %v1127 = vunpack.c.h.b16 %v1035
      %v1128 = vunpack.c.l.b16 %v1036
      %v1129 = vunpack.c.h.b16 %v1036
      %v1130 = vunpack.c.l.b16 %v1037
      %v1131 = vunpack.c.h.b16 %v1037
      %v1132 = vunpack.c.l.b16 %v1038
      %v1133 = vunpack.c.h.b16 %v1038
      %v1134 = vunpack.c.l.b16 %v1039
      %v1135 = vunpack.c.h.b16 %v1039
      %v1136 = vunpack.c.l.b16 %v1040
      %v1137 = vunpack.c.h.b16 %v1040
      %v1138 = vunpack.c.l.b16 %v1041
      %v1139 = vunpack.c.h.b16 %v1041
      %v1140 = vunpack.c.l.b16 %v1042
      %v1141 = vunpack.c.h.b16 %v1042
      %v1142 = vpack.c.b16 %v1114, %v1110
      %v1143 = vpack.c.b16 %v1115, %v1111
      %v1144 = vpack.c.b16 %v1116, %v1112
      %v1145 = vpack.c.b16 %v1117, %v1113
      %v1146 = vpack.c.b16 %v1122, %v1118
      %v1147 = vpack.c.b16 %v1123, %v1119
      %v1148 = vpack.c.b16 %v1124, %v1120
      %v1149 = vpack.c.b16 %v1125, %v1121
      %v1150 = vpack.c.b16 %v1130, %v1126
      %v1151 = vpack.c.b16 %v1131, %v1127
      %v1152 = vpack.c.b16 %v1132, %v1128
      %v1153 = vpack.c.b16 %v1133, %v1129
      %v1154 = vpack.c.b16 %v1138, %v1134
      %v1155 = vpack.c.b16 %v1139, %v1135
      %v1156 = vpack.c.b16 %v1140, %v1136
      %v1157 = vpack.c.b16 %v1141, %v1137
      %v1175 = vsel %vm345, %v1074, 0
      %v1178 = vsel %vm345, %v1082, 0
      %v1181 = vsel %vm345, %v1090, 0
      %v1184 = vsel %vm345, %v1093, 0
      %1186 = vmatprep.subr.bf16.mxu0 %v1143
      %1187 = vmatpush1.bf16.msra.mxu0 %v1142
      %1188 = vmatprep.subr.bf16.mxu0 %v1147
      %1189 = vmatpush1.bf16.msra.mxu0 %v1146
      %1190 = vmatprep.subr.bf16.mxu0 %v1151
      %1191 = vmatpush1.bf16.msra.mxu0 %v1150
      %1192 = vmatprep.subr.bf16.mxu0 %v1155
      %1193 = vmatpush1.bf16.msra.mxu0 %v1154
      %1194 = vmatprep.subr.bf16.mxu0 0
      %1195 = vmatpush1.bf16.msra.mxu0 0
      %1196 = vmatprep.subr.bf16.mxu0 0
      %1197 = vmatpush1.bf16.msra.mxu0 0
      %1198 = vmatprep.subr.bf16.mxu0 0
      %1199 = vmatpush1.bf16.msra.mxu0 0
      %1200 = vmatprep.subr.bf16.mxu0 0
      %1201 = vmatpush1.bf16.msra.mxu0 0
      %1202 = vmatprep.subr.bf16.mxu0 0
      %1203 = vmatpush1.bf16.msra.mxu0 0
      %1204 = vmatprep.subr.bf16.mxu0 0
      %1205 = vmatpush1.bf16.msra.mxu0 0
      %1206 = vmatprep.subr.bf16.mxu0 0
      %1207 = vmatpush1.bf16.msra.mxu0 0
      %1208 = vmatprep.subr.bf16.mxu0 0
      %1209 = vmatpush1.bf16.msra.mxu0 0
      %1210 = vmatprep.subr.bf16.mxu0 0
      %1211 = vmatpush1.bf16.msra.mxu0 0
      %1212 = vmatprep.subr.bf16.mxu0 0
      %1213 = vmatpush1.bf16.msra.mxu0 0
      %1214 = vmatprep.subr.bf16.mxu0 0
      %1215 = vmatpush1.bf16.msra.mxu0 0
      %1216 = vmatprep.subr.bf16.mxu0 0
      %1217 = vmatpush1.bf16.msra.mxu0 0
      %1218 = vmatprep.mubr.bf16.mxu0 0
      %1219 = vmatmul.mubr.bf16.gmra.mrb[0].mxu0 %v1175
      %v1220 = vpop.f32.mrb[0].mxu0
      %v1221 = vadd.f32 0.0, %v1220
      %v1222 = vpop.f32.mrb[0].mxu0
      %v1223 = vadd.f32 0.0, %v1222
      %v1224 = vpop.f32.mrb[0].mxu0
      %v1225 = vadd.f32 0.0, %v1224
      %v1226 = vpop.f32.mrb[0].mxu0
      %v1227 = vadd.f32 0.0, %v1226
      %1228 = vmatprep.mubr.bf16.mxu0 0
      %1229 = vmatmul.mubr.bf16.gmra.mrb[0].mxu0 %v1178
      %v1230 = vpop.f32.mrb[0].mxu0
      %v1231 = vadd.f32 0.0, %v1230
      %v1232 = vpop.f32.mrb[0].mxu0
      %v1233 = vadd.f32 0.0, %v1232
      %v1234 = vpop.f32.mrb[0].mxu0
      %v1235 = vadd.f32 0.0, %v1234
      %v1236 = vpop.f32.mrb[0].mxu0
      %v1237 = vadd.f32 0.0, %v1236
      %1238 = vmatprep.mubr.bf16.mxu0 0
      %1239 = vmatmul.mubr.bf16.gmra.mrb[0].mxu0 %v1181
      %v1240 = vpop.f32.mrb[0].mxu0
      %v1241 = vadd.f32 0.0, %v1240
      %v1242 = vpop.f32.mrb[0].mxu0
      %v1243 = vadd.f32 0.0, %v1242
      %v1244 = vpop.f32.mrb[0].mxu0
      %v1245 = vadd.f32 0.0, %v1244
      %v1246 = vpop.f32.mrb[0].mxu0
      %v1247 = vadd.f32 0.0, %v1246
      %1248 = vmatprep.mubr.bf16.mxu0 0
      %1249 = vmatmul.mubr.bf16.gmra.mrb[0].mxu0 %v1184
      %v1250 = vpop.f32.mrb[0].mxu0
      %v1251 = vadd.f32 0.0, %v1250
      %v1252 = vpop.f32.mrb[0].mxu0
      %v1253 = vadd.f32 0.0, %v1252
      %v1254 = vpop.f32.mrb[0].mxu0
      %v1255 = vpop.f32.mrb[0].mxu0
      %1256 = vdwg.mxu0
      %1257 = vmatprep.subr.bf16.mxu0 %v1145
      %1258 = vmatpush1.bf16.msra.mxu0 %v1144
      %1259 = vmatprep.subr.bf16.mxu0 %v1149
      %1260 = vmatpush1.bf16.msra.mxu0 %v1148
      %1261 = vmatprep.subr.bf16.mxu0 %v1153
      %1262 = vmatpush1.bf16.msra.mxu0 %v1152
      %1263 = vmatprep.subr.bf16.mxu0 %v1157
      %1264 = vmatpush1.bf16.msra.mxu0 %v1156
      %1265 = vmatprep.subr.bf16.mxu0 0
      %1266 = vmatpush1.bf16.msra.mxu0 0
      %1267 = vmatprep.subr.bf16.mxu0 0
      %1268 = vmatpush1.bf16.msra.mxu0 0
      %1269 = vmatprep.subr.bf16.mxu0 0
      %1270 = vmatpush1.bf16.msra.mxu0 0
      %1271 = vmatprep.subr.bf16.mxu0 0
      %1272 = vmatpush1.bf16.msra.mxu0 0
      %1273 = vmatprep.subr.bf16.mxu0 0
      %1274 = vmatpush1.bf16.msra.mxu0 0
      %1275 = vmatprep.subr.bf16.mxu0 0
      %1276 = vmatpush1.bf16.msra.mxu0 0
      %1277 = vmatprep.subr.bf16.mxu0 0
      %1278 = vmatpush1.bf16.msra.mxu0 0
      %1279 = vmatprep.subr.bf16.mxu0 0
      %1280 = vmatpush1.bf16.msra.mxu0 0
      %1281 = vmatprep.subr.bf16.mxu0 0
      %1282 = vmatpush1.bf16.msra.mxu0 0
      %1283 = vmatprep.subr.bf16.mxu0 0
      %1284 = vmatpush1.bf16.msra.mxu0 0
      %1285 = vmatprep.subr.bf16.mxu0 0
      %1286 = vmatpush1.bf16.msra.mxu0 0
      %1287 = vmatprep.subr.bf16.mxu0 0
      %1288 = vmatpush1.bf16.msra.mxu0 0
      %1289 = vmatprep.mubr.bf16.mxu0 0
      %1290 = vmatmul.mubr.bf16.gmra.mrb[0].mxu0 %v1175
      %v1291 = vpop.f32.mrb[0].mxu0
      %v1292 = vadd.f32 0.0, %v1291
      %v1293 = vpop.f32.mrb[0].mxu0
      %v1294 = vadd.f32 0.0, %v1293
      %v1295 = vpop.f32.mrb[0].mxu0
      %v1296 = vadd.f32 0.0, %v1295
      %v1297 = vpop.f32.mrb[0].mxu0
      %v1298 = vadd.f32 0.0, %v1297
      %1299 = vmatprep.mubr.bf16.mxu0 0
      %1300 = vmatmul.mubr.bf16.gmra.mrb[0].mxu0 %v1178
      %v1301 = vpop.f32.mrb[0].mxu0
      %v1302 = vadd.f32 0.0, %v1301
      %v1303 = vpop.f32.mrb[0].mxu0
      %v1304 = vadd.f32 0.0, %v1303
      %v1305 = vpop.f32.mrb[0].mxu0
      %v1306 = vadd.f32 0.0, %v1305
      %v1307 = vpop.f32.mrb[0].mxu0
      %v1308 = vadd.f32 0.0, %v1307
      %1309 = vmatprep.mubr.bf16.mxu0 0
      %1310 = vmatmul.mubr.bf16.gmra.mrb[0].mxu0 %v1181
      %v1311 = vpop.f32.mrb[0].mxu0
      %v1312 = vadd.f32 0.0, %v1311
      %v1313 = vpop.f32.mrb[0].mxu0
      %v1314 = vadd.f32 0.0, %v1313
      %v1315 = vpop.f32.mrb[0].mxu0
      %v1316 = vadd.f32 0.0, %v1315
      %v1317 = vpop.f32.mrb[0].mxu0
      %v1318 = vadd.f32 0.0, %v1317
      %1319 = vmatprep.mubr.bf16.mxu0 0
      %1320 = vmatmul.mubr.bf16.gmra.mrb[0].mxu0 %v1184
      %v1321 = vpop.f32.mrb[0].mxu0
      %v1322 = vadd.f32 0.0, %v1321
      %v1323 = vpop.f32.mrb[0].mxu0
      %v1324 = vadd.f32 0.0, %v1323
      %v1325 = vpop.f32.mrb[0].mxu0
      %v1326 = vpop.f32.mrb[0].mxu0
      %1327 = vdwg.mxu0
      %v1328 = vadd.f32 %v990, %v1221
      %v1329 = vadd.f32 %v991, %v1223
      %v1330 = vadd.f32 %v992, %v1292
      %v1331 = vadd.f32 %v993, %v1294
      %v1332 = vadd.f32 %v994, %v1225
      %v1333 = vadd.f32 %v995, %v1227
      %v1334 = vadd.f32 %v996, %v1296
      %v1335 = vadd.f32 %v997, %v1298
      %v1336 = vadd.f32 %v998, %v1231
      %v1337 = vadd.f32 %v999, %v1233
      %v1338 = vadd.f32 %v1000, %v1302
      %v1339 = vadd.f32 %v1001, %v1304
      %v1340 = vadd.f32 %v1002, %v1235
      %v1341 = vadd.f32 %v1003, %v1237
      %v1342 = vadd.f32 %v1004, %v1306
      %v1343 = vadd.f32 %v1005, %v1308
      %v1344 = vadd.f32 %v1006, %v1241
      %v1345 = vadd.f32 %v1007, %v1243
      %v1346 = vadd.f32 %v1008, %v1312
      %v1347 = vadd.f32 %v1009, %v1314
      %v1348 = vadd.f32 %v1010, %v1245
      %v1349 = vadd.f32 %v1011, %v1247
      %v1350 = vadd.f32 %v1012, %v1316
      %v1351 = vadd.f32 %v1013, %v1318
      %v1352 = vadd.f32 %v1014, %v1251
      %v1353 = vadd.f32 %v1015, %v1253
      %v1354 = vadd.f32 %v1016, %v1322
      %v1355 = vadd.f32 %v1017, %v1324
      %v1356 = vmax.f32 %v1328, %v1329
      %v1357 = vmax.f32 %v1332, %v1333
      %v1358 = vmax.f32 %v1336, %v1337
      %v1359 = vmax.f32 %v1340, %v1341
      %v1360 = vmax.f32 %v1344, %v1345
      %v1361 = vmax.f32 %v1348, %v1349
      %v1362 = vmax.f32 %v1352, %v1353
      %v1363 = vmax.f32 %v1330, %v1331
      %v1364 = vmax.f32 %v1334, %v1335
      %v1365 = vmax.f32 %v1338, %v1339
      %v1366 = vmax.f32 %v1342, %v1343
      %v1367 = vmax.f32 %v1346, %v1347
      %v1368 = vmax.f32 %v1350, %v1351
      %v1369 = vmax.f32 %v1354, %v1355
      %v1370 = vmax.f32 %v1356, %v1363
      %v1371 = vmax.f32 %v1357, %v1364
      %v1372 = vmax.f32 %v1358, %v1365
      %v1373 = vmax.f32 %v1359, %v1366
      %v1374 = vmax.f32 %v1360, %v1367
      %v1375 = vmax.f32 %v1361, %v1368
      %v1376 = vmax.f32 %v1362, %v1369
      %v1377 = vld [vmem:[%s2] sm:$0x1]
      %v1379 = vlaneseq
      %v1380 = vshrl.u32 %v1379, 7
      %v1381 = vsub.s32 0, %v1380
      %v1382 = vrot.slane %v1377, %v1381
      %v1384 = vadd.f32 %v1370, %v1382
      %v1385 = vadd.f32 %v1371, %v1382
      %v1386 = vadd.f32 %v1372, %v1382
      %v1387 = vadd.f32 %v1373, %v1382
      %v1388 = vadd.f32 %v1374, %v1382
      %v1389 = vadd.f32 %v1375, %v1382
      %v1390 = vadd.f32 %v1376, %v1382
      %v1391 = vmax.f32 %v1384, 0.0
      %v1392 = vmax.f32 %v1385, 0.0
      %v1393 = vmax.f32 %v1386, 0.0
      %v1394 = vmax.f32 %v1387, 0.0
      %v1395 = vmax.f32 %v1388, 0.0
      %v1396 = vmax.f32 %v1389, 0.0
      %v1397 = vmax.f32 %v1390, 0.0
      %v1398 = vpack.c.bf16 %v1392, %v1391
      %v1399 = vpack.c.bf16 %v1394, %v1393
      %v1400 = vpack.c.bf16 %v1396, %v1395
      %v1401 = vpack.c.bf16 %v1397, %v1397
      %v1406 = vunpack.c.l.b16 %v1398
      %v1407 = vunpack.c.h.b16 %v1398
      %v1408 = vunpack.c.l.b16 %v1399
      %v1409 = vunpack.c.h.b16 %v1399
      %v1410 = vunpack.c.l.b16 %v1400
      %v1411 = vunpack.c.h.b16 %v1400
      %v1412 = vunpack.c.l.b16 %v1401
      %v1413 = vpack.c.b16 %v1406, %v1406
      %v1414 = vpack.c.b16 %v1407, %v1407
      %v1415 = vpack.c.b16 %v1408, %v1408
      %v1416 = vpack.c.b16 %v1409, %v1409
      %v1417 = vpack.c.b16 %v1410, %v1410
      %v1418 = vpack.c.b16 %v1411, %v1411
      %v1419 = vpack.c.b16 %v1412, %v1412
      %vm1427 = vcmask 257024
      %1428 = vst.msk [vmem:[%s170] sm:$0xf] %vm1427, %v1413
      %1429 = vst.msk [vmem:[%s170 + $0x4] sm:$0xf] %vm1427, %v1414
      %1430 = vst.msk [vmem:[%s170 + $0x8] sm:$0xf] %vm1427, %v1415
      %1431 = vst.msk [vmem:[%s170 + $0xc] sm:$0xf] %vm1427, %v1416
      %1432 = vst.msk [vmem:[%s170 + $0x10] sm:$0xf] %vm1427, %v1417
      %1433 = vst.msk [vmem:[%s170 + $0x14] sm:$0xf] %vm1427, %v1418
      %1434 = vst.msk [vmem:[%s170 + $0x18] sm:$0xf] %vm1427, %v1419
      %p1435 = scmp.lt.s32.totalorder %s14, 1
      %s1436 = scalar_select %p1435, %s14, 1
      %s1437 = smul.addr %s1436, 7
      %s1438 = smul.addr %s1437, 4
      %s1439 = scalar_lea.vmem %s3, %s1438
      // Predicated region
      $region33: #{simple_cnn_forward.4} parent=31 // pred_check
        %p1440 = pneg %p100
      $region34: #{simple_cnn_forward.4} parent=31 // pred_check_branch
        %1442 = sbr.rel (%p1440) target = $region36
      $region35: #{simple_cnn_forward.4} parent=31 // pred_region
        _
      $region36: #{simple_cnn_forward.4} parent=31 // pred_fallthru
        _
    $region32: #{simple_cnn_forward.4} parent=5 // pred_fallthru
      _
    %p1443 = scmp.le.s32.totalorder 2, %s9
    // Predicated region
    $region37: #{simple_cnn_forward.4} parent=5 // pred_check
      %p1444 = pneg %p1443
    $region38: #{simple_cnn_forward.4} parent=5 // pred_check_branch
      %1446 = sbr.rel (%p1444) target = $region40
    $region39: #{simple_cnn_forward.4} parent=5 // pred_region
      %s1447 = ssub.s32 %s9, 2
      // Predicated region
      $region41: #{simple_cnn_forward.4} parent=39 // pred_check
        %p1448 = pneg %p106
      $region42: #{simple_cnn_forward.4} parent=39 // pred_check_branch
        %1450 = sbr.rel (%p1448) target = $region44
      $region43: #{simple_cnn_forward.4} parent=39 // pred_region
        %p1451 = scmp.lt.s32.totalorder %s15, 1
        %s1452 = scalar_select %p1451, %s15, 1
        %s1453 = smul.addr %s1452, 7
        %s1454 = smul.addr %s1453, 4
        %s1455 = scalar_lea.vmem %s3, %s1454
      $region44: #{simple_cnn_forward.4} parent=39 // pred_fallthru
        _
    $region40: #{simple_cnn_forward.4} parent=5 // pred_fallthru
      _
  $region6: #{simple_cnn_forward.4} parent=0 // loop_footer
    %s13 = sadd.s32 1, %s9
  $region7: #{simple_cnn_forward.4} parent=0 // loop_footer_branch
    %8 = sbr.rel target = $region3
  $region8: #{simple_cnn_forward.4} parent=0 // loop_exit
    _

// kernel: simple_cnn_forward.5
$region0: #{simple_cnn_forward.5}
  #allocation0 [shape = 'u32[]', space=smem, size = 0x4, offset = 0x4, fixed_abs, tag = 'smem constant byte address 0x4 - core index']
  #allocation1 [shape = 'u32[144,128]{1,0:T(1,128)}', space=vmem, size = 0x12000, scoped, tag = 'internal scratch']
  %s0 = inlined_call_operand.vmem [shape: bf16[2,1568], index: 0, kind: input, shape index: {}]
  %s1 = inlined_call_operand.vmem [shape: bf16[1568,128], index: 1, kind: input, shape index: {}]
  %s2 = inlined_call_operand.vmem [shape: f32[1,128], index: 2, kind: input, shape index: {}]
  %s3 = inlined_call_operand.vmem [shape: bf16[128,10], index: 3, kind: input, shape index: {}]
  %s4 = inlined_call_operand.vmem [shape: f32[1,10], index: 4, kind: input, shape index: {}]
  %s5 = inlined_call_operand.hbm [shape: f32[2,10], index: 5, kind: output, shape index: {}]
  %s6 = sld [smem:[#allocation0]]
  $region30: #{simple_cnn_forward.5} parent=0
    _
  %s8 = ssub.s32 1, %s6
  %s9 = scalar_select 0, %s8, %s6
  $region1: #{simple_cnn_forward.5} parent=0
    #allocation2 [shape = 'u8[1024]{0}', space=vmem, size = 0x400, scoped, tag = 'output window, operand 0, single buffered']
    #allocation3 [shape = 's32[1]{0}', space=sflag, size = 0x4, scoped, tag = 'scoped memory for simple_cnn_forward.5']
    %10 = vsyncpa [#allocation3], 0
    // Predicated region
    $region2: #{simple_cnn_forward.5} parent=1 // pred_check
      _
    $region3: #{simple_cnn_forward.5} parent=1 // pred_check_branch
      %12 = sbr.rel (0) target = $region5
    $region4: #{simple_cnn_forward.5} parent=1 // pred_region
      _
    $region5: #{simple_cnn_forward.5} parent=1 // pred_fallthru
      _
    // Predicated region
    $region6: #{simple_cnn_forward.5} parent=1 // pred_check
      _
    $region7: #{simple_cnn_forward.5} parent=1 // pred_check_branch
      %14 = sbr.rel (0) target = $region9
    $region8: #{simple_cnn_forward.5} parent=1 // pred_region
      _
    $region9: #{simple_cnn_forward.5} parent=1 // pred_fallthru
      _
    // Predicated region
    $region10: #{simple_cnn_forward.5} parent=1 // pred_check
      _
    $region11: #{simple_cnn_forward.5} parent=1 // pred_check_branch
      %16 = sbr.rel (0) target = $region13
    $region12: #{simple_cnn_forward.5} parent=1 // pred_region
      _
    $region13: #{simple_cnn_forward.5} parent=1 // pred_fallthru
      _
    // Predicated region
    $region14: #{simple_cnn_forward.5} parent=1 // pred_check
      _
    $region15: #{simple_cnn_forward.5} parent=1 // pred_check_branch
      %18 = sbr.rel (0) target = $region17
    $region16: #{simple_cnn_forward.5} parent=1 // pred_region
      _
    $region17: #{simple_cnn_forward.5} parent=1 // pred_fallthru
      _
    // Predicated region
    $region18: #{simple_cnn_forward.5} parent=1 // pred_check
      _
    $region19: #{simple_cnn_forward.5} parent=1 // pred_check_branch
      %20 = sbr.rel (0) target = $region21
    $region20: #{simple_cnn_forward.5} parent=1 // pred_region
      _
    $region21: #{simple_cnn_forward.5} parent=1 // pred_fallthru
      _
    %v22 = vld [vmem:[%s0] sm:$0xff]
    %v23 = vld [vmem:[%s0 + $0x8] sm:$0x1f]
    %v24 = vld [vmem:[%s1] sm:$0xf]
    %v25 = vld [vmem:[%s1 + $0x4] sm:$0xf]
    %v26 = vld [vmem:[%s1 + $0x8] sm:$0xf]
    %v27 = vld [vmem:[%s1 + $0xc] sm:$0xf]
    %v28 = vld [vmem:[%s1 + $0x10] sm:$0xf]
    %v29 = vld [vmem:[%s1 + $0x14] sm:$0xf]
    %v30 = vld [vmem:[%s1 + $0x18] sm:$0xf]
    %v31 = vld [vmem:[%s1 + $0x1c] sm:$0xf]
    %v32 = vld [vmem:[%s1 + $0x20] sm:$0xf]
    %v33 = vld [vmem:[%s1 + $0x24] sm:$0xf]
    %v34 = vld [vmem:[%s1 + $0x28] sm:$0xf]
    %v35 = vld [vmem:[%s1 + $0x2c] sm:$0xf]
    %v36 = vld [vmem:[%s1 + $0x30] sm:$0xf]
    %v37 = vld [vmem:[%s1 + $0x34] sm:$0xf]
    %v38 = vld [vmem:[%s1 + $0x38] sm:$0xf]
    %v39 = vld [vmem:[%s1 + $0x3c] sm:$0xf]
    %v40 = vld [vmem:[%s1 + $0x40] sm:$0xf]
    %v41 = vld [vmem:[%s1 + $0x44] sm:$0xf]
    %v42 = vld [vmem:[%s1 + $0x48] sm:$0xf]
    %v43 = vld [vmem:[%s1 + $0x4c] sm:$0xf]
    %v44 = vld [vmem:[%s1 + $0x50] sm:$0xf]
    %v45 = vld [vmem:[%s1 + $0x54] sm:$0xf]
    %v46 = vld [vmem:[%s1 + $0x58] sm:$0xf]
    %v47 = vld [vmem:[%s1 + $0x5c] sm:$0xf]
    %v48 = vld [vmem:[%s1 + $0x60] sm:$0xf]
    %v49 = vld [vmem:[%s1 + $0x64] sm:$0xf]
    %v50 = vld [vmem:[%s1 + $0x68] sm:$0xf]
    %v51 = vld [vmem:[%s1 + $0x6c] sm:$0xf]
    %v52 = vld [vmem:[%s1 + $0x70] sm:$0xf]
    %v53 = vld [vmem:[%s1 + $0x74] sm:$0xf]
    %v54 = vld [vmem:[%s1 + $0x78] sm:$0xf]
    %v55 = vld [vmem:[%s1 + $0x7c] sm:$0xf]
    %v56 = vld [vmem:[%s1 + $0x80] sm:$0xf]
    %v57 = vld [vmem:[%s1 + $0x84] sm:$0xf]
    %v58 = vld [vmem:[%s1 + $0x88] sm:$0xf]
    %v59 = vld [vmem:[%s1 + $0x8c] sm:$0xf]
    %v60 = vld [vmem:[%s1 + $0x90] sm:$0xf]
    %v61 = vld [vmem:[%s1 + $0x94] sm:$0xf]
    %v62 = vld [vmem:[%s1 + $0x98] sm:$0xf]
    %v63 = vld [vmem:[%s1 + $0x9c] sm:$0xf]
    %v64 = vld [vmem:[%s1 + $0xa0] sm:$0xf]
    %v65 = vld [vmem:[%s1 + $0xa4] sm:$0xf]
    %v66 = vld [vmem:[%s1 + $0xa8] sm:$0xf]
    %v67 = vld [vmem:[%s1 + $0xac] sm:$0xf]
    %v68 = vld [vmem:[%s1 + $0xb0] sm:$0xf]
    %v69 = vld [vmem:[%s1 + $0xb4] sm:$0xf]
    %v70 = vld [vmem:[%s1 + $0xb8] sm:$0xf]
    %v71 = vld [vmem:[%s1 + $0xbc] sm:$0xf]
    %v72 = vld [vmem:[%s1 + $0xc0] sm:$0xf]
    %v73 = vld [vmem:[%s1 + $0xc4] sm:$0xf]
    %v74 = vld [vmem:[%s1 + $0xc8] sm:$0xf]
    %v75 = vld [vmem:[%s1 + $0xcc] sm:$0xf]
    %v76 = vld [vmem:[%s1 + $0xd0] sm:$0xf]
    %v77 = vld [vmem:[%s1 + $0xd4] sm:$0xf]
    %v78 = vld [vmem:[%s1 + $0xd8] sm:$0xf]
    %v79 = vld [vmem:[%s1 + $0xdc] sm:$0xf]
    %v80 = vld [vmem:[%s1 + $0xe0] sm:$0xf]
    %v81 = vld [vmem:[%s1 + $0xe4] sm:$0xf]
    %v82 = vld [vmem:[%s1 + $0xe8] sm:$0xf]
    %v83 = vld [vmem:[%s1 + $0xec] sm:$0xf]
    %v84 = vld [vmem:[%s1 + $0xf0] sm:$0xf]
    %v85 = vld [vmem:[%s1 + $0xf4] sm:$0xf]
    %v86 = vld [vmem:[%s1 + $0xf8] sm:$0xf]
    %v87 = vld [vmem:[%s1 + $0xfc] sm:$0xf]
    %v88 = vld [vmem:[%s1 + $0x100] sm:$0xf]
    %v89 = vld [vmem:[%s1 + $0x104] sm:$0xf]
    %v90 = vld [vmem:[%s1 + $0x108] sm:$0xf]
    %v91 = vld [vmem:[%s1 + $0x10c] sm:$0xf]
    %v92 = vld [vmem:[%s1 + $0x110] sm:$0xf]
    %v93 = vld [vmem:[%s1 + $0x114] sm:$0xf]
    %v94 = vld [vmem:[%s1 + $0x118] sm:$0xf]
    %v95 = vld [vmem:[%s1 + $0x11c] sm:$0xf]
    %v96 = vld [vmem:[%s1 + $0x120] sm:$0xf]
    %v97 = vld [vmem:[%s1 + $0x124] sm:$0xf]
    %v98 = vld [vmem:[%s1 + $0x128] sm:$0xf]
    %v99 = vld [vmem:[%s1 + $0x12c] sm:$0xf]
    %v100 = vld [vmem:[%s1 + $0x130] sm:$0xf]
    %v101 = vld [vmem:[%s1 + $0x134] sm:$0xf]
    %v102 = vld [vmem:[%s1 + $0x138] sm:$0xf]
    %v103 = vld [vmem:[%s1 + $0x13c] sm:$0xf]
    %v104 = vld [vmem:[%s1 + $0x140] sm:$0xf]
    %v105 = vld [vmem:[%s1 + $0x144] sm:$0xf]
    %v106 = vld [vmem:[%s1 + $0x148] sm:$0xf]
    %v107 = vld [vmem:[%s1 + $0x14c] sm:$0xf]
    %v108 = vld [vmem:[%s1 + $0x150] sm:$0xf]
    %v109 = vld [vmem:[%s1 + $0x154] sm:$0xf]
    %v110 = vld [vmem:[%s1 + $0x158] sm:$0xf]
    %v111 = vld [vmem:[%s1 + $0x15c] sm:$0xf]
    %v112 = vld [vmem:[%s1 + $0x160] sm:$0xf]
    %v113 = vld [vmem:[%s1 + $0x164] sm:$0xf]
    %v114 = vld [vmem:[%s1 + $0x168] sm:$0xf]
    %v115 = vld [vmem:[%s1 + $0x16c] sm:$0xf]
    %v116 = vld [vmem:[%s1 + $0x170] sm:$0xf]
    %v117 = vld [vmem:[%s1 + $0x174] sm:$0xf]
    %v118 = vld [vmem:[%s1 + $0x178] sm:$0xf]
    %v119 = vld [vmem:[%s1 + $0x17c] sm:$0xf]
    %v120 = vld [vmem:[%s1 + $0x180] sm:$0xf]
    %v121 = vld [vmem:[%s1 + $0x184] sm:$0xf]
    %v122 = vld [vmem:[%s1 + $0x188] sm:$0xf]
    %v123 = vld [vmem:[%s1 + $0x18c] sm:$0xf]
    %v124 = vld [vmem:[%s1 + $0x190] sm:$0xf]
    %v125 = vld [vmem:[%s1 + $0x194] sm:$0xf]
    %v126 = vld [vmem:[%s1 + $0x198] sm:$0xf]
    %v127 = vld [vmem:[%s1 + $0x19c] sm:$0xf]
    %v128 = vld [vmem:[%s1 + $0x1a0] sm:$0xf]
    %v129 = vld [vmem:[%s1 + $0x1a4] sm:$0xf]
    %v130 = vld [vmem:[%s1 + $0x1a8] sm:$0xf]
    %v131 = vld [vmem:[%s1 + $0x1ac] sm:$0xf]
    %v132 = vld [vmem:[%s1 + $0x1b0] sm:$0xf]
    %v133 = vld [vmem:[%s1 + $0x1b4] sm:$0xf]
    %v134 = vld [vmem:[%s1 + $0x1b8] sm:$0xf]
    %v135 = vld [vmem:[%s1 + $0x1bc] sm:$0xf]
    %v136 = vld [vmem:[%s1 + $0x1c0] sm:$0xf]
    %v137 = vld [vmem:[%s1 + $0x1c4] sm:$0xf]
    %v138 = vld [vmem:[%s1 + $0x1c8] sm:$0xf]
    %v139 = vld [vmem:[%s1 + $0x1cc] sm:$0xf]
    %v140 = vld [vmem:[%s1 + $0x1d0] sm:$0xf]
    %v141 = vld [vmem:[%s1 + $0x1d4] sm:$0xf]
    %v142 = vld [vmem:[%s1 + $0x1d8] sm:$0xf]
    %v143 = vld [vmem:[%s1 + $0x1dc] sm:$0xf]
    %v144 = vld [vmem:[%s1 + $0x1e0] sm:$0xf]
    %v145 = vld [vmem:[%s1 + $0x1e4] sm:$0xf]
    %v146 = vld [vmem:[%s1 + $0x1e8] sm:$0xf]
    %v147 = vld [vmem:[%s1 + $0x1ec] sm:$0xf]
    %v148 = vld [vmem:[%s1 + $0x1f0] sm:$0xf]
    %v149 = vld [vmem:[%s1 + $0x1f4] sm:$0xf]
    %v150 = vld [vmem:[%s1 + $0x1f8] sm:$0xf]
    %v151 = vld [vmem:[%s1 + $0x1fc] sm:$0xf]
    %v152 = vld [vmem:[%s1 + $0x200] sm:$0xf]
    %v153 = vld [vmem:[%s1 + $0x204] sm:$0xf]
    %v154 = vld [vmem:[%s1 + $0x208] sm:$0xf]
    %v155 = vld [vmem:[%s1 + $0x20c] sm:$0xf]
    %v156 = vld [vmem:[%s1 + $0x210] sm:$0xf]
    %v157 = vld [vmem:[%s1 + $0x214] sm:$0xf]
    %v158 = vld [vmem:[%s1 + $0x218] sm:$0xf]
    %v159 = vld [vmem:[%s1 + $0x21c] sm:$0xf]
    %v160 = vld [vmem:[%s1 + $0x220] sm:$0xf]
    %v161 = vld [vmem:[%s1 + $0x224] sm:$0xf]
    %v162 = vld [vmem:[%s1 + $0x228] sm:$0xf]
    %v163 = vld [vmem:[%s1 + $0x22c] sm:$0xf]
    %v164 = vld [vmem:[%s1 + $0x230] sm:$0xf]
    %v165 = vld [vmem:[%s1 + $0x234] sm:$0xf]
    %v166 = vld [vmem:[%s1 + $0x238] sm:$0xf]
    %v167 = vld [vmem:[%s1 + $0x23c] sm:$0xf]
    %v168 = vld [vmem:[%s1 + $0x240] sm:$0xf]
    %v169 = vld [vmem:[%s1 + $0x244] sm:$0xf]
    %v170 = vld [vmem:[%s1 + $0x248] sm:$0xf]
    %v171 = vld [vmem:[%s1 + $0x24c] sm:$0xf]
    %v172 = vld [vmem:[%s1 + $0x250] sm:$0xf]
    %v173 = vld [vmem:[%s1 + $0x254] sm:$0xf]
    %v174 = vld [vmem:[%s1 + $0x258] sm:$0xf]
    %v175 = vld [vmem:[%s1 + $0x25c] sm:$0xf]
    %v176 = vld [vmem:[%s1 + $0x260] sm:$0xf]
    %v177 = vld [vmem:[%s1 + $0x264] sm:$0xf]
    %v178 = vld [vmem:[%s1 + $0x268] sm:$0xf]
    %v179 = vld [vmem:[%s1 + $0x26c] sm:$0xf]
    %v180 = vld [vmem:[%s1 + $0x270] sm:$0xf]
    %v181 = vld [vmem:[%s1 + $0x274] sm:$0xf]
    %v182 = vld [vmem:[%s1 + $0x278] sm:$0xf]
    %v183 = vld [vmem:[%s1 + $0x27c] sm:$0xf]
    %v184 = vld [vmem:[%s1 + $0x280] sm:$0xf]
    %v185 = vld [vmem:[%s1 + $0x284] sm:$0xf]
    %v186 = vld [vmem:[%s1 + $0x288] sm:$0xf]
    %v187 = vld [vmem:[%s1 + $0x28c] sm:$0xf]
    %v188 = vld [vmem:[%s1 + $0x290] sm:$0xf]
    %v189 = vld [vmem:[%s1 + $0x294] sm:$0xf]
    %v190 = vld [vmem:[%s1 + $0x298] sm:$0xf]
    %v191 = vld [vmem:[%s1 + $0x29c] sm:$0xf]
    %v192 = vld [vmem:[%s1 + $0x2a0] sm:$0xf]
    %v193 = vld [vmem:[%s1 + $0x2a4] sm:$0xf]
    %v194 = vld [vmem:[%s1 + $0x2a8] sm:$0xf]
    %v195 = vld [vmem:[%s1 + $0x2ac] sm:$0xf]
    %v196 = vld [vmem:[%s1 + $0x2b0] sm:$0xf]
    %v197 = vld [vmem:[%s1 + $0x2b4] sm:$0xf]
    %v198 = vld [vmem:[%s1 + $0x2b8] sm:$0xf]
    %v199 = vld [vmem:[%s1 + $0x2bc] sm:$0xf]
    %v200 = vld [vmem:[%s1 + $0x2c0] sm:$0xf]
    %v201 = vld [vmem:[%s1 + $0x2c4] sm:$0xf]
    %v202 = vld [vmem:[%s1 + $0x2c8] sm:$0xf]
    %v203 = vld [vmem:[%s1 + $0x2cc] sm:$0xf]
    %v204 = vld [vmem:[%s1 + $0x2d0] sm:$0xf]
    %v205 = vld [vmem:[%s1 + $0x2d4] sm:$0xf]
    %v206 = vld [vmem:[%s1 + $0x2d8] sm:$0xf]
    %v207 = vld [vmem:[%s1 + $0x2dc] sm:$0xf]
    %v208 = vld [vmem:[%s1 + $0x2e0] sm:$0xf]
    %v209 = vld [vmem:[%s1 + $0x2e4] sm:$0xf]
    %v210 = vld [vmem:[%s1 + $0x2e8] sm:$0xf]
    %v211 = vld [vmem:[%s1 + $0x2ec] sm:$0xf]
    %v212 = vld [vmem:[%s1 + $0x2f0] sm:$0xf]
    %v213 = vld [vmem:[%s1 + $0x2f4] sm:$0xf]
    %v214 = vld [vmem:[%s1 + $0x2f8] sm:$0xf]
    %v215 = vld [vmem:[%s1 + $0x2fc] sm:$0xf]
    %v216 = vld [vmem:[%s1 + $0x300] sm:$0xf]
    %v217 = vld [vmem:[%s1 + $0x304] sm:$0xf]
    %v218 = vld [vmem:[%s1 + $0x308] sm:$0xf]
    %v219 = vld [vmem:[%s1 + $0x30c] sm:$0xf]
    %v220 = vld [vmem:[%s2] sm:$0x1]
    %v222 = vlaneseq
    %v223 = vshrl.u32 %v222, 7
    %v224 = vsub.s32 0, %v223
    %v225 = vrot.slane %v220, %v224
    %v229 = vcombine.high %v22, %v22
    %v231 = vunpack.c.l.s4 1966171168
    %v232 = vunpack.c.0.s8 %v231
    %v233 = vlaneseq
    %v234 = vshrl.u32 %v233, 7
    %v235 = vsub.s32 %v232, %v234
    %v236 = vrot.slane %v22, %v235
    %v238 = vunpack.c.l.s4 1966171168
    %v239 = vunpack.c.0.s8 %v238
    %v240 = vlaneseq
    %v241 = vshrl.u32 %v240, 7
    %v242 = vsub.s32 %v239, %v241
    %v243 = vrot.slane %v229, %v242
    %v244 = vcombine.high %v236, %v236
    %v245 = vcombine.high %v243, %v243
    %v247 = vunpack.c.l.s4 1966171168
    %v248 = vunpack.c.0.s8 %v247
    %v249 = vlaneseq
    %v250 = vshrl.u32 %v249, 7
    %v251 = vsub.s32 %v248, %v250
    %v252 = vrot.slane %v236, %v251
    %v254 = vunpack.c.l.s4 1966171168
    %v255 = vunpack.c.0.s8 %v254
    %v256 = vlaneseq
    %v257 = vshrl.u32 %v256, 7
    %v258 = vsub.s32 %v255, %v257
    %v259 = vrot.slane %v243, %v258
    %v261 = vunpack.c.l.s4 1966171168
    %v262 = vunpack.c.0.s8 %v261
    %v263 = vlaneseq
    %v264 = vshrl.u32 %v263, 7
    %v265 = vsub.s32 %v262, %v264
    %v266 = vrot.slane %v244, %v265
    %v268 = vunpack.c.l.s4 1966171168
    %v269 = vunpack.c.0.s8 %v268
    %v270 = vlaneseq
    %v271 = vshrl.u32 %v270, 7
    %v272 = vsub.s32 %v269, %v271
    %v273 = vrot.slane %v245, %v272
    %v274 = vcombine.high %v252, %v252
    %v275 = vcombine.high %v259, %v259
    %v276 = vcombine.high %v266, %v266
    %v277 = vcombine.high %v273, %v273
    %v278 = vcombine.high %v23, %v23
    %v280 = vunpack.c.l.s4 1966171168
    %v281 = vunpack.c.0.s8 %v280
    %v282 = vlaneseq
    %v283 = vshrl.u32 %v282, 7
    %v284 = vsub.s32 %v281, %v283
    %v285 = vrot.slane %v23, %v284
    %v287 = vunpack.c.l.s4 1966171168
    %v288 = vunpack.c.0.s8 %v287
    %v289 = vlaneseq
    %v290 = vshrl.u32 %v289, 7
    %v291 = vsub.s32 %v288, %v290
    %v292 = vrot.slane %v278, %v291
    %v293 = vcombine.high %v285, %v285
    %v295 = vunpack.c.l.s4 1966171168
    %v296 = vunpack.c.0.s8 %v295
    %v297 = vlaneseq
    %v298 = vshrl.u32 %v297, 7
    %v299 = vsub.s32 %v296, %v298
    %v300 = vrot.slane %v285, %v299
    %v302 = vunpack.c.l.s4 1966171168
    %v303 = vunpack.c.0.s8 %v302
    %v304 = vlaneseq
    %v305 = vshrl.u32 %v304, 7
    %v306 = vsub.s32 %v303, %v305
    %v307 = vrot.slane %v292, %v306
    %v309 = vunpack.c.l.s4 1966171168
    %v310 = vunpack.c.0.s8 %v309
    %v311 = vlaneseq
    %v312 = vshrl.u32 %v311, 7
    %v313 = vsub.s32 %v310, %v312
    %v314 = vrot.slane %v293, %v313
    %v315 = vcombine.high %v300, %v300
    %v316 = vcombine.high %v314, %v314
    %v525 = vunpack.c.l.b16 %v24
    %v526 = vunpack.c.l.b16 %v25
    %v527 = vunpack.c.l.b16 %v26
    %v528 = vunpack.c.l.b16 %v27
    %v529 = vunpack.c.l.b16 %v28
    %v530 = vunpack.c.l.b16 %v29
    %v531 = vunpack.c.l.b16 %v30
    %v532 = vunpack.c.l.b16 %v31
    %v533 = vunpack.c.l.b16 %v32
    %v534 = vunpack.c.l.b16 %v33
    %v535 = vunpack.c.l.b16 %v34
    %v536 = vunpack.c.l.b16 %v35
    %v537 = vunpack.c.l.b16 %v36
    %v538 = vunpack.c.l.b16 %v37
    %v539 = vunpack.c.l.b16 %v38
    %v540 = vunpack.c.l.b16 %v39
    %v541 = vunpack.c.l.b16 %v40
    %v542 = vunpack.c.l.b16 %v41
    %v543 = vunpack.c.l.b16 %v42
    %v544 = vunpack.c.l.b16 %v43
    %v545 = vunpack.c.l.b16 %v44
    %v546 = vunpack.c.l.b16 %v45
    %v547 = vunpack.c.l.b16 %v46
    %v548 = vunpack.c.l.b16 %v47
    %v549 = vunpack.c.l.b16 %v48
    %v550 = vunpack.c.l.b16 %v49
    %v551 = vunpack.c.l.b16 %v50
    %v552 = vunpack.c.l.b16 %v51
    %v553 = vunpack.c.l.b16 %v52
    %v554 = vunpack.c.l.b16 %v53
    %v555 = vunpack.c.l.b16 %v54
    %v556 = vunpack.c.l.b16 %v55
    %v557 = vunpack.c.l.b16 %v56
    %v558 = vunpack.c.l.b16 %v57
    %v559 = vunpack.c.l.b16 %v58
    %v560 = vunpack.c.l.b16 %v59
    %v561 = vunpack.c.l.b16 %v60
    %v562 = vunpack.c.l.b16 %v61
    %v563 = vunpack.c.l.b16 %v62
    %v564 = vunpack.c.l.b16 %v63
    %v565 = vunpack.c.l.b16 %v64
    %v566 = vunpack.c.l.b16 %v65
    %v567 = vunpack.c.l.b16 %v66
    %v568 = vunpack.c.l.b16 %v67
    %v569 = vunpack.c.l.b16 %v68
    %v570 = vunpack.c.l.b16 %v69
    %v571 = vunpack.c.l.b16 %v70
    %v572 = vunpack.c.l.b16 %v71
    %v573 = vunpack.c.l.b16 %v72
    %v574 = vunpack.c.l.b16 %v73
    %v575 = vunpack.c.l.b16 %v74
    %v576 = vunpack.c.l.b16 %v75
    %v577 = vunpack.c.l.b16 %v76
    %v578 = vunpack.c.l.b16 %v77
    %v579 = vunpack.c.l.b16 %v78
    %v580 = vunpack.c.l.b16 %v79
    %v581 = vunpack.c.l.b16 %v80
    %v582 = vunpack.c.l.b16 %v81
    %v583 = vunpack.c.l.b16 %v82
    %v584 = vunpack.c.l.b16 %v83
    %v585 = vunpack.c.l.b16 %v84
    %v586 = vunpack.c.l.b16 %v85
    %v587 = vunpack.c.l.b16 %v86
    %v588 = vunpack.c.l.b16 %v87
    %v589 = vunpack.c.l.b16 %v88
    %v590 = vunpack.c.l.b16 %v89
    %v591 = vunpack.c.l.b16 %v90
    %v592 = vunpack.c.l.b16 %v91
    %v593 = vunpack.c.l.b16 %v92
    %v594 = vunpack.c.l.b16 %v93
    %v595 = vunpack.c.l.b16 %v94
    %v596 = vunpack.c.l.b16 %v95
    %v597 = vunpack.c.l.b16 %v96
    %v598 = vunpack.c.l.b16 %v97
    %v599 = vunpack.c.l.b16 %v98
    %v600 = vunpack.c.l.b16 %v99
    %v601 = vunpack.c.l.b16 %v100
    %v602 = vunpack.c.l.b16 %v101
    %v603 = vunpack.c.l.b16 %v102
    %v604 = vunpack.c.l.b16 %v103
    %v605 = vunpack.c.l.b16 %v104
    %v606 = vunpack.c.l.b16 %v105
    %v607 = vunpack.c.l.b16 %v106
    %v608 = vunpack.c.l.b16 %v107
    %v609 = vunpack.c.l.b16 %v108
    %v610 = vunpack.c.l.b16 %v109
    %v611 = vunpack.c.l.b16 %v110
    %v612 = vunpack.c.l.b16 %v111
    %v613 = vunpack.c.l.b16 %v112
    %v614 = vunpack.c.l.b16 %v113
    %v615 = vunpack.c.l.b16 %v114
    %v616 = vunpack.c.l.b16 %v115
    %v617 = vunpack.c.l.b16 %v116
    %v618 = vunpack.c.l.b16 %v117
    %v619 = vunpack.c.l.b16 %v118
    %v620 = vunpack.c.l.b16 %v119
    %v621 = vunpack.c.l.b16 %v120
    %v622 = vunpack.c.l.b16 %v121
    %v623 = vunpack.c.l.b16 %v122
    %v624 = vunpack.c.l.b16 %v123
    %v625 = vunpack.c.l.b16 %v124
    %v626 = vunpack.c.l.b16 %v125
    %v627 = vunpack.c.l.b16 %v126
    %v628 = vunpack.c.l.b16 %v127
    %v629 = vunpack.c.l.b16 %v128
    %v630 = vunpack.c.l.b16 %v129
    %v631 = vunpack.c.l.b16 %v130
    %v632 = vunpack.c.l.b16 %v131
    %v633 = vunpack.c.l.b16 %v132
    %v634 = vunpack.c.l.b16 %v133
    %v635 = vunpack.c.l.b16 %v134
    %v636 = vunpack.c.l.b16 %v135
    %v637 = vunpack.c.l.b16 %v136
    %v638 = vunpack.c.l.b16 %v137
    %v639 = vunpack.c.l.b16 %v138
    %v640 = vunpack.c.l.b16 %v139
    %v641 = vunpack.c.l.b16 %v140
    %v642 = vunpack.c.l.b16 %v141
    %v643 = vunpack.c.l.b16 %v142
    %v644 = vunpack.c.l.b16 %v143
    %v645 = vunpack.c.l.b16 %v144
    %v646 = vunpack.c.l.b16 %v145
    %v647 = vunpack.c.l.b16 %v146
    %v648 = vunpack.c.l.b16 %v147
    %v649 = vunpack.c.l.b16 %v148
    %v650 = vunpack.c.l.b16 %v149
    %v651 = vunpack.c.l.b16 %v150
    %v652 = vunpack.c.l.b16 %v151
    %v653 = vunpack.c.l.b16 %v152
    %v654 = vunpack.c.l.b16 %v153
    %v655 = vunpack.c.l.b16 %v154
    %v656 = vunpack.c.l.b16 %v155
    %v657 = vunpack.c.l.b16 %v156
    %v658 = vunpack.c.l.b16 %v157
    %v659 = vunpack.c.l.b16 %v158
    %v660 = vunpack.c.l.b16 %v159
    %v661 = vunpack.c.l.b16 %v160
    %v662 = vunpack.c.l.b16 %v161
    %v663 = vunpack.c.l.b16 %v162
    %v664 = vunpack.c.l.b16 %v163
    %v665 = vunpack.c.l.b16 %v164
    %v666 = vunpack.c.l.b16 %v165
    %v667 = vunpack.c.l.b16 %v166
    %v668 = vunpack.c.l.b16 %v167
    %v669 = vunpack.c.l.b16 %v168
    %v670 = vunpack.c.l.b16 %v169
    %v671 = vunpack.c.l.b16 %v170
    %v672 = vunpack.c.l.b16 %v171
    %v673 = vunpack.c.l.b16 %v172
    %v674 = vunpack.c.l.b16 %v173
    %v675 = vunpack.c.l.b16 %v174
    %v676 = vunpack.c.l.b16 %v175
    %v677 = vunpack.c.l.b16 %v176
    %v678 = vunpack.c.l.b16 %v177
    %v679 = vunpack.c.l.b16 %v178
    %v680 = vunpack.c.l.b16 %v179
    %v681 = vunpack.c.l.b16 %v180
    %v682 = vunpack.c.l.b16 %v181
    %v683 = vunpack.c.l.b16 %v182
    %v684 = vunpack.c.l.b16 %v183
    %v685 = vunpack.c.l.b16 %v184
    %v686 = vunpack.c.l.b16 %v185
    %v687 = vunpack.c.l.b16 %v186
    %v688 = vunpack.c.l.b16 %v187
    %v689 = vunpack.c.l.b16 %v188
    %v690 = vunpack.c.l.b16 %v189
    %v691 = vunpack.c.l.b16 %v190
    %v692 = vunpack.c.l.b16 %v191
    %v693 = vunpack.c.l.b16 %v192
    %v694 = vunpack.c.l.b16 %v193
    %v695 = vunpack.c.l.b16 %v194
    %v696 = vunpack.c.l.b16 %v195
    %v697 = vunpack.c.l.b16 %v196
    %v698 = vunpack.c.l.b16 %v197
    %v699 = vunpack.c.l.b16 %v198
    %v700 = vunpack.c.l.b16 %v199
    %v701 = vunpack.c.l.b16 %v200
    %v702 = vunpack.c.l.b16 %v201
    %v703 = vunpack.c.l.b16 %v202
    %v704 = vunpack.c.l.b16 %v203
    %v705 = vunpack.c.l.b16 %v204
    %v706 = vunpack.c.l.b16 %v205
    %v707 = vunpack.c.l.b16 %v206
    %v708 = vunpack.c.l.b16 %v207
    %v709 = vunpack.c.l.b16 %v208
    %v710 = vunpack.c.l.b16 %v209
    %v711 = vunpack.c.l.b16 %v210
    %v712 = vunpack.c.l.b16 %v211
    %v713 = vunpack.c.l.b16 %v212
    %v714 = vunpack.c.l.b16 %v213
    %v715 = vunpack.c.l.b16 %v214
    %v716 = vunpack.c.l.b16 %v215
    %v717 = vunpack.c.l.b16 %v216
    %v718 = vunpack.c.l.b16 %v217
    %v719 = vunpack.c.l.b16 %v218
    %v720 = vunpack.c.l.b16 %v219
    %v721 = vpack.c.b16 %v526, %v525
    %v722 = vpack.c.b16 %v528, %v527
    %v723 = vpack.c.b16 %v530, %v529
    %v724 = vpack.c.b16 %v532, %v531
    %v725 = vpack.c.b16 %v534, %v533
    %v726 = vpack.c.b16 %v536, %v535
    %v727 = vpack.c.b16 %v538, %v537
    %v728 = vpack.c.b16 %v540, %v539
    %v729 = vpack.c.b16 %v542, %v541
    %v730 = vpack.c.b16 %v544, %v543
    %v731 = vpack.c.b16 %v546, %v545
    %v732 = vpack.c.b16 %v548, %v547
    %v733 = vpack.c.b16 %v550, %v549
    %v734 = vpack.c.b16 %v552, %v551
    %v735 = vpack.c.b16 %v554, %v553
    %v736 = vpack.c.b16 %v556, %v555
    %v737 = vpack.c.b16 %v558, %v557
    %v738 = vpack.c.b16 %v560, %v559
    %v739 = vpack.c.b16 %v562, %v561
    %v740 = vpack.c.b16 %v564, %v563
    %v741 = vpack.c.b16 %v566, %v565
    %v742 = vpack.c.b16 %v568, %v567
    %v743 = vpack.c.b16 %v570, %v569
    %v744 = vpack.c.b16 %v572, %v571
    %v745 = vpack.c.b16 %v574, %v573
    %v746 = vpack.c.b16 %v576, %v575
    %v747 = vpack.c.b16 %v578, %v577
    %v748 = vpack.c.b16 %v580, %v579
    %v749 = vpack.c.b16 %v582, %v581
    %v750 = vpack.c.b16 %v584, %v583
    %v751 = vpack.c.b16 %v586, %v585
    %v752 = vpack.c.b16 %v588, %v587
    %v753 = vpack.c.b16 %v590, %v589
    %v754 = vpack.c.b16 %v592, %v591
    %v755 = vpack.c.b16 %v594, %v593
    %v756 = vpack.c.b16 %v596, %v595
    %v757 = vpack.c.b16 %v598, %v597
    %v758 = vpack.c.b16 %v600, %v599
    %v759 = vpack.c.b16 %v602, %v601
    %v760 = vpack.c.b16 %v604, %v603
    %v761 = vpack.c.b16 %v606, %v605
    %v762 = vpack.c.b16 %v608, %v607
    %v763 = vpack.c.b16 %v610, %v609
    %v764 = vpack.c.b16 %v612, %v611
    %v765 = vpack.c.b16 %v614, %v613
    %v766 = vpack.c.b16 %v616, %v615
    %v767 = vpack.c.b16 %v618, %v617
    %v768 = vpack.c.b16 %v620, %v619
    %v769 = vpack.c.b16 %v622, %v621
    %v770 = vpack.c.b16 %v624, %v623
    %v771 = vpack.c.b16 %v626, %v625
    %v772 = vpack.c.b16 %v628, %v627
    %v773 = vpack.c.b16 %v630, %v629
    %v774 = vpack.c.b16 %v632, %v631
    %v775 = vpack.c.b16 %v634, %v633
    %v776 = vpack.c.b16 %v636, %v635
    %v777 = vpack.c.b16 %v638, %v637
    %v778 = vpack.c.b16 %v640, %v639
    %v779 = vpack.c.b16 %v642, %v641
    %v780 = vpack.c.b16 %v644, %v643
    %v781 = vpack.c.b16 %v646, %v645
    %v782 = vpack.c.b16 %v648, %v647
    %v783 = vpack.c.b16 %v650, %v649
    %v784 = vpack.c.b16 %v652, %v651
    %v785 = vpack.c.b16 %v654, %v653
    %v786 = vpack.c.b16 %v656, %v655
    %v787 = vpack.c.b16 %v658, %v657
    %v788 = vpack.c.b16 %v660, %v659
    %v789 = vpack.c.b16 %v662, %v661
    %v790 = vpack.c.b16 %v664, %v663
    %v791 = vpack.c.b16 %v666, %v665
    %v792 = vpack.c.b16 %v668, %v667
    %v793 = vpack.c.b16 %v670, %v669
    %v794 = vpack.c.b16 %v672, %v671
    %v795 = vpack.c.b16 %v674, %v673
    %v796 = vpack.c.b16 %v676, %v675
    %v797 = vpack.c.b16 %v678, %v677
    %v798 = vpack.c.b16 %v680, %v679
    %v799 = vpack.c.b16 %v682, %v681
    %v800 = vpack.c.b16 %v684, %v683
    %v801 = vpack.c.b16 %v686, %v685
    %v802 = vpack.c.b16 %v688, %v687
    %v803 = vpack.c.b16 %v690, %v689
    %v804 = vpack.c.b16 %v692, %v691
    %v805 = vpack.c.b16 %v694, %v693
    %v806 = vpack.c.b16 %v696, %v695
    %v807 = vpack.c.b16 %v698, %v697
    %v808 = vpack.c.b16 %v700, %v699
    %v809 = vpack.c.b16 %v702, %v701
    %v810 = vpack.c.b16 %v704, %v703
    %v811 = vpack.c.b16 %v706, %v705
    %v812 = vpack.c.b16 %v708, %v707
    %v813 = vpack.c.b16 %v710, %v709
    %v814 = vpack.c.b16 %v712, %v711
    %v815 = vpack.c.b16 %v714, %v713
    %v816 = vpack.c.b16 %v716, %v715
    %v817 = vpack.c.b16 %v718, %v717
    %v818 = vpack.c.b16 %v720, %v719
    %vm917 = vcmask 261120
    %v919 = vsel %vm917, %v307, 0
    %921 = vmatprep.subr.bf16.mxu0 0
    %922 = vmatpush1.bf16.msra.mxu0 %v721
    %923 = vmatprep.subr.bf16.mxu0 0
    %924 = vmatpush1.bf16.msra.mxu0 %v722
    %925 = vmatprep.subr.bf16.mxu0 0
    %926 = vmatpush1.bf16.msra.mxu0 %v723
    %927 = vmatprep.subr.bf16.mxu0 0
    %928 = vmatpush1.bf16.msra.mxu0 %v724
    %929 = vmatprep.subr.bf16.mxu0 0
    %930 = vmatpush1.bf16.msra.mxu0 %v725
    %931 = vmatprep.subr.bf16.mxu0 0
    %932 = vmatpush1.bf16.msra.mxu0 %v726
    %933 = vmatprep.subr.bf16.mxu0 0
    %934 = vmatpush1.bf16.msra.mxu0 %v727
    %935 = vmatprep.subr.bf16.mxu0 0
    %936 = vmatpush1.bf16.msra.mxu0 %v728
    %937 = vmatprep.subr.bf16.mxu0 0
    %938 = vmatpush1.bf16.msra.mxu0 %v729
    %939 = vmatprep.subr.bf16.mxu0 0
    %940 = vmatpush1.bf16.msra.mxu0 %v730
    %941 = vmatprep.subr.bf16.mxu0 0
    %942 = vmatpush1.bf16.msra.mxu0 %v731
    %943 = vmatprep.subr.bf16.mxu0 0
    %944 = vmatpush1.bf16.msra.mxu0 %v732
    %945 = vmatprep.subr.bf16.mxu0 0
    %946 = vmatpush1.bf16.msra.mxu0 %v733
    %947 = vmatprep.subr.bf16.mxu0 0
    %948 = vmatpush1.bf16.msra.mxu0 %v734
    %949 = vmatprep.subr.bf16.mxu0 0
    %950 = vmatpush1.bf16.msra.mxu0 %v735
    %951 = vmatprep.subr.bf16.mxu0 0
    %952 = vmatpush1.bf16.msra.mxu0 %v736
    %953 = vmatprep.mubr.bf16.mxu0 %v266
    %954 = vmatmul.mubr.bf16.gmra.mrb[0].mxu0 %v252
    %v955 = vpop.f32.mrb[0].mxu0
    %v956 = vadd.f32 %v225, %v955
    %v957 = vpop.f32.mrb[0].mxu0
    %v958 = vpop.f32.mrb[0].mxu0
    %v959 = vpop.f32.mrb[0].mxu0
    %960 = vdwg.mxu0
    %961 = vmatprep.subr.bf16.mxu0 0
    %962 = vmatpush1.bf16.msra.mxu0 %v737
    %963 = vmatprep.subr.bf16.mxu0 0
    %964 = vmatpush1.bf16.msra.mxu0 %v738
    %965 = vmatprep.subr.bf16.mxu0 0
    %966 = vmatpush1.bf16.msra.mxu0 %v739
    %967 = vmatprep.subr.bf16.mxu0 0
    %968 = vmatpush1.bf16.msra.mxu0 %v740
    %969 = vmatprep.subr.bf16.mxu0 0
    %970 = vmatpush1.bf16.msra.mxu0 %v741
    %971 = vmatprep.subr.bf16.mxu0 0
    %972 = vmatpush1.bf16.msra.mxu0 %v742
    %973 = vmatprep.subr.bf16.mxu0 0
    %974 = vmatpush1.bf16.msra.mxu0 %v743
    %975 = vmatprep.subr.bf16.mxu0 0
    %976 = vmatpush1.bf16.msra.mxu0 %v744
    %977 = vmatprep.subr.bf16.mxu0 0
    %978 = vmatpush1.bf16.msra.mxu0 %v745
    %979 = vmatprep.subr.bf16.mxu0 0
    %980 = vmatpush1.bf16.msra.mxu0 %v746
    %981 = vmatprep.subr.bf16.mxu0 0
    %982 = vmatpush1.bf16.msra.mxu0 %v747
    %983 = vmatprep.subr.bf16.mxu0 0
    %984 = vmatpush1.bf16.msra.mxu0 %v748
    %985 = vmatprep.subr.bf16.mxu0 0
    %986 = vmatpush1.bf16.msra.mxu0 %v749
    %987 = vmatprep.subr.bf16.mxu0 0
    %988 = vmatpush1.bf16.msra.mxu0 %v750
    %989 = vmatprep.subr.bf16.mxu0 0
    %990 = vmatpush1.bf16.msra.mxu0 %v751
    %991 = vmatprep.subr.bf16.mxu0 0
    %992 = vmatpush1.bf16.msra.mxu0 %v752
    %993 = vmatprep.mubr.bf16.mxu0 %v276
    %994 = vmatmul.mubr.bf16.gmra.mrb[0].mxu0 %v274
    %v995 = vpop.f32.mrb[0].mxu0
    %v996 = vadd.f32 %v956, %v995
    %v997 = vpop.f32.mrb[0].mxu0
    %v998 = vpop.f32.mrb[0].mxu0
    %v999 = vpop.f32.mrb[0].mxu0
    %1000 = vdwg.mxu0
    %1001 = vmatprep.subr.bf16.mxu0 0
    %1002 = vmatpush1.bf16.msra.mxu0 %v753
    %1003 = vmatprep.subr.bf16.mxu0 0
    %1004 = vmatpush1.bf16.msra.mxu0 %v754
    %1005 = vmatprep.subr.bf16.mxu0 0
    %1006 = vmatpush1.bf16.msra.mxu0 %v755
    %1007 = vmatprep.subr.bf16.mxu0 0
    %1008 = vmatpush1.bf16.msra.mxu0 %v756
    %1009 = vmatprep.subr.bf16.mxu0 0
    %1010 = vmatpush1.bf16.msra.mxu0 %v757
    %1011 = vmatprep.subr.bf16.mxu0 0
    %1012 = vmatpush1.bf16.msra.mxu0 %v758
    %1013 = vmatprep.subr.bf16.mxu0 0
    %1014 = vmatpush1.bf16.msra.mxu0 %v759
    %1015 = vmatprep.subr.bf16.mxu0 0
    %1016 = vmatpush1.bf16.msra.mxu0 %v760
    %1017 = vmatprep.subr.bf16.mxu0 0
    %1018 = vmatpush1.bf16.msra.mxu0 %v761
    %1019 = vmatprep.subr.bf16.mxu0 0
    %1020 = vmatpush1.bf16.msra.mxu0 %v762
    %1021 = vmatprep.subr.bf16.mxu0 0
    %1022 = vmatpush1.bf16.msra.mxu0 %v763
    %1023 = vmatprep.subr.bf16.mxu0 0
    %1024 = vmatpush1.bf16.msra.mxu0 %v764
    %1025 = vmatprep.subr.bf16.mxu0 0
    %1026 = vmatpush1.bf16.msra.mxu0 %v765
    %1027 = vmatprep.subr.bf16.mxu0 0
    %1028 = vmatpush1.bf16.msra.mxu0 %v766
    %1029 = vmatprep.subr.bf16.mxu0 0
    %1030 = vmatpush1.bf16.msra.mxu0 %v767
    %1031 = vmatprep.subr.bf16.mxu0 0
    %1032 = vmatpush1.bf16.msra.mxu0 %v768
    %1033 = vmatprep.mubr.bf16.mxu0 %v273
    %1034 = vmatmul.mubr.bf16.gmra.mrb[0].mxu0 %v259
    %v1035 = vpop.f32.mrb[0].mxu0
    %v1036 = vadd.f32 %v996, %v1035
    %v1037 = vpop.f32.mrb[0].mxu0
    %v1038 = vpop.f32.mrb[0].mxu0
    %v1039 = vpop.f32.mrb[0].mxu0
    %1040 = vdwg.mxu0
    %1041 = vmatprep.subr.bf16.mxu0 0
    %1042 = vmatpush1.bf16.msra.mxu0 %v769
    %1043 = vmatprep.subr.bf16.mxu0 0
    %1044 = vmatpush1.bf16.msra.mxu0 %v770
    %1045 = vmatprep.subr.bf16.mxu0 0
    %1046 = vmatpush1.bf16.msra.mxu0 %v771
    %1047 = vmatprep.subr.bf16.mxu0 0
    %1048 = vmatpush1.bf16.msra.mxu0 %v772
    %1049 = vmatprep.subr.bf16.mxu0 0
    %1050 = vmatpush1.bf16.msra.mxu0 %v773
    %1051 = vmatprep.subr.bf16.mxu0 0
    %1052 = vmatpush1.bf16.msra.mxu0 %v774
    %1053 = vmatprep.subr.bf16.mxu0 0
    %1054 = vmatpush1.bf16.msra.mxu0 %v775
    %1055 = vmatprep.subr.bf16.mxu0 0
    %1056 = vmatpush1.bf16.msra.mxu0 %v776
    %1057 = vmatprep.subr.bf16.mxu0 0
    %1058 = vmatpush1.bf16.msra.mxu0 %v777
    %1059 = vmatprep.subr.bf16.mxu0 0
    %1060 = vmatpush1.bf16.msra.mxu0 %v778
    %1061 = vmatprep.subr.bf16.mxu0 0
    %1062 = vmatpush1.bf16.msra.mxu0 %v779
    %1063 = vmatprep.subr.bf16.mxu0 0
    %1064 = vmatpush1.bf16.msra.mxu0 %v780
    %1065 = vmatprep.subr.bf16.mxu0 0
    %1066 = vmatpush1.bf16.msra.mxu0 %v781
    %1067 = vmatprep.subr.bf16.mxu0 0
    %1068 = vmatpush1.bf16.msra.mxu0 %v782
    %1069 = vmatprep.subr.bf16.mxu0 0
    %1070 = vmatpush1.bf16.msra.mxu0 %v783
    %1071 = vmatprep.subr.bf16.mxu0 0
    %1072 = vmatpush1.bf16.msra.mxu0 %v784
    %1073 = vmatprep.mubr.bf16.mxu0 %v277
    %1074 = vmatmul.mubr.bf16.gmra.mrb[0].mxu0 %v275
    %v1075 = vpop.f32.mrb[0].mxu0
    %v1076 = vadd.f32 %v1036, %v1075
    %v1077 = vpop.f32.mrb[0].mxu0
    %v1078 = vpop.f32.mrb[0].mxu0
    %v1079 = vpop.f32.mrb[0].mxu0
    %1080 = vdwg.mxu0
    %1081 = vmatprep.subr.bf16.mxu0 0
    %1082 = vmatpush1.bf16.msra.mxu0 %v785
    %1083 = vmatprep.subr.bf16.mxu0 0
    %1084 = vmatpush1.bf16.msra.mxu0 %v786
    %1085 = vmatprep.subr.bf16.mxu0 0
    %1086 = vmatpush1.bf16.msra.mxu0 %v787
    %1087 = vmatprep.subr.bf16.mxu0 0
    %1088 = vmatpush1.bf16.msra.mxu0 %v788
    %1089 = vmatprep.subr.bf16.mxu0 0
    %1090 = vmatpush1.bf16.msra.mxu0 %v789
    %1091 = vmatprep.subr.bf16.mxu0 0
    %1092 = vmatpush1.bf16.msra.mxu0 %v790
    %1093 = vmatprep.subr.bf16.mxu0 0
    %1094 = vmatpush1.bf16.msra.mxu0 %v791
    %1095 = vmatprep.subr.bf16.mxu0 0
    %1096 = vmatpush1.bf16.msra.mxu0 %v792
    %1097 = vmatprep.subr.bf16.mxu0 0
    %1098 = vmatpush1.bf16.msra.mxu0 %v793
    %1099 = vmatprep.subr.bf16.mxu0 0
    %1100 = vmatpush1.bf16.msra.mxu0 %v794
    %1101 = vmatprep.subr.bf16.mxu0 0
    %1102 = vmatpush1.bf16.msra.mxu0 %v795
    %1103 = vmatprep.subr.bf16.mxu0 0
    %1104 = vmatpush1.bf16.msra.mxu0 %v796
    %1105 = vmatprep.subr.bf16.mxu0 0
    %1106 = vmatpush1.bf16.msra.mxu0 %v797
    %1107 = vmatprep.subr.bf16.mxu0 0
    %1108 = vmatpush1.bf16.msra.mxu0 %v798
    %1109 = vmatprep.subr.bf16.mxu0 0
    %1110 = vmatpush1.bf16.msra.mxu0 %v799
    %1111 = vmatprep.subr.bf16.mxu0 0
    %1112 = vmatpush1.bf16.msra.mxu0 %v800
    %1113 = vmatprep.mubr.bf16.mxu0 %v314
    %1114 = vmatmul.mubr.bf16.gmra.mrb[0].mxu0 %v300
    %v1115 = vpop.f32.mrb[0].mxu0
    %v1116 = vadd.f32 %v1076, %v1115
    %v1117 = vpop.f32.mrb[0].mxu0
    %v1118 = vpop.f32.mrb[0].mxu0
    %v1119 = vpop.f32.mrb[0].mxu0
    %1120 = vdwg.mxu0
    %1121 = vmatprep.subr.bf16.mxu0 0
    %1122 = vmatpush1.bf16.msra.mxu0 %v801
    %1123 = vmatprep.subr.bf16.mxu0 0
    %1124 = vmatpush1.bf16.msra.mxu0 %v802
    %1125 = vmatprep.subr.bf16.mxu0 0
    %1126 = vmatpush1.bf16.msra.mxu0 %v803
    %1127 = vmatprep.subr.bf16.mxu0 0
    %1128 = vmatpush1.bf16.msra.mxu0 %v804
    %1129 = vmatprep.subr.bf16.mxu0 0
    %1130 = vmatpush1.bf16.msra.mxu0 %v805
    %1131 = vmatprep.subr.bf16.mxu0 0
    %1132 = vmatpush1.bf16.msra.mxu0 %v806
    %1133 = vmatprep.subr.bf16.mxu0 0
    %1134 = vmatpush1.bf16.msra.mxu0 %v807
    %1135 = vmatprep.subr.bf16.mxu0 0
    %1136 = vmatpush1.bf16.msra.mxu0 %v808
    %1137 = vmatprep.subr.bf16.mxu0 0
    %1138 = vmatpush1.bf16.msra.mxu0 %v809
    %1139 = vmatprep.subr.bf16.mxu0 0
    %1140 = vmatpush1.bf16.msra.mxu0 %v810
    %1141 = vmatprep.subr.bf16.mxu0 0
    %1142 = vmatpush1.bf16.msra.mxu0 %v811
    %1143 = vmatprep.subr.bf16.mxu0 0
    %1144 = vmatpush1.bf16.msra.mxu0 %v812
    %1145 = vmatprep.subr.bf16.mxu0 0
    %1146 = vmatpush1.bf16.msra.mxu0 %v813
    %1147 = vmatprep.subr.bf16.mxu0 0
    %1148 = vmatpush1.bf16.msra.mxu0 %v814
    %1149 = vmatprep.subr.bf16.mxu0 0
    %1150 = vmatpush1.bf16.msra.mxu0 %v815
    %1151 = vmatprep.subr.bf16.mxu0 0
    %1152 = vmatpush1.bf16.msra.mxu0 %v816
    %1153 = vmatprep.mubr.bf16.mxu0 %v316
    %1154 = vmatmul.mubr.bf16.gmra.mrb[0].mxu0 %v315
    %v1155 = vpop.f32.mrb[0].mxu0
    %v1156 = vadd.f32 %v1116, %v1155
    %v1157 = vpop.f32.mrb[0].mxu0
    %v1158 = vpop.f32.mrb[0].mxu0
    %v1159 = vpop.f32.mrb[0].mxu0
    %1160 = vdwg.mxu0
    %1161 = vmatprep.subr.bf16.mxu0 0
    %1162 = vmatpush1.bf16.msra.mxu0 %v817
    %1163 = vmatprep.subr.bf16.mxu0 0
    %1164 = vmatpush1.bf16.msra.mxu0 %v818
    %1165 = vmatprep.subr.bf16.mxu0 0
    %1166 = vmatpush1.bf16.msra.mxu0 0
    %1167 = vmatprep.subr.bf16.mxu0 0
    %1168 = vmatpush1.bf16.msra.mxu0 0
    %1169 = vmatprep.subr.bf16.mxu0 0
    %1170 = vmatpush1.bf16.msra.mxu0 0
    %1171 = vmatprep.subr.bf16.mxu0 0
    %1172 = vmatpush1.bf16.msra.mxu0 0
    %1173 = vmatprep.subr.bf16.mxu0 0
    %1174 = vmatpush1.bf16.msra.mxu0 0
    %1175 = vmatprep.subr.bf16.mxu0 0
    %1176 = vmatpush1.bf16.msra.mxu0 0
    %1177 = vmatprep.subr.bf16.mxu0 0
    %1178 = vmatpush1.bf16.msra.mxu0 0
    %1179 = vmatprep.subr.bf16.mxu0 0
    %1180 = vmatpush1.bf16.msra.mxu0 0
    %1181 = vmatprep.subr.bf16.mxu0 0
    %1182 = vmatpush1.bf16.msra.mxu0 0
    %1183 = vmatprep.subr.bf16.mxu0 0
    %1184 = vmatpush1.bf16.msra.mxu0 0
    %1185 = vmatprep.subr.bf16.mxu0 0
    %1186 = vmatpush1.bf16.msra.mxu0 0
    %1187 = vmatprep.subr.bf16.mxu0 0
    %1188 = vmatpush1.bf16.msra.mxu0 0
    %1189 = vmatprep.subr.bf16.mxu0 0
    %1190 = vmatpush1.bf16.msra.mxu0 0
    %1191 = vmatprep.subr.bf16.mxu0 0
    %1192 = vmatpush1.bf16.msra.mxu0 0
    %1193 = vmatprep.mubr.bf16.mxu0 0
    %1194 = vmatmul.mubr.bf16.gmra.mrb[0].mxu0 %v919
    %v1195 = vpop.f32.mrb[0].mxu0
    %v1196 = vadd.f32 %v1156, %v1195
    %v1197 = vpop.f32.mrb[0].mxu0
    %v1198 = vpop.f32.mrb[0].mxu0
    %v1199 = vpop.f32.mrb[0].mxu0
    %1200 = vdwg.mxu0
    %v1201 = vmax.f32 %v1196, 0.0
    %v1202 = vpack.c.bf16 %v1201, %v1201
    %v1203 = vld [vmem:[%s3] sm:$0xf]
    %v1204 = vld [vmem:[%s3 + $0x4] sm:$0xf]
    %v1205 = vld [vmem:[%s3 + $0x8] sm:$0xf]
    %v1206 = vld [vmem:[%s3 + $0xc] sm:$0xf]
    %v1207 = vld [vmem:[%s3 + $0x10] sm:$0xf]
    %v1208 = vld [vmem:[%s3 + $0x14] sm:$0xf]
    %v1209 = vld [vmem:[%s3 + $0x18] sm:$0xf]
    %v1210 = vld [vmem:[%s3 + $0x1c] sm:$0xf]
    %v1211 = vld [vmem:[%s3 + $0x20] sm:$0xf]
    %v1212 = vld [vmem:[%s3 + $0x24] sm:$0xf]
    %v1213 = vld [vmem:[%s3 + $0x28] sm:$0xf]
    %v1214 = vld [vmem:[%s3 + $0x2c] sm:$0xf]
    %v1215 = vld [vmem:[%s3 + $0x30] sm:$0xf]
    %v1216 = vld [vmem:[%s3 + $0x34] sm:$0xf]
    %v1217 = vld [vmem:[%s3 + $0x38] sm:$0xf]
    %v1218 = vld [vmem:[%s3 + $0x3c] sm:$0xf]
    %v1219 = vld [vmem:[%s4] sm:$0x1]
    %v1221 = vlaneseq
    %v1222 = vshrl.u32 %v1221, 7
    %v1223 = vsub.s32 0, %v1222
    %v1224 = vrot.slane %v1219, %v1223
    %v1242 = vunpack.c.l.b16 %v1203
    %v1243 = vunpack.c.l.b16 %v1204
    %v1244 = vunpack.c.l.b16 %v1205
    %v1245 = vunpack.c.l.b16 %v1206
    %v1246 = vunpack.c.l.b16 %v1207
    %v1247 = vunpack.c.l.b16 %v1208
    %v1248 = vunpack.c.l.b16 %v1209
    %v1249 = vunpack.c.l.b16 %v1210
    %v1250 = vunpack.c.l.b16 %v1211
    %v1251 = vunpack.c.l.b16 %v1212
    %v1252 = vunpack.c.l.b16 %v1213
    %v1253 = vunpack.c.l.b16 %v1214
    %v1254 = vunpack.c.l.b16 %v1215
    %v1255 = vunpack.c.l.b16 %v1216
    %v1256 = vunpack.c.l.b16 %v1217
    %v1257 = vunpack.c.l.b16 %v1218
    %v1258 = vpack.c.b16 %v1243, %v1242
    %v1259 = vpack.c.b16 %v1245, %v1244
    %v1260 = vpack.c.b16 %v1247, %v1246
    %v1261 = vpack.c.b16 %v1249, %v1248
    %v1262 = vpack.c.b16 %v1251, %v1250
    %v1263 = vpack.c.b16 %v1253, %v1252
    %v1264 = vpack.c.b16 %v1255, %v1254
    %v1265 = vpack.c.b16 %v1257, %v1256
    %1274 = vmatprep.subr.bf16.mxu0 0
    %1275 = vmatpush1.bf16.msra.mxu0 %v1258
    %1276 = vmatprep.subr.bf16.mxu0 0
    %1277 = vmatpush1.bf16.msra.mxu0 %v1259
    %1278 = vmatprep.subr.bf16.mxu0 0
    %1279 = vmatpush1.bf16.msra.mxu0 %v1260
    %1280 = vmatprep.subr.bf16.mxu0 0
    %1281 = vmatpush1.bf16.msra.mxu0 %v1261
    %1282 = vmatprep.subr.bf16.mxu0 0
    %1283 = vmatpush1.bf16.msra.mxu0 %v1262
    %1284 = vmatprep.subr.bf16.mxu0 0
    %1285 = vmatpush1.bf16.msra.mxu0 %v1263
    %1286 = vmatprep.subr.bf16.mxu0 0
    %1287 = vmatpush1.bf16.msra.mxu0 %v1264
    %1288 = vmatprep.subr.bf16.mxu0 0
    %1289 = vmatpush1.bf16.msra.mxu0 %v1265
    %1290 = vmatprep.subr.bf16.mxu0 0
    %1291 = vmatpush1.bf16.msra.mxu0 0
    %1292 = vmatprep.subr.bf16.mxu0 0
    %1293 = vmatpush1.bf16.msra.mxu0 0
    %1294 = vmatprep.subr.bf16.mxu0 0
    %1295 = vmatpush1.bf16.msra.mxu0 0
    %1296 = vmatprep.subr.bf16.mxu0 0
    %1297 = vmatpush1.bf16.msra.mxu0 0
    %1298 = vmatprep.subr.bf16.mxu0 0
    %1299 = vmatpush1.bf16.msra.mxu0 0
    %1300 = vmatprep.subr.bf16.mxu0 0
    %1301 = vmatpush1.bf16.msra.mxu0 0
    %1302 = vmatprep.subr.bf16.mxu0 0
    %1303 = vmatpush1.bf16.msra.mxu0 0
    %1304 = vmatprep.subr.bf16.mxu0 0
    %1305 = vmatpush1.bf16.msra.mxu0 0
    %1306 = vmatprep.mubr.bf16.mxu0 0
    %1307 = vmatmul.mubr.bf16.gmra.mrb[0].mxu0 %v1202
    %v1308 = vpop.f32.mrb[0].mxu0
    %v1309 = vadd.f32 %v1224, %v1308
    %v1310 = vpop.f32.mrb[0].mxu0
    %v1311 = vpop.f32.mrb[0].mxu0
    %v1312 = vpop.f32.mrb[0].mxu0
    %1313 = vdwg.mxu0
    %vm1314 = vcmask 74752
    %1315 = vst.msk [vmem:[#allocation2] sm:$0x3] %vm1314, %v1309
    // Predicated region
    $region22: #{simple_cnn_forward.5} parent=1 // pred_check
      _
    $region23: #{simple_cnn_forward.5} parent=1 // pred_check_branch
      %1317 = sbr.rel (0) target = $region25
    $region24: #{simple_cnn_forward.5} parent=1 // pred_region
      %s1319 = ssub.s32 32, 32
      %1320 = vsyncadd [#allocation3], %s1319
      %s1322 = sshll.u32 [#allocation2], 4
      %s1323 = int_to_ptr.vmem [resolvable:$true] %s1322
      %1325 = dma.vmem_to_hbm [thread:$0]  %s1323, 32, %s5, [#allocation3]
    $region25: #{simple_cnn_forward.5} parent=1 // pred_fallthru
      _
    // Predicated region
    $region26: #{simple_cnn_forward.5} parent=1 // pred_check
      _
    $region27: #{simple_cnn_forward.5} parent=1 // pred_check_branch
      %1327 = sbr.rel (0) target = $region29
    $region28: #{simple_cnn_forward.5} parent=1 // pred_region
      %1328 = dma.done [#allocation3], 32
    $region29: #{simple_cnn_forward.5} parent=1 // pred_fallthru
      _
    %1329 = vsyncpa [#allocation3], 1

</llo_original>
